<compile_context>
chip_gen: v5e
topology: v5e:2x2
jax: 0.10.0
libtpu: 0.0.40
codegen_flags: <defaults>
</compile_context>

<pallas_src>
import jax
import jax.numpy as jnp
from jax import lax
from jax.experimental import pallas as pl
from jax.experimental.pallas import tpu as pltpu


def _make_kernel(H, W, Cin, Cout, ipb, Npad, GUT, edge):
    """Kernel over one block of `ipb` images, channels-on-sublanes layout."""
    Wp = W + 2                      # width incl. one zero pad column per side
    Nc = H * Wp                     # flat band length of one image
    H2, W2 = H // 2, W // 2
    HW4 = H2 * W2
    Ltot = ipb * Npad               # lanes of one block (images concatenated)
    # 3x3 tap offsets in flat-band coordinates (dh-major, dw-minor; must match
    # the weight reshape done in the wrapper).
    deltas = [(dh - 1) * Wp + (dw - 1) for dh in range(3) for dw in range(3)]
    f32 = jnp.float32
    HIGH = lax.Precision.HIGHEST

    def kernel(x_ref, w1_ref, b1_ref, w23_ref, b23_ref, out_ref, a_ref):
        cdt = a_ref.dtype
        x = x_ref[0]                                      # (Cin, Ltot)

        # Zero the (otherwise uninitialised) scratch end gutters every step
        # (tiny, 128-aligned stores; megacore-safe).
        edge0 = jnp.zeros((Cin, edge), cdt)
        a_ref[:, :edge] = edge0
        a_ref[:, edge + Ltot:] = edge0

        # ---- valid-pixel lane mask, built in-kernel from iota (no HBM) ------
        lane = lax.broadcasted_iota(jnp.int32, (1, Ltot), 1)
        img = jnp.zeros_like(lane)
        for t in range(1, ipb):                           # floor(lane / Npad)
            img = img + (lane >= t * Npad).astype(jnp.int32)
        r = lane - img * Npad - GUT                       # position inside band
        row = jnp.zeros_like(lane)
        for t in range(1, H):                             # floor(r / Wp)
            row = row + (r >= t * Wp).astype(jnp.int32)
        col = r - row * Wp
        valid = (r >= 0) & (r < Nc) & (col >= 1) & (col <= W)   # (1, Ltot)

        def conv3x3(w_ref, extra=None):
            # im2col: 9 shifted lane slices of the small scratch, one matmul.
            pieces = [a_ref[:, edge + d: edge + d + Ltot] for d in deltas]
            if extra is not None:
                pieces.append(extra)                      # fused 1x1 shortcut
            stk = jnp.concatenate(pieces, axis=0)         # (9*Cin[+Cin], Ltot)
            return jnp.dot(w_ref[...], stk,
                           precision=HIGH, preferred_element_type=f32)

        # ---- ReLU -> 3x3 conv (Cin->Cin): one K=9*Cin matmul -----------------
        a_ref[:, edge:edge + Ltot] = jnp.maximum(x, 0.0).astype(cdt)
        y1 = conv3x3(w1_ref) + b1_ref[...]                # (Cin, Ltot) f32
        # ReLU, then re-zero pad columns / gutters (conv2 needs true zeros).
        r1 = jnp.where(valid, jnp.maximum(y1, 0.0), 0.0)

        # ---- ReLU'd y1 -> 3x3 conv (Cin->Cout) fused with the 1x1 shortcut
        #      (shortcut commuted ahead of the pool): one K=10*Cin matmul ------
        a_ref[:, edge:edge + Ltot] = r1.astype(cdt)
        z = conv3x3(w23_ref, extra=x)                     # (Cout, Ltot) f32

        # ---- AvgPool2d(2,2): one selection matmul per image; the 0.25
        #      selection matrix is generated in-kernel from iota --------------
        q = lax.broadcasted_iota(jnp.int32, (1, HW4), 1)
        ph = jnp.zeros_like(q)
        for t in range(1, H2):                            # floor(q / W2)
            ph = ph + (q >= t * W2).astype(jnp.int32)
        pw = q - ph * W2
        base = GUT + 1 + ph * (2 * Wp) + 2 * pw           # (1, HW4)
        li = lax.broadcasted_iota(jnp.int32, (Npad, HW4), 0)
        d = li - base
        hit = (d == 0) | (d == 1) | (d == Wp) | (d == Wp + 1)
        sel = jnp.where(hit, 0.25, 0.0).astype(f32)       # (Npad, HW4)

        pieces = [jnp.dot(z[:, i * Npad:(i + 1) * Npad], sel,
                          precision=HIGH, preferred_element_type=f32)
                  for i in range(ipb)]                    # each (Cout, HW4)
        pooled = pieces[0] if ipb == 1 else jnp.concatenate(pieces, axis=1)
        # b2 and b3 commute with the average (pool weights sum to 1).
        out_ref[0] = (pooled + b23_ref[...]).astype(out_ref.dtype)

    return kernel


def resblock_pallas(x, params, *, compute_dtype=jnp.float32,
                    images_per_block=None):
    B, H, W, Cin = x.shape
    Cout = params["w2"].shape[-1]
    assert H % 2 == 0 and W % 2 == 0, "AvgPool2d(2,2) needs even H, W"
    H2, W2 = H // 2, W // 2
    HW4 = H2 * W2

    Wp = W + 2
    Nc = H * Wp
    Npad = pl.cdiv(Nc + 2 * (Wp + 1), 128) * 128   # per-image padded band len
    GUT = (Npad - Nc) // 2                         # per-image zero gutter
    edge = pl.cdiv(Wp + 1, 128) * 128              # aligned scratch end gutter

    # Images per grid step: smallest divisor of B making the stored output
    # block lane-dense (last dim >= 128).  On v7x with tiny batches prefer
    # images_per_block=1 to keep a parallel grid axis >= 2 (two TensorCores).
    if images_per_block is None:
        ipb = B
        for d in range(1, B + 1):
            if B % d == 0 and d * HW4 >= 128:
                ipb = d
                break
    else:
        ipb = images_per_block
    assert B % ipb == 0
    NB = B // ipb
    Ltot = ipb * Npad
    Q = ipb * HW4
    Lscr = Ltot + 2 * edge

    cdt = compute_dtype
    f32 = jnp.float32

    # ---- wrapper-side layout plumbing only (no compute hoisted) -------------
    # column-pad, flatten rows, add per-image gutters, channels -> sublanes.
    xp = jnp.pad(x, ((0, 0), (0, 0), (1, 1), (0, 0)))          # (B,H,Wp,Cin)
    xf = jnp.pad(xp.reshape(B, Nc, Cin), ((0, 0), (GUT, GUT), (0, 0)))
    xT = xf.transpose(0, 2, 1)                                 # (B,Cin,Npad)
    xT = (xT.reshape(NB, ipb, Cin, Npad).transpose(0, 2, 1, 3)
            .reshape(NB, Cin, Ltot).astype(cdt))

    # Weights as (out_channels, K) matrices matching the in-kernel im2col order
    # (tap-major, input-channel-minor); shortcut folded into the conv2 matmul.
    w1m = jnp.transpose(params["w1"], (3, 0, 1, 2)).reshape(Cin, 9 * Cin).astype(cdt)
    w2m = jnp.transpose(params["w2"], (3, 0, 1, 2)).reshape(Cout, 9 * Cin)
    w23m = jnp.concatenate([w2m, params["w3"].T], axis=1).astype(cdt)  # (Cout,10*Cin)
    b1c = params["b1"].reshape(Cin, 1).astype(f32)
    b23c = (params["b2"] + params["b3"]).reshape(Cout, 1).astype(f32)

    kernel = _make_kernel(H, W, Cin, Cout, ipb, Npad, GUT, edge)
    out = pl.pallas_call(
        kernel,
        out_shape=jax.ShapeDtypeStruct((NB, Cout, Q), f32),
        grid=(NB,),
        in_specs=[
            pl.BlockSpec((1, Cin, Ltot), lambda b: (b, 0, 0)),     # x (flat band)
            pl.BlockSpec((Cin, 9 * Cin), lambda b: (0, 0)),        # w1
            pl.BlockSpec((Cin, 1), lambda b: (0, 0)),              # b1
            pl.BlockSpec((Cout, 10 * Cin), lambda b: (0, 0)),      # [w2 | w3]
            pl.BlockSpec((Cout, 1), lambda b: (0, 0)),             # b2 + b3
        ],
        out_specs=pl.BlockSpec((1, Cout, Q), lambda b: (b, 0, 0)),
        scratch_shapes=[pltpu.VMEM((Cin, Lscr), cdt)],             # padded band
        compiler_params=pltpu.CompilerParams(
            dimension_semantics=("parallel",)),
    )(xT, w1m, b1c, w23m, b23c)

    # (NB, Cout, ipb*HW4) -> (B, H/2, W/2, Cout)
    out = out.reshape(NB, Cout, ipb, H2, W2).transpose(0, 2, 3, 4, 1)
    return out.reshape(B, H2, W2, Cout)


def resblock_reference(x, params):
    """Pure-JAX (XLA) reference with identical semantics, NHWC / HWIO layouts."""
    def conv(inp, w, b, pad):
        out = jax.lax.conv_general_dilated(
            inp, w, window_strides=(1, 1),
            padding=[(pad, pad), (pad, pad)],
            dimension_numbers=("NHWC", "HWIO", "NHWC"),
            precision=jax.lax.Precision.HIGHEST)
        return out + b.reshape(1, 1, 1, -1)

    def avgpool(inp):
        s = jax.lax.reduce_window(inp, 0.0, jax.lax.add,
                                  (1, 2, 2, 1), (1, 2, 2, 1), "VALID")
        return s * 0.25

    t = jnp.maximum(x, 0.0)
    t = conv(t, params["w1"], params["b1"], 1)
    t = jnp.maximum(t, 0.0)
    t = conv(t, params["w2"], params["b2"], 1)
    t = avgpool(t)
    s = avgpool(x)
    s = conv(s, params["w3"][None, None], params["b3"], 0)
    return t + s


if __name__ == "__main__":
    B, Cin, Cout, H, W = 2, 4, 8, 16, 16
    key = jax.random.PRNGKey(0)
    kx, k1, k2, k3, k4, k5, k6 = jax.random.split(key, 7)

    x = jax.random.normal(kx, (B, H, W, Cin), jnp.float32)
    params = {
        "w1": 0.2 * jax.random.normal(k1, (3, 3, Cin, Cin), jnp.float32),
        "b1": 0.1 * jax.random.normal(k2, (Cin,), jnp.float32),
        "w2": 0.2 * jax.random.normal(k3, (3, 3, Cin, Cout), jnp.float32),
        "b2": 0.1 * jax.random.normal(k4, (Cout,), jnp.float32),
        "w3": 0.2 * jax.random.normal(k5, (Cin, Cout), jnp.float32),
        "b3": 0.1 * jax.random.normal(k6, (Cout,), jnp.float32),
    }

    out = jax.block_until_ready(resblock_pallas(x, params))
    ref = jax.block_until_ready(resblock_reference(x, params))

    assert out.shape == (B, H // 2, W // 2, Cout), out.shape
    max_err = float(jnp.max(jnp.abs(out - ref)))
    # f32 compute with HIGHEST-precision MXU passes: expect ~1e-5 error.
    if not (max_err < 5e-3):
        raise AssertionError(f"mismatch vs reference, max abs err = {max_err}")
    print("KERNEL_OK")
</pallas_src>

<mosaic_0001>
module attributes {stable_mosaic.version = 11 : i64} {
  func.func @kernel(%arg0: i32, %arg1: memref<1x4x768xf32, #tpu.memory_space<vmem>>, %arg2: memref<4x36xf32, #tpu.memory_space<vmem>>, %arg3: memref<4x1xf32, #tpu.memory_space<vmem>>, %arg4: memref<8x40xf32, #tpu.memory_space<vmem>>, %arg5: memref<8x1xf32, #tpu.memory_space<vmem>>, %arg6: memref<1x8x128xf32, #tpu.memory_space<vmem>>, %arg7: memref<4x1024xf32, #tpu.memory_space<vmem>>) attributes {dimension_semantics = [#tpu.dimension_semantics<parallel>], iteration_bounds = array<i64: 1>, scalar_prefetch = 0 : i64, scratch_operands = 1 : i64, tpu.core_type = #tpu.core_type<tc>, window_params = [{transform_indices = @transform_0, window_bounds = array<i64: 1, 4, 768>}, {pipeline_mode = #tpu.pipeline_mode<synchronous>, transform_indices = @transform_1, window_bounds = array<i64: 4, 36>}, {pipeline_mode = #tpu.pipeline_mode<synchronous>, transform_indices = @transform_2, window_bounds = array<i64: 4, 1>}, {pipeline_mode = #tpu.pipeline_mode<synchronous>, transform_indices = @transform_3, window_bounds = array<i64: 8, 40>}, {pipeline_mode = #tpu.pipeline_mode<synchronous>, transform_indices = @transform_4, window_bounds = array<i64: 8, 1>}, {transform_indices = @transform_5, window_bounds = array<i64: 1, 8, 128>}]} {
    %c0 = arith.constant 0 : index
    %c0_0 = arith.constant 0 : index
    %c0_1 = arith.constant 0 : index
    %0 = vector.load %arg1[%c0, %c0_0, %c0_1] : memref<1x4x768xf32, #tpu.memory_space<vmem>>, vector<1x4x768xf32>
    %1 = vector.shape_cast %0 : vector<1x4x768xf32> to vector<4x768xf32>
    %cst = arith.constant 0.000000e+00 : f32
    %2 = vector.broadcast %cst : f32 to vector<4x128xf32>
    %c0_2 = arith.constant 0 : index
    %c0_3 = arith.constant 0 : index
    %3 = vector.load %arg7[%c0_2, %c0_3] : memref<4x1024xf32, #tpu.memory_space<vmem>>, vector<4x128xf32>
    tpu.vector_store %arg7[%c0_2, %c0_3], %2 {strides = array<i32>} : memref<4x1024xf32, #tpu.memory_space<vmem>>, vector<4x128xf32>,
    %c0_4 = arith.constant 0 : index
    %c896 = arith.constant 896 : index
    %4 = vector.load %arg7[%c0_4, %c896] : memref<4x1024xf32, #tpu.memory_space<vmem>>, vector<4x128xf32>
    tpu.vector_store %arg7[%c0_4, %c896], %2 {strides = array<i32>} : memref<4x1024xf32, #tpu.memory_space<vmem>>, vector<4x128xf32>,
    %5 = tpu.iota {dimensions = array<i32: 1>} : vector<1x768xi32>
    %c0_i32 = arith.constant 0 : i32
    %6 = vector.broadcast %c0_i32 : i32 to vector<1x768xi32>
    %c384_i32 = arith.constant 384 : i32
    %7 = vector.broadcast %c384_i32 : i32 to vector<1x768xi32>
    %8 = arith.cmpi sge, %5, %7 : vector<1x768xi32>
    %9 = arith.extui %8 : vector<1x768xi1> to vector<1x768xi32>
    %10 = arith.addi %6, %9 : vector<1x768xi32>
    %c384_i32_5 = arith.constant 384 : i32
    %11 = vector.broadcast %c384_i32_5 : i32 to vector<1x768xi32>
    %12 = arith.muli %10, %11 : vector<1x768xi32>
    %13 = arith.subi %5, %12 : vector<1x768xi32>
    %c48_i32 = arith.constant 48 : i32
    %14 = vector.broadcast %c48_i32 : i32 to vector<1x768xi32>
    %15 = arith.subi %13, %14 : vector<1x768xi32>
    %c0_i32_6 = arith.constant 0 : i32
    %16 = vector.broadcast %c0_i32_6 : i32 to vector<1x768xi32>
    %c18_i32 = arith.constant 18 : i32
    %17 = vector.broadcast %c18_i32 : i32 to vector<1x768xi32>
    %18 = arith.cmpi sge, %15, %17 : vector<1x768xi32>
    %19 = arith.extui %18 : vector<1x768xi1> to vector<1x768xi32>
    %20 = arith.addi %16, %19 : vector<1x768xi32>
    %c36_i32 = arith.constant 36 : i32
    %21 = vector.broadcast %c36_i32 : i32 to vector<1x768xi32>
    %22 = arith.cmpi sge, %15, %21 : vector<1x768xi32>
    %23 = arith.extui %22 : vector<1x768xi1> to vector<1x768xi32>
    %24 = arith.addi %20, %23 : vector<1x768xi32>
    %c54_i32 = arith.constant 54 : i32
    %25 = vector.broadcast %c54_i32 : i32 to vector<1x768xi32>
    %26 = arith.cmpi sge, %15, %25 : vector<1x768xi32>
    %27 = arith.extui %26 : vector<1x768xi1> to vector<1x768xi32>
    %28 = arith.addi %24, %27 : vector<1x768xi32>
    %c72_i32 = arith.constant 72 : i32
    %29 = vector.broadcast %c72_i32 : i32 to vector<1x768xi32>
    %30 = arith.cmpi sge, %15, %29 : vector<1x768xi32>
    %31 = arith.extui %30 : vector<1x768xi1> to vector<1x768xi32>
    %32 = arith.addi %28, %31 : vector<1x768xi32>
    %c90_i32 = arith.constant 90 : i32
    %33 = vector.broadcast %c90_i32 : i32 to vector<1x768xi32>
    %34 = arith.cmpi sge, %15, %33 : vector<1x768xi32>
    %35 = arith.extui %34 : vector<1x768xi1> to vector<1x768xi32>
    %36 = arith.addi %32, %35 : vector<1x768xi32>
    %c108_i32 = arith.constant 108 : i32
    %37 = vector.broadcast %c108_i32 : i32 to vector<1x768xi32>
    %38 = arith.cmpi sge, %15, %37 : vector<1x768xi32>
    %39 = arith.extui %38 : vector<1x768xi1> to vector<1x768xi32>
    %40 = arith.addi %36, %39 : vector<1x768xi32>
    %c126_i32 = arith.constant 126 : i32
    %41 = vector.broadcast %c126_i32 : i32 to vector<1x768xi32>
    %42 = arith.cmpi sge, %15, %41 : vector<1x768xi32>
    %43 = arith.extui %42 : vector<1x768xi1> to vector<1x768xi32>
    %44 = arith.addi %40, %43 : vector<1x768xi32>
    %c144_i32 = arith.constant 144 : i32
    %45 = vector.broadcast %c144_i32 : i32 to vector<1x768xi32>
    %46 = arith.cmpi sge, %15, %45 : vector<1x768xi32>
    %47 = arith.extui %46 : vector<1x768xi1> to vector<1x768xi32>
    %48 = arith.addi %44, %47 : vector<1x768xi32>
    %c162_i32 = arith.constant 162 : i32
    %49 = vector.broadcast %c162_i32 : i32 to vector<1x768xi32>
    %50 = arith.cmpi sge, %15, %49 : vector<1x768xi32>
    %51 = arith.extui %50 : vector<1x768xi1> to vector<1x768xi32>
    %52 = arith.addi %48, %51 : vector<1x768xi32>
    %c180_i32 = arith.constant 180 : i32
    %53 = vector.broadcast %c180_i32 : i32 to vector<1x768xi32>
    %54 = arith.cmpi sge, %15, %53 : vector<1x768xi32>
    %55 = arith.extui %54 : vector<1x768xi1> to vector<1x768xi32>
    %56 = arith.addi %52, %55 : vector<1x768xi32>
    %c198_i32 = arith.constant 198 : i32
    %57 = vector.broadcast %c198_i32 : i32 to vector<1x768xi32>
    %58 = arith.cmpi sge, %15, %57 : vector<1x768xi32>
    %59 = arith.extui %58 : vector<1x768xi1> to vector<1x768xi32>
    %60 = arith.addi %56, %59 : vector<1x768xi32>
    %c216_i32 = arith.constant 216 : i32
    %61 = vector.broadcast %c216_i32 : i32 to vector<1x768xi32>
    %62 = arith.cmpi sge, %15, %61 : vector<1x768xi32>
    %63 = arith.extui %62 : vector<1x768xi1> to vector<1x768xi32>
    %64 = arith.addi %60, %63 : vector<1x768xi32>
    %c234_i32 = arith.constant 234 : i32
    %65 = vector.broadcast %c234_i32 : i32 to vector<1x768xi32>
    %66 = arith.cmpi sge, %15, %65 : vector<1x768xi32>
    %67 = arith.extui %66 : vector<1x768xi1> to vector<1x768xi32>
    %68 = arith.addi %64, %67 : vector<1x768xi32>
    %c252_i32 = arith.constant 252 : i32
    %69 = vector.broadcast %c252_i32 : i32 to vector<1x768xi32>
    %70 = arith.cmpi sge, %15, %69 : vector<1x768xi32>
    %71 = arith.extui %70 : vector<1x768xi1> to vector<1x768xi32>
    %72 = arith.addi %68, %71 : vector<1x768xi32>
    %c270_i32 = arith.constant 270 : i32
    %73 = vector.broadcast %c270_i32 : i32 to vector<1x768xi32>
    %74 = arith.cmpi sge, %15, %73 : vector<1x768xi32>
    %75 = arith.extui %74 : vector<1x768xi1> to vector<1x768xi32>
    %76 = arith.addi %72, %75 : vector<1x768xi32>
    %c18_i32_7 = arith.constant 18 : i32
    %77 = vector.broadcast %c18_i32_7 : i32 to vector<1x768xi32>
    %78 = arith.muli %76, %77 : vector<1x768xi32>
    %79 = arith.subi %15, %78 : vector<1x768xi32>
    %c0_i32_8 = arith.constant 0 : i32
    %80 = vector.broadcast %c0_i32_8 : i32 to vector<1x768xi32>
    %81 = arith.cmpi sge, %15, %80 : vector<1x768xi32>
    %c288_i32 = arith.constant 288 : i32
    %82 = vector.broadcast %c288_i32 : i32 to vector<1x768xi32>
    %83 = arith.cmpi slt, %15, %82 : vector<1x768xi32>
    %84 = arith.andi %81, %83 : vector<1x768xi1>
    %c1_i32 = arith.constant 1 : i32
    %85 = vector.broadcast %c1_i32 : i32 to vector<1x768xi32>
    %86 = arith.cmpi sge, %79, %85 : vector<1x768xi32>
    %87 = arith.andi %84, %86 : vector<1x768xi1>
    %c16_i32 = arith.constant 16 : i32
    %88 = vector.broadcast %c16_i32 : i32 to vector<1x768xi32>
    %89 = arith.cmpi sle, %79, %88 : vector<1x768xi32>
    %90 = arith.andi %87, %89 : vector<1x768xi1>
    %cst_9 = arith.constant 0.000000e+00 : f32
    %91 = vector.broadcast %cst_9 : f32 to vector<4x768xf32>
    %92 = arith.maximumf %1, %91 : vector<4x768xf32>
    %c0_10 = arith.constant 0 : index
    %c128 = arith.constant 128 : index
    %93 = vector.load %arg7[%c0_10, %c128] : memref<4x1024xf32, #tpu.memory_space<vmem>>, vector<4x768xf32>
    tpu.vector_store %arg7[%c0_10, %c128], %92 {strides = array<i32>} : memref<4x1024xf32, #tpu.memory_space<vmem>>, vector<4x768xf32>,
    %c0_11 = arith.constant 0 : index
    %c109 = arith.constant 109 : index
    %94 = vector.load %arg7[%c0_11, %c109] : memref<4x1024xf32, #tpu.memory_space<vmem>>, vector<4x768xf32>
    %c0_12 = arith.constant 0 : index
    %c110 = arith.constant 110 : index
    %95 = vector.load %arg7[%c0_12, %c110] : memref<4x1024xf32, #tpu.memory_space<vmem>>, vector<4x768xf32>
    %c0_13 = arith.constant 0 : index
    %c111 = arith.constant 111 : index
    %96 = vector.load %arg7[%c0_13, %c111] : memref<4x1024xf32, #tpu.memory_space<vmem>>, vector<4x768xf32>
    %c0_14 = arith.constant 0 : index
    %c127 = arith.constant 127 : index
    %97 = vector.load %arg7[%c0_14, %c127] : memref<4x1024xf32, #tpu.memory_space<vmem>>, vector<4x768xf32>
    %c0_15 = arith.constant 0 : index
    %c128_16 = arith.constant 128 : index
    %98 = vector.load %arg7[%c0_15, %c128_16] : memref<4x1024xf32, #tpu.memory_space<vmem>>, vector<4x768xf32>
    %c0_17 = arith.constant 0 : index
    %c129 = arith.constant 129 : index
    %99 = vector.load %arg7[%c0_17, %c129] : memref<4x1024xf32, #tpu.memory_space<vmem>>, vector<4x768xf32>
    %c0_18 = arith.constant 0 : index
    %c145 = arith.constant 145 : index
    %100 = vector.load %arg7[%c0_18, %c145] : memref<4x1024xf32, #tpu.memory_space<vmem>>, vector<4x768xf32>
    %c0_19 = arith.constant 0 : index
    %c146 = arith.constant 146 : index
    %101 = vector.load %arg7[%c0_19, %c146] : memref<4x1024xf32, #tpu.memory_space<vmem>>, vector<4x768xf32>
    %c0_20 = arith.constant 0 : index
    %c147 = arith.constant 147 : index
    %102 = vector.load %arg7[%c0_20, %c147] : memref<4x1024xf32, #tpu.memory_space<vmem>>, vector<4x768xf32>
    %103 = tpu.concatenate %94, %95, %96, %97, %98, %99, %100, %101, %102 in 0 : vector<4x768xf32>, vector<4x768xf32>, vector<4x768xf32>, vector<4x768xf32>, vector<4x768xf32>, vector<4x768xf32>, vector<4x768xf32>, vector<4x768xf32>, vector<4x768xf32> -> vector<36x768xf32>
    %c0_21 = arith.constant 0 : index
    %c0_22 = arith.constant 0 : index
    %104 = vector.load %arg2[%c0_21, %c0_22] : memref<4x36xf32, #tpu.memory_space<vmem>>, vector<4x36xf32>
    %cst_23 = arith.constant dense<0.000000e+00> : vector<4x768xf32>
    %105 = tpu.matmul %104, %103, %cst_23 {dimension_numbers = #tpu.dot_dimension_numbers<[1], [0], [0], [1], [0, 0, 1, 1], [], []>, precision = #tpu.contract_precision<fp32>} : vector<4x36xf32>, vector<36x768xf32>, vector<4x768xf32> -> vector<4x768xf32>
    %c0_24 = arith.constant 0 : index
    %c0_25 = arith.constant 0 : index
    %106 = vector.load %arg3[%c0_24, %c0_25] : memref<4x1xf32, #tpu.memory_space<vmem>>, vector<4x1xf32>
    %107 = vector.broadcast %106 : vector<4x1xf32> to vector<4x768xf32>
    %108 = arith.addf %105, %107 : vector<4x768xf32>
    %cst_26 = arith.constant 0.000000e+00 : f32
    %109 = vector.broadcast %cst_26 : f32 to vector<4x768xf32>
    %110 = arith.maximumf %108, %109 : vector<4x768xf32>
    %cst_27 = arith.constant 0.000000e+00 : f32
    %111 = vector.shape_cast %90 : vector<1x768xi1> to vector<1x768xi1>
    %112 = vector.broadcast %111 : vector<1x768xi1> to vector<4x768xi1>
    %113 = vector.broadcast %cst_27 : f32 to vector<4x768xf32>
    %114 = arith.select %112, %110, %113 : vector<4x768xi1>, vector<4x768xf32>
    %c0_28 = arith.constant 0 : index
    %c128_29 = arith.constant 128 : index
    %115 = vector.load %arg7[%c0_28, %c128_29] : memref<4x1024xf32, #tpu.memory_space<vmem>>, vector<4x768xf32>
    tpu.vector_store %arg7[%c0_28, %c128_29], %114 {strides = array<i32>} : memref<4x1024xf32, #tpu.memory_space<vmem>>, vector<4x768xf32>,
    %c0_30 = arith.constant 0 : index
    %c109_31 = arith.constant 109 : index
    %116 = vector.load %arg7[%c0_30, %c109_31] : memref<4x1024xf32, #tpu.memory_space<vmem>>, vector<4x768xf32>
    %c0_32 = arith.constant 0 : index
    %c110_33 = arith.constant 110 : index
    %117 = vector.load %arg7[%c0_32, %c110_33] : memref<4x1024xf32, #tpu.memory_space<vmem>>, vector<4x768xf32>
    %c0_34 = arith.constant 0 : index
    %c111_35 = arith.constant 111 : index
    %118 = vector.load %arg7[%c0_34, %c111_35] : memref<4x1024xf32, #tpu.memory_space<vmem>>, vector<4x768xf32>
    %c0_36 = arith.constant 0 : index
    %c127_37 = arith.constant 127 : index
    %119 = vector.load %arg7[%c0_36, %c127_37] : memref<4x1024xf32, #tpu.memory_space<vmem>>, vector<4x768xf32>
    %c0_38 = arith.constant 0 : index
    %c128_39 = arith.constant 128 : index
    %120 = vector.load %arg7[%c0_38, %c128_39] : memref<4x1024xf32, #tpu.memory_space<vmem>>, vector<4x768xf32>
    %c0_40 = arith.constant 0 : index
    %c129_41 = arith.constant 129 : index
    %121 = vector.load %arg7[%c0_40, %c129_41] : memref<4x1024xf32, #tpu.memory_space<vmem>>, vector<4x768xf32>
    %c0_42 = arith.constant 0 : index
    %c145_43 = arith.constant 145 : index
    %122 = vector.load %arg7[%c0_42, %c145_43] : memref<4x1024xf32, #tpu.memory_space<vmem>>, vector<4x768xf32>
    %c0_44 = arith.constant 0 : index
    %c146_45 = arith.constant 146 : index
    %123 = vector.load %arg7[%c0_44, %c146_45] : memref<4x1024xf32, #tpu.memory_space<vmem>>, vector<4x768xf32>
    %c0_46 = arith.constant 0 : index
    %c147_47 = arith.constant 147 : index
    %124 = vector.load %arg7[%c0_46, %c147_47] : memref<4x1024xf32, #tpu.memory_space<vmem>>, vector<4x768xf32>
    %125 = tpu.concatenate %116, %117, %118, %119, %120, %121, %122, %123, %124, %1 in 0 : vector<4x768xf32>, vector<4x768xf32>, vector<4x768xf32>, vector<4x768xf32>, vector<4x768xf32>, vector<4x768xf32>, vector<4x768xf32>, vector<4x768xf32>, vector<4x768xf32>, vector<4x768xf32> -> vector<40x768xf32>
    %c0_48 = arith.constant 0 : index
    %c0_49 = arith.constant 0 : index
    %126 = vector.load %arg4[%c0_48, %c0_49] : memref<8x40xf32, #tpu.memory_space<vmem>>, vector<8x40xf32>
    %cst_50 = arith.constant dense<0.000000e+00> : vector<8x768xf32>
    %127 = tpu.matmul %126, %125, %cst_50 {dimension_numbers = #tpu.dot_dimension_numbers<[1], [0], [0], [1], [0, 0, 1, 1], [], []>, precision = #tpu.contract_precision<fp32>} : vector<8x40xf32>, vector<40x768xf32>, vector<8x768xf32> -> vector<8x768xf32>
    %128 = tpu.iota {dimensions = array<i32: 1>} : vector<1x64xi32>
    %c0_i32_51 = arith.constant 0 : i32
    %129 = vector.broadcast %c0_i32_51 : i32 to vector<1x64xi32>
    %c8_i32 = arith.constant 8 : i32
    %130 = vector.broadcast %c8_i32 : i32 to vector<1x64xi32>
    %131 = arith.cmpi sge, %128, %130 : vector<1x64xi32>
    %132 = arith.extui %131 : vector<1x64xi1> to vector<1x64xi32>
    %133 = arith.addi %129, %132 : vector<1x64xi32>
    %c16_i32_52 = arith.constant 16 : i32
    %134 = vector.broadcast %c16_i32_52 : i32 to vector<1x64xi32>
    %135 = arith.cmpi sge, %128, %134 : vector<1x64xi32>
    %136 = arith.extui %135 : vector<1x64xi1> to vector<1x64xi32>
    %137 = arith.addi %133, %136 : vector<1x64xi32>
    %c24_i32 = arith.constant 24 : i32
    %138 = vector.broadcast %c24_i32 : i32 to vector<1x64xi32>
    %139 = arith.cmpi sge, %128, %138 : vector<1x64xi32>
    %140 = arith.extui %139 : vector<1x64xi1> to vector<1x64xi32>
    %141 = arith.addi %137, %140 : vector<1x64xi32>
    %c32_i32 = arith.constant 32 : i32
    %142 = vector.broadcast %c32_i32 : i32 to vector<1x64xi32>
    %143 = arith.cmpi sge, %128, %142 : vector<1x64xi32>
    %144 = arith.extui %143 : vector<1x64xi1> to vector<1x64xi32>
    %145 = arith.addi %141, %144 : vector<1x64xi32>
    %c40_i32 = arith.constant 40 : i32
    %146 = vector.broadcast %c40_i32 : i32 to vector<1x64xi32>
    %147 = arith.cmpi sge, %128, %146 : vector<1x64xi32>
    %148 = arith.extui %147 : vector<1x64xi1> to vector<1x64xi32>
    %149 = arith.addi %145, %148 : vector<1x64xi32>
    %c48_i32_53 = arith.constant 48 : i32
    %150 = vector.broadcast %c48_i32_53 : i32 to vector<1x64xi32>
    %151 = arith.cmpi sge, %128, %150 : vector<1x64xi32>
    %152 = arith.extui %151 : vector<1x64xi1> to vector<1x64xi32>
    %153 = arith.addi %149, %152 : vector<1x64xi32>
    %c56_i32 = arith.constant 56 : i32
    %154 = vector.broadcast %c56_i32 : i32 to vector<1x64xi32>
    %155 = arith.cmpi sge, %128, %154 : vector<1x64xi32>
    %156 = arith.extui %155 : vector<1x64xi1> to vector<1x64xi32>
    %157 = arith.addi %153, %156 : vector<1x64xi32>
    %c8_i32_54 = arith.constant 8 : i32
    %158 = vector.broadcast %c8_i32_54 : i32 to vector<1x64xi32>
    %159 = arith.muli %157, %158 : vector<1x64xi32>
    %160 = arith.subi %128, %159 : vector<1x64xi32>
    %c36_i32_55 = arith.constant 36 : i32
    %161 = vector.broadcast %c36_i32_55 : i32 to vector<1x64xi32>
    %162 = arith.muli %157, %161 : vector<1x64xi32>
    %c49_i32 = arith.constant 49 : i32
    %163 = vector.broadcast %c49_i32 : i32 to vector<1x64xi32>
    %164 = arith.addi %163, %162 : vector<1x64xi32>
    %c2_i32 = arith.constant 2 : i32
    %165 = vector.broadcast %c2_i32 : i32 to vector<1x64xi32>
    %166 = arith.muli %165, %160 : vector<1x64xi32>
    %167 = arith.addi %164, %166 : vector<1x64xi32>
    %168 = tpu.iota {dimensions = array<i32: 0>} : vector<384x64xi32>
    %169 = vector.broadcast %167 : vector<1x64xi32> to vector<384x64xi32>
    %170 = arith.subi %168, %169 : vector<384x64xi32>
    %c0_i32_56 = arith.constant 0 : i32
    %171 = vector.broadcast %c0_i32_56 : i32 to vector<384x64xi32>
    %172 = arith.cmpi eq, %170, %171 : vector<384x64xi32>
    %c1_i32_57 = arith.constant 1 : i32
    %173 = vector.broadcast %c1_i32_57 : i32 to vector<384x64xi32>
    %174 = arith.cmpi eq, %170, %173 : vector<384x64xi32>
    %175 = arith.ori %172, %174 : vector<384x64xi1>
    %c18_i32_58 = arith.constant 18 : i32
    %176 = vector.broadcast %c18_i32_58 : i32 to vector<384x64xi32>
    %177 = arith.cmpi eq, %170, %176 : vector<384x64xi32>
    %178 = arith.ori %175, %177 : vector<384x64xi1>
    %c19_i32 = arith.constant 19 : i32
    %179 = vector.broadcast %c19_i32 : i32 to vector<384x64xi32>
    %180 = arith.cmpi eq, %170, %179 : vector<384x64xi32>
    %181 = arith.ori %178, %180 : vector<384x64xi1>
    %cst_59 = arith.constant 2.500000e-01 : f32
    %cst_60 = arith.constant 0.000000e+00 : f32
    %182 = vector.broadcast %cst_59 : f32 to vector<384x64xf32>
    %183 = vector.broadcast %cst_60 : f32 to vector<384x64xf32>
    %184 = arith.select %181, %182, %183 : vector<384x64xi1>, vector<384x64xf32>
    %185 = vector.extract_strided_slice %127 {offsets = [0, 0], sizes = [8, 384], strides = [1, 1]} : vector<8x768xf32> to vector<8x384xf32>
    %cst_61 = arith.constant dense<0.000000e+00> : vector<8x64xf32>
    %186 = tpu.matmul %185, %184, %cst_61 {dimension_numbers = #tpu.dot_dimension_numbers<[1], [0], [0], [1], [0, 0, 1, 1], [], []>, precision = #tpu.contract_precision<fp32>} : vector<8x384xf32>, vector<384x64xf32>, vector<8x64xf32> -> vector<8x64xf32>
    %187 = vector.extract_strided_slice %127 {offsets = [0, 384], sizes = [8, 384], strides = [1, 1]} : vector<8x768xf32> to vector<8x384xf32>
    %cst_62 = arith.constant dense<0.000000e+00> : vector<8x64xf32>
    %188 = tpu.matmul %187, %184, %cst_62 {dimension_numbers = #tpu.dot_dimension_numbers<[1], [0], [0], [1], [0, 0, 1, 1], [], []>, precision = #tpu.contract_precision<fp32>} : vector<8x384xf32>, vector<384x64xf32>, vector<8x64xf32> -> vector<8x64xf32>
    %189 = tpu.concatenate %186, %188 in 1 : vector<8x64xf32>, vector<8x64xf32> -> vector<8x128xf32>
    %c0_63 = arith.constant 0 : index
    %c0_64 = arith.constant 0 : index
    %190 = vector.load %arg5[%c0_63, %c0_64] : memref<8x1xf32, #tpu.memory_space<vmem>>, vector<8x1xf32>
    %191 = vector.broadcast %190 : vector<8x1xf32> to vector<8x128xf32>
    %192 = arith.addf %189, %191 : vector<8x128xf32>
    %c0_65 = arith.constant 0 : index
    %c0_66 = arith.constant 0 : index
    %c0_67 = arith.constant 0 : index
    %193 = vector.load %arg6[%c0_65, %c0_66, %c0_67] : memref<1x8x128xf32, #tpu.memory_space<vmem>>, vector<1x8x128xf32>
    %194 = vector.shape_cast %193 : vector<1x8x128xf32> to vector<8x128xf32>
    %195 = vector.shape_cast %192 : vector<8x128xf32> to vector<1x8x128xf32>
    tpu.vector_store %arg6[%c0_65, %c0_66, %c0_67], %195 {strides = array<i32>} : memref<1x8x128xf32, #tpu.memory_space<vmem>>, vector<1x8x128xf32>,
    return
  }
  func.func @transform_0(%arg0: i32) -> (i32, i32, i32) {
    %c0_i32 = arith.constant 0 : i32
    %c0_i32_0 = arith.constant 0 : i32
    %c0_i32_1 = arith.constant 0 : i32
    return %arg0, %c0_i32, %c0_i32_0 : i32, i32, i32
  }
  func.func @transform_1(%arg0: i32) -> (i32, i32) {
    %c0_i32 = arith.constant 0 : i32
    %c0_i32_0 = arith.constant 0 : i32
    %c0_i32_1 = arith.constant 0 : i32
    return %c0_i32, %c0_i32_0 : i32, i32
  }
  func.func @transform_2(%arg0: i32) -> (i32, i32) {
    %c0_i32 = arith.constant 0 : i32
    %c0_i32_0 = arith.constant 0 : i32
    %c0_i32_1 = arith.constant 0 : i32
    return %c0_i32, %c0_i32_0 : i32, i32
  }
  func.func @transform_3(%arg0: i32) -> (i32, i32) {
    %c0_i32 = arith.constant 0 : i32
    %c0_i32_0 = arith.constant 0 : i32
    %c0_i32_1 = arith.constant 0 : i32
    return %c0_i32, %c0_i32_0 : i32, i32
  }
  func.func @transform_4(%arg0: i32) -> (i32, i32) {
    %c0_i32 = arith.constant 0 : i32
    %c0_i32_0 = arith.constant 0 : i32
    %c0_i32_1 = arith.constant 0 : i32
    return %c0_i32, %c0_i32_0 : i32, i32
  }
  func.func @transform_5(%arg0: i32) -> (i32, i32, i32) {
    %c0_i32 = arith.constant 0 : i32
    %c0_i32_0 = arith.constant 0 : i32
    %c0_i32_1 = arith.constant 0 : i32
    return %arg0, %c0_i32, %c0_i32_0 : i32, i32, i32
  }
}

</mosaic_0001>

<llo_original>
// kernel: tpu_custom_call.1
$region0: #{tpu_custom_call.1}
  #allocation0 [shape = 'u32[]', space=smem, size = 0x4, offset = 0x4, fixed_abs, tag = 'smem constant byte address 0x4 - core index']
  #allocation1 [shape = 'u32[72,128]{1,0:T(1,128)}', space=vmem, size = 0x9000, scoped, tag = 'internal scratch']
  #allocation2 [shape = 'f32[4,1024]{1,0:T(4,128)}', space=vmem, size = 0x4000, scoped, tag = 'scratch operand']
  %s0 = inlined_call_operand.hbm [shape: f32[1,4,768], index: 0, kind: input, shape index: {}]
  %s1 = inlined_call_operand.vmem [shape: f32[4,36], index: 1, kind: input, shape index: {}]
  %s2 = inlined_call_operand.vmem [shape: f32[4,1], index: 2, kind: input, shape index: {}]
  %s3 = inlined_call_operand.vmem [shape: f32[8,40], index: 3, kind: input, shape index: {}]
  %s4 = inlined_call_operand.vmem [shape: f32[8,1], index: 4, kind: input, shape index: {}]
  %s5 = inlined_call_operand.hbm [shape: f32[1,8,128], index: 5, kind: output, shape index: {}]
  %s6 = sld [smem:[#allocation0]]
  $region34: #{tpu_custom_call.1} parent=0
    _
  %s8 = ssub.s32 1, %s6
  %s9 = scalar_select 0, %s8, %s6
  $region1: #{tpu_custom_call.1} parent=0
    #allocation3 [shape = 'u8[12288]{0}', space=vmem, size = 0x3000, scoped, tag = 'input window, operand 0, single buffered']
    #allocation4 [shape = 's32[1]{0}', space=sflag, size = 0x4, scoped, tag = 'scoped memory for tpu_custom_call.1']
    #allocation5 [shape = 's32[1]{0}', space=sflag, size = 0x4, scoped, tag = 'scoped memory for tpu_custom_call.1']
    #allocation6 [shape = 'u8[4096]{0}', space=vmem, size = 0x1000, scoped, tag = 'output window, operand 0, single buffered']
    %10 = vsyncpa [#allocation4], 0
    %11 = vsyncpa [#allocation5], 0
    // Predicated region
    $region2: #{tpu_custom_call.1} parent=1 // pred_check
      _
    $region3: #{tpu_custom_call.1} parent=1 // pred_check_branch
      %13 = sbr.rel (0) target = $region5
    $region4: #{tpu_custom_call.1} parent=1 // pred_region
      %15 = vsyncadd [#allocation4], 0
      %s17 = sshll.u32 %s0, 4
      %s18 = int_to_ptr.hbm [resolvable:$true] %s17
      %s19 = sshll.u32 [#allocation3], 4
      %s20 = int_to_ptr.vmem [resolvable:$true] %s19
      %22 = dma.hbm_to_vmem [thread:$0]  %s18, 384, %s20, [#allocation4]
    $region5: #{tpu_custom_call.1} parent=1 // pred_fallthru
      _
    // Predicated region
    $region6: #{tpu_custom_call.1} parent=1 // pred_check
      _
    $region7: #{tpu_custom_call.1} parent=1 // pred_check_branch
      %24 = sbr.rel (0) target = $region9
    $region8: #{tpu_custom_call.1} parent=1 // pred_region
      _
    $region9: #{tpu_custom_call.1} parent=1 // pred_fallthru
      _
    // Predicated region
    $region10: #{tpu_custom_call.1} parent=1 // pred_check
      _
    $region11: #{tpu_custom_call.1} parent=1 // pred_check_branch
      %26 = sbr.rel (0) target = $region13
    $region12: #{tpu_custom_call.1} parent=1 // pred_region
      _
    $region13: #{tpu_custom_call.1} parent=1 // pred_fallthru
      _
    // Predicated region
    $region14: #{tpu_custom_call.1} parent=1 // pred_check
      _
    $region15: #{tpu_custom_call.1} parent=1 // pred_check_branch
      %28 = sbr.rel (0) target = $region17
    $region16: #{tpu_custom_call.1} parent=1 // pred_region
      _
    $region17: #{tpu_custom_call.1} parent=1 // pred_fallthru
      _
    // Predicated region
    $region18: #{tpu_custom_call.1} parent=1 // pred_check
      _
    $region19: #{tpu_custom_call.1} parent=1 // pred_check_branch
      %30 = sbr.rel (0) target = $region21
    $region20: #{tpu_custom_call.1} parent=1 // pred_region
      _
    $region21: #{tpu_custom_call.1} parent=1 // pred_fallthru
      _
    // Predicated region
    $region22: #{tpu_custom_call.1} parent=1 // pred_check
      _
    $region23: #{tpu_custom_call.1} parent=1 // pred_check_branch
      %32 = sbr.rel (0) target = $region25
    $region24: #{tpu_custom_call.1} parent=1 // pred_region
      %34 = dma.done [#allocation4], 384
    $region25: #{tpu_custom_call.1} parent=1 // pred_fallthru
      _
    %v35 = vld [vmem:[#allocation3] sm:$0xff]
    %v36 = vld [vmem:[#allocation3 + $0x8] sm:$0xff]
    %v37 = vld [vmem:[#allocation3 + $0x10] sm:$0xff]
    %38 = vst [vmem:[#allocation2] sm:$0xf] 0.0
    %39 = vst [vmem:[#allocation2 + $0x1c] sm:$0xf] 0.0
    %v40 = vlaneseq
    %v41 = vand.u32 %v40, 127
    %v42 = vadd.s32 %v41, 128
    %v43 = vadd.s32 %v41, 256
    %v44 = vadd.s32 %v41, 384
    %v45 = vadd.s32 %v41, 512
    %v46 = vadd.s32 %v41, 640
    %vm47 = vcmp.ge.s32.totalorder %v41, 384
    %vm48 = vcmp.ge.s32.totalorder %v42, 384
    %vm49 = vcmp.ge.s32.totalorder %v43, 384
    %vm50 = vcmp.ge.s32.totalorder %v44, 384
    %vm51 = vcmp.ge.s32.totalorder %v45, 384
    %vm52 = vcmp.ge.s32.totalorder %v46, 384
    %v53 = vsel %vm47, 1, 0
    %v54 = vsel %vm48, 1, 0
    %v55 = vsel %vm49, 1, 0
    %v56 = vsel %vm50, 1, 0
    %v57 = vsel %vm51, 1, 0
    %v58 = vsel %vm52, 1, 0
    %v59 = vmul.u32 %v53, 384
    %v60 = vmul.u32 %v54, 384
    %v61 = vmul.u32 %v55, 384
    %v62 = vmul.u32 %v56, 384
    %v63 = vmul.u32 %v57, 384
    %v64 = vmul.u32 %v58, 384
    %v65 = vsub.s32 %v41, %v59
    %v66 = vsub.s32 %v42, %v60
    %v67 = vsub.s32 %v43, %v61
    %v68 = vsub.s32 %v44, %v62
    %v69 = vsub.s32 %v45, %v63
    %v70 = vsub.s32 %v46, %v64
    %v71 = vsub.s32 %v65, 48
    %v72 = vsub.s32 %v66, 48
    %v73 = vsub.s32 %v67, 48
    %v74 = vsub.s32 %v68, 48
    %v75 = vsub.s32 %v69, 48
    %v76 = vsub.s32 %v70, 48
    %vm77 = vcmp.ge.s32.totalorder %v71, 18
    %vm78 = vcmp.ge.s32.totalorder %v72, 18
    %vm79 = vcmp.ge.s32.totalorder %v73, 18
    %vm80 = vcmp.ge.s32.totalorder %v74, 18
    %vm81 = vcmp.ge.s32.totalorder %v75, 18
    %vm82 = vcmp.ge.s32.totalorder %v76, 18
    %v83 = vsel %vm77, 1, 0
    %v84 = vsel %vm78, 1, 0
    %v85 = vsel %vm79, 1, 0
    %v86 = vsel %vm80, 1, 0
    %v87 = vsel %vm81, 1, 0
    %v88 = vsel %vm82, 1, 0
    %vm89 = vcmp.ge.s32.totalorder %v71, 36
    %vm90 = vcmp.ge.s32.totalorder %v72, 36
    %vm91 = vcmp.ge.s32.totalorder %v73, 36
    %vm92 = vcmp.ge.s32.totalorder %v74, 36
    %vm93 = vcmp.ge.s32.totalorder %v75, 36
    %vm94 = vcmp.ge.s32.totalorder %v76, 36
    %v95 = vsel %vm89, 1, 0
    %v96 = vsel %vm90, 1, 0
    %v97 = vsel %vm91, 1, 0
    %v98 = vsel %vm92, 1, 0
    %v99 = vsel %vm93, 1, 0
    %v100 = vsel %vm94, 1, 0
    %v101 = vadd.s32 %v83, %v95
    %v102 = vadd.s32 %v84, %v96
    %v103 = vadd.s32 %v85, %v97
    %v104 = vadd.s32 %v86, %v98
    %v105 = vadd.s32 %v87, %v99
    %v106 = vadd.s32 %v88, %v100
    %vm107 = vcmp.ge.s32.totalorder %v71, 54
    %vm108 = vcmp.ge.s32.totalorder %v72, 54
    %vm109 = vcmp.ge.s32.totalorder %v73, 54
    %vm110 = vcmp.ge.s32.totalorder %v74, 54
    %vm111 = vcmp.ge.s32.totalorder %v75, 54
    %vm112 = vcmp.ge.s32.totalorder %v76, 54
    %v113 = vsel %vm107, 1, 0
    %v114 = vsel %vm108, 1, 0
    %v115 = vsel %vm109, 1, 0
    %v116 = vsel %vm110, 1, 0
    %v117 = vsel %vm111, 1, 0
    %v118 = vsel %vm112, 1, 0
    %v119 = vadd.s32 %v101, %v113
    %v120 = vadd.s32 %v102, %v114
    %v121 = vadd.s32 %v103, %v115
    %v122 = vadd.s32 %v104, %v116
    %v123 = vadd.s32 %v105, %v117
    %v124 = vadd.s32 %v106, %v118
    %vm125 = vcmp.ge.s32.totalorder %v71, 72
    %vm126 = vcmp.ge.s32.totalorder %v72, 72
    %vm127 = vcmp.ge.s32.totalorder %v73, 72
    %vm128 = vcmp.ge.s32.totalorder %v74, 72
    %vm129 = vcmp.ge.s32.totalorder %v75, 72
    %vm130 = vcmp.ge.s32.totalorder %v76, 72
    %v131 = vsel %vm125, 1, 0
    %v132 = vsel %vm126, 1, 0
    %v133 = vsel %vm127, 1, 0
    %v134 = vsel %vm128, 1, 0
    %v135 = vsel %vm129, 1, 0
    %v136 = vsel %vm130, 1, 0
    %v137 = vadd.s32 %v119, %v131
    %v138 = vadd.s32 %v120, %v132
    %v139 = vadd.s32 %v121, %v133
    %v140 = vadd.s32 %v122, %v134
    %v141 = vadd.s32 %v123, %v135
    %v142 = vadd.s32 %v124, %v136
    %vm143 = vcmp.ge.s32.totalorder %v71, 90
    %vm144 = vcmp.ge.s32.totalorder %v72, 90
    %vm145 = vcmp.ge.s32.totalorder %v73, 90
    %vm146 = vcmp.ge.s32.totalorder %v74, 90
    %vm147 = vcmp.ge.s32.totalorder %v75, 90
    %vm148 = vcmp.ge.s32.totalorder %v76, 90
    %v149 = vsel %vm143, 1, 0
    %v150 = vsel %vm144, 1, 0
    %v151 = vsel %vm145, 1, 0
    %v152 = vsel %vm146, 1, 0
    %v153 = vsel %vm147, 1, 0
    %v154 = vsel %vm148, 1, 0
    %v155 = vadd.s32 %v137, %v149
    %v156 = vadd.s32 %v138, %v150
    %v157 = vadd.s32 %v139, %v151
    %v158 = vadd.s32 %v140, %v152
    %v159 = vadd.s32 %v141, %v153
    %v160 = vadd.s32 %v142, %v154
    %vm161 = vcmp.ge.s32.totalorder %v71, 108
    %vm162 = vcmp.ge.s32.totalorder %v72, 108
    %vm163 = vcmp.ge.s32.totalorder %v73, 108
    %vm164 = vcmp.ge.s32.totalorder %v74, 108
    %vm165 = vcmp.ge.s32.totalorder %v75, 108
    %vm166 = vcmp.ge.s32.totalorder %v76, 108
    %v167 = vsel %vm161, 1, 0
    %v168 = vsel %vm162, 1, 0
    %v169 = vsel %vm163, 1, 0
    %v170 = vsel %vm164, 1, 0
    %v171 = vsel %vm165, 1, 0
    %v172 = vsel %vm166, 1, 0
    %v173 = vadd.s32 %v155, %v167
    %v174 = vadd.s32 %v156, %v168
    %v175 = vadd.s32 %v157, %v169
    %v176 = vadd.s32 %v158, %v170
    %v177 = vadd.s32 %v159, %v171
    %v178 = vadd.s32 %v160, %v172
    %vm179 = vcmp.ge.s32.totalorder %v71, 126
    %vm180 = vcmp.ge.s32.totalorder %v72, 126
    %vm181 = vcmp.ge.s32.totalorder %v73, 126
    %vm182 = vcmp.ge.s32.totalorder %v74, 126
    %vm183 = vcmp.ge.s32.totalorder %v75, 126
    %vm184 = vcmp.ge.s32.totalorder %v76, 126
    %v185 = vsel %vm179, 1, 0
    %v186 = vsel %vm180, 1, 0
    %v187 = vsel %vm181, 1, 0
    %v188 = vsel %vm182, 1, 0
    %v189 = vsel %vm183, 1, 0
    %v190 = vsel %vm184, 1, 0
    %v191 = vadd.s32 %v173, %v185
    %v192 = vadd.s32 %v174, %v186
    %v193 = vadd.s32 %v175, %v187
    %v194 = vadd.s32 %v176, %v188
    %v195 = vadd.s32 %v177, %v189
    %v196 = vadd.s32 %v178, %v190
    %vm197 = vcmp.ge.s32.totalorder %v71, 144
    %vm198 = vcmp.ge.s32.totalorder %v72, 144
    %vm199 = vcmp.ge.s32.totalorder %v73, 144
    %vm200 = vcmp.ge.s32.totalorder %v74, 144
    %vm201 = vcmp.ge.s32.totalorder %v75, 144
    %vm202 = vcmp.ge.s32.totalorder %v76, 144
    %v203 = vsel %vm197, 1, 0
    %v204 = vsel %vm198, 1, 0
    %v205 = vsel %vm199, 1, 0
    %v206 = vsel %vm200, 1, 0
    %v207 = vsel %vm201, 1, 0
    %v208 = vsel %vm202, 1, 0
    %v209 = vadd.s32 %v191, %v203
    %v210 = vadd.s32 %v192, %v204
    %v211 = vadd.s32 %v193, %v205
    %v212 = vadd.s32 %v194, %v206
    %v213 = vadd.s32 %v195, %v207
    %v214 = vadd.s32 %v196, %v208
    %vm215 = vcmp.ge.s32.totalorder %v71, 162
    %vm216 = vcmp.ge.s32.totalorder %v72, 162
    %vm217 = vcmp.ge.s32.totalorder %v73, 162
    %vm218 = vcmp.ge.s32.totalorder %v74, 162
    %vm219 = vcmp.ge.s32.totalorder %v75, 162
    %vm220 = vcmp.ge.s32.totalorder %v76, 162
    %v221 = vsel %vm215, 1, 0
    %v222 = vsel %vm216, 1, 0
    %v223 = vsel %vm217, 1, 0
    %v224 = vsel %vm218, 1, 0
    %v225 = vsel %vm219, 1, 0
    %v226 = vsel %vm220, 1, 0
    %v227 = vadd.s32 %v209, %v221
    %v228 = vadd.s32 %v210, %v222
    %v229 = vadd.s32 %v211, %v223
    %v230 = vadd.s32 %v212, %v224
    %v231 = vadd.s32 %v213, %v225
    %v232 = vadd.s32 %v214, %v226
    %vm233 = vcmp.ge.s32.totalorder %v71, 180
    %vm234 = vcmp.ge.s32.totalorder %v72, 180
    %vm235 = vcmp.ge.s32.totalorder %v73, 180
    %vm236 = vcmp.ge.s32.totalorder %v74, 180
    %vm237 = vcmp.ge.s32.totalorder %v75, 180
    %vm238 = vcmp.ge.s32.totalorder %v76, 180
    %v239 = vsel %vm233, 1, 0
    %v240 = vsel %vm234, 1, 0
    %v241 = vsel %vm235, 1, 0
    %v242 = vsel %vm236, 1, 0
    %v243 = vsel %vm237, 1, 0
    %v244 = vsel %vm238, 1, 0
    %v245 = vadd.s32 %v227, %v239
    %v246 = vadd.s32 %v228, %v240
    %v247 = vadd.s32 %v229, %v241
    %v248 = vadd.s32 %v230, %v242
    %v249 = vadd.s32 %v231, %v243
    %v250 = vadd.s32 %v232, %v244
    %vm251 = vcmp.ge.s32.totalorder %v71, 198
    %vm252 = vcmp.ge.s32.totalorder %v72, 198
    %vm253 = vcmp.ge.s32.totalorder %v73, 198
    %vm254 = vcmp.ge.s32.totalorder %v74, 198
    %vm255 = vcmp.ge.s32.totalorder %v75, 198
    %vm256 = vcmp.ge.s32.totalorder %v76, 198
    %v257 = vsel %vm251, 1, 0
    %v258 = vsel %vm252, 1, 0
    %v259 = vsel %vm253, 1, 0
    %v260 = vsel %vm254, 1, 0
    %v261 = vsel %vm255, 1, 0
    %v262 = vsel %vm256, 1, 0
    %v263 = vadd.s32 %v245, %v257
    %v264 = vadd.s32 %v246, %v258
    %v265 = vadd.s32 %v247, %v259
    %v266 = vadd.s32 %v248, %v260
    %v267 = vadd.s32 %v249, %v261
    %v268 = vadd.s32 %v250, %v262
    %vm269 = vcmp.ge.s32.totalorder %v71, 216
    %vm270 = vcmp.ge.s32.totalorder %v72, 216
    %vm271 = vcmp.ge.s32.totalorder %v73, 216
    %vm272 = vcmp.ge.s32.totalorder %v74, 216
    %vm273 = vcmp.ge.s32.totalorder %v75, 216
    %vm274 = vcmp.ge.s32.totalorder %v76, 216
    %v275 = vsel %vm269, 1, 0
    %v276 = vsel %vm270, 1, 0
    %v277 = vsel %vm271, 1, 0
    %v278 = vsel %vm272, 1, 0
    %v279 = vsel %vm273, 1, 0
    %v280 = vsel %vm274, 1, 0
    %v281 = vadd.s32 %v263, %v275
    %v282 = vadd.s32 %v264, %v276
    %v283 = vadd.s32 %v265, %v277
    %v284 = vadd.s32 %v266, %v278
    %v285 = vadd.s32 %v267, %v279
    %v286 = vadd.s32 %v268, %v280
    %vm287 = vcmp.ge.s32.totalorder %v71, 234
    %vm288 = vcmp.ge.s32.totalorder %v72, 234
    %vm289 = vcmp.ge.s32.totalorder %v73, 234
    %vm290 = vcmp.ge.s32.totalorder %v74, 234
    %vm291 = vcmp.ge.s32.totalorder %v75, 234
    %vm292 = vcmp.ge.s32.totalorder %v76, 234
    %v293 = vsel %vm287, 1, 0
    %v294 = vsel %vm288, 1, 0
    %v295 = vsel %vm289, 1, 0
    %v296 = vsel %vm290, 1, 0
    %v297 = vsel %vm291, 1, 0
    %v298 = vsel %vm292, 1, 0
    %v299 = vadd.s32 %v281, %v293
    %v300 = vadd.s32 %v282, %v294
    %v301 = vadd.s32 %v283, %v295
    %v302 = vadd.s32 %v284, %v296
    %v303 = vadd.s32 %v285, %v297
    %v304 = vadd.s32 %v286, %v298
    %vm305 = vcmp.ge.s32.totalorder %v71, 252
    %vm306 = vcmp.ge.s32.totalorder %v72, 252
    %vm307 = vcmp.ge.s32.totalorder %v73, 252
    %vm308 = vcmp.ge.s32.totalorder %v74, 252
    %vm309 = vcmp.ge.s32.totalorder %v75, 252
    %vm310 = vcmp.ge.s32.totalorder %v76, 252
    %v311 = vsel %vm305, 1, 0
    %v312 = vsel %vm306, 1, 0
    %v313 = vsel %vm307, 1, 0
    %v314 = vsel %vm308, 1, 0
    %v315 = vsel %vm309, 1, 0
    %v316 = vsel %vm310, 1, 0
    %v317 = vadd.s32 %v299, %v311
    %v318 = vadd.s32 %v300, %v312
    %v319 = vadd.s32 %v301, %v313
    %v320 = vadd.s32 %v302, %v314
    %v321 = vadd.s32 %v303, %v315
    %v322 = vadd.s32 %v304, %v316
    %vm323 = vcmp.ge.s32.totalorder %v71, 270
    %vm324 = vcmp.ge.s32.totalorder %v72, 270
    %vm325 = vcmp.ge.s32.totalorder %v73, 270
    %vm326 = vcmp.ge.s32.totalorder %v74, 270
    %vm327 = vcmp.ge.s32.totalorder %v75, 270
    %vm328 = vcmp.ge.s32.totalorder %v76, 270
    %v329 = vsel %vm323, 1, 0
    %v330 = vsel %vm324, 1, 0
    %v331 = vsel %vm325, 1, 0
    %v332 = vsel %vm326, 1, 0
    %v333 = vsel %vm327, 1, 0
    %v334 = vsel %vm328, 1, 0
    %v335 = vadd.s32 %v317, %v329
    %v336 = vadd.s32 %v318, %v330
    %v337 = vadd.s32 %v319, %v331
    %v338 = vadd.s32 %v320, %v332
    %v339 = vadd.s32 %v321, %v333
    %v340 = vadd.s32 %v322, %v334
    %v341 = vmul.u32 %v335, 18
    %v342 = vmul.u32 %v336, 18
    %v343 = vmul.u32 %v337, 18
    %v344 = vmul.u32 %v338, 18
    %v345 = vmul.u32 %v339, 18
    %v346 = vmul.u32 %v340, 18
    %v347 = vsub.s32 %v71, %v341
    %v348 = vsub.s32 %v72, %v342
    %v349 = vsub.s32 %v73, %v343
    %v350 = vsub.s32 %v74, %v344
    %v351 = vsub.s32 %v75, %v345
    %v352 = vsub.s32 %v76, %v346
    %vm353 = vcmp.ge.s32.totalorder %v71, 0
    %vm354 = vcmp.ge.s32.totalorder %v72, 0
    %vm355 = vcmp.ge.s32.totalorder %v73, 0
    %vm356 = vcmp.ge.s32.totalorder %v74, 0
    %vm357 = vcmp.ge.s32.totalorder %v75, 0
    %vm358 = vcmp.ge.s32.totalorder %v76, 0
    %vm359 = vcmp.lt.s32.totalorder %v71, 288
    %vm360 = vcmp.lt.s32.totalorder %v72, 288
    %vm361 = vcmp.lt.s32.totalorder %v73, 288
    %vm362 = vcmp.lt.s32.totalorder %v74, 288
    %vm363 = vcmp.lt.s32.totalorder %v75, 288
    %vm364 = vcmp.lt.s32.totalorder %v76, 288
    %vm365 = vmand %vm353, %vm359
    %vm366 = vmand %vm354, %vm360
    %vm367 = vmand %vm355, %vm361
    %vm368 = vmand %vm356, %vm362
    %vm369 = vmand %vm357, %vm363
    %vm370 = vmand %vm358, %vm364
    %vm371 = vcmp.ge.s32.totalorder %v347, 1
    %vm372 = vcmp.ge.s32.totalorder %v348, 1
    %vm373 = vcmp.ge.s32.totalorder %v349, 1
    %vm374 = vcmp.ge.s32.totalorder %v350, 1
    %vm375 = vcmp.ge.s32.totalorder %v351, 1
    %vm376 = vcmp.ge.s32.totalorder %v352, 1
    %vm377 = vmand %vm365, %vm371
    %vm378 = vmand %vm366, %vm372
    %vm379 = vmand %vm367, %vm373
    %vm380 = vmand %vm368, %vm374
    %vm381 = vmand %vm369, %vm375
    %vm382 = vmand %vm370, %vm376
    %vm383 = vcmp.le.s32.totalorder %v347, 16
    %vm384 = vcmp.le.s32.totalorder %v348, 16
    %vm385 = vcmp.le.s32.totalorder %v349, 16
    %vm386 = vcmp.le.s32.totalorder %v350, 16
    %vm387 = vcmp.le.s32.totalorder %v351, 16
    %vm388 = vcmp.le.s32.totalorder %v352, 16
    %vm389 = vmand %vm377, %vm383
    %vm390 = vmand %vm378, %vm384
    %vm391 = vmand %vm379, %vm385
    %vm392 = vmand %vm380, %vm386
    %vm393 = vmand %vm381, %vm387
    %vm394 = vmand %vm382, %vm388
    %v395 = vmax.f32 %v35, 0.0
    %v396 = vmax.f32 %v36, 0.0
    %v397 = vmax.f32 %v37, 0.0
    %398 = vst [vmem:[#allocation2 + $0x4] sm:$0xff] %v395
    %399 = vst [vmem:[#allocation2 + $0xc] sm:$0xff] %v396
    %400 = vst [vmem:[#allocation2 + $0x14] sm:$0xff] %v397
    %v401 = vld [vmem:[#allocation2] sm:$0xff]
    %v402 = vld [vmem:[#allocation2 + $0x8] sm:$0xff]
    %v403 = vld [vmem:[#allocation2 + $0x10] sm:$0xff]
    %v404 = vld [vmem:[#allocation2 + $0x18] sm:$0xf]
    %v405 = vld [vmem:[#allocation2 + $0x4] sm:$0xff]
    %v406 = vld [vmem:[#allocation2 + $0xc] sm:$0xff]
    %v407 = vld [vmem:[#allocation2 + $0x14] sm:$0xff]
    %v408 = vld [vmem:[#allocation2 + $0x4] sm:$0xff]
    %v409 = vld [vmem:[#allocation2 + $0xc] sm:$0xff]
    %v410 = vld [vmem:[#allocation2 + $0x14] sm:$0xff]
    %v411 = vld [vmem:[#allocation2 + $0x1c] sm:$0xf]
    %416 = vst [vmem:[#allocation1] ss:$2 sm:$0xff] %v401
    %s417 = scalar_lea.vmem [#allocation1], 16
    %418 = vst [vmem:[%s417] ss:$2 sm:$0xff] %v402
    %s419 = scalar_lea.vmem [#allocation1], 32
    %420 = vst [vmem:[%s419] ss:$2 sm:$0xff] %v403
    %s421 = scalar_lea.vmem [#allocation1], 48
    %422 = vst [vmem:[%s421] ss:$2 sm:$0xff] %v404
    %v423 = vld.sshfl [vmem:[#allocation1] sm:$0xff pattern:$0x75316420]
    %v424 = vld.sshfl [vmem:[#allocation1 + $0x8] sm:$0xff pattern:$0x75316420]
    %v425 = vld.sshfl [vmem:[#allocation1 + $0x10] sm:$0xff pattern:$0x75316420]
    %v426 = vld.sshfl [vmem:[#allocation1 + $0x18] sm:$0xff pattern:$0x75316420]
    %v427 = vld.sshfl [vmem:[#allocation1 + $0x20] sm:$0xff pattern:$0x75316420]
    %v428 = vld.sshfl [vmem:[#allocation1 + $0x28] sm:$0xff pattern:$0x75316420]
    %v429 = vld.sshfl [vmem:[#allocation1 + $0x30] sm:$0xff pattern:$0x75316420]
    %s437 = scalar_lea.vmem [#allocation1], 1
    %438 = vst [vmem:[%s437] ss:$2 sm:$0xff] %v401
    %s439 = scalar_lea.vmem [#allocation1], 17
    %440 = vst [vmem:[%s439] ss:$2 sm:$0xff] %v402
    %s441 = scalar_lea.vmem [#allocation1], 33
    %442 = vst [vmem:[%s441] ss:$2 sm:$0xff] %v403
    %s443 = scalar_lea.vmem [#allocation1], 49
    %444 = vst [vmem:[%s443] ss:$2 sm:$0xff] %v404
    %v445 = vld.sshfl [vmem:[#allocation1] sm:$0xff pattern:$0x75316420]
    %v446 = vld.sshfl [vmem:[#allocation1 + $0x8] sm:$0xff pattern:$0x75316420]
    %v447 = vld.sshfl [vmem:[#allocation1 + $0x10] sm:$0xff pattern:$0x75316420]
    %v448 = vld.sshfl [vmem:[#allocation1 + $0x18] sm:$0xff pattern:$0x75316420]
    %v449 = vld.sshfl [vmem:[#allocation1 + $0x20] sm:$0xff pattern:$0x75316420]
    %v450 = vld.sshfl [vmem:[#allocation1 + $0x28] sm:$0xff pattern:$0x75316420]
    %v451 = vld.sshfl [vmem:[#allocation1 + $0x30] sm:$0xff pattern:$0x75316420]
    %452 = vrot.lane.b32.xlu0 %v445, 127
    %v453 = vpop.permute.xlu0 %452
    %454 = vrot.lane.b32.xlu0 %v446, 127
    %v455 = vpop.permute.xlu0 %454
    %456 = vrot.lane.b32.xlu0 %v447, 127
    %v457 = vpop.permute.xlu0 %456
    %458 = vrot.lane.b32.xlu0 %v448, 127
    %v459 = vpop.permute.xlu0 %458
    %460 = vrot.lane.b32.xlu0 %v449, 127
    %v461 = vpop.permute.xlu0 %460
    %462 = vrot.lane.b32.xlu0 %v450, 127
    %v463 = vpop.permute.xlu0 %462
    %464 = vrot.lane.b32.xlu0 %v451, 127
    %v465 = vpop.permute.xlu0 %464
    %vm466 = vcmask 1039360
    %v467 = vsel %vm466, %v453, %v455
    %v468 = vsel %vm466, %v455, %v457
    %v469 = vsel %vm466, %v457, %v459
    %v470 = vsel %vm466, %v459, %v461
    %v471 = vsel %vm466, %v461, %v463
    %v472 = vsel %vm466, %v463, %v465
    %480 = vst [vmem:[#allocation1] ss:$2 sm:$0xff] %v401
    %s481 = scalar_lea.vmem [#allocation1], 16
    %482 = vst [vmem:[%s481] ss:$2 sm:$0xff] %v402
    %s483 = scalar_lea.vmem [#allocation1], 32
    %484 = vst [vmem:[%s483] ss:$2 sm:$0xff] %v403
    %s485 = scalar_lea.vmem [#allocation1], 48
    %486 = vst [vmem:[%s485] ss:$2 sm:$0xff] %v404
    %v487 = vld.sshfl [vmem:[#allocation1] sm:$0xff pattern:$0x75316420]
    %v488 = vld.sshfl [vmem:[#allocation1 + $0x8] sm:$0xff pattern:$0x75316420]
    %v489 = vld.sshfl [vmem:[#allocation1 + $0x10] sm:$0xff pattern:$0x75316420]
    %v490 = vld.sshfl [vmem:[#allocation1 + $0x18] sm:$0xff pattern:$0x75316420]
    %v491 = vld.sshfl [vmem:[#allocation1 + $0x20] sm:$0xff pattern:$0x75316420]
    %v492 = vld.sshfl [vmem:[#allocation1 + $0x28] sm:$0xff pattern:$0x75316420]
    %v493 = vld.sshfl [vmem:[#allocation1 + $0x30] sm:$0xff pattern:$0x75316420]
    %494 = vrot.lane.b32.xlu0 %v487, 126
    %v495 = vpop.permute.xlu0 %494
    %496 = vrot.lane.b32.xlu0 %v488, 126
    %v497 = vpop.permute.xlu0 %496
    %498 = vrot.lane.b32.xlu0 %v489, 126
    %v499 = vpop.permute.xlu0 %498
    %500 = vrot.lane.b32.xlu0 %v490, 126
    %v501 = vpop.permute.xlu0 %500
    %502 = vrot.lane.b32.xlu0 %v491, 126
    %v503 = vpop.permute.xlu0 %502
    %504 = vrot.lane.b32.xlu0 %v492, 126
    %v505 = vpop.permute.xlu0 %504
    %506 = vrot.lane.b32.xlu0 %v493, 126
    %v507 = vpop.permute.xlu0 %506
    %vm508 = vcmask 1031168
    %v509 = vsel %vm508, %v495, %v497
    %v510 = vsel %vm508, %v497, %v499
    %v511 = vsel %vm508, %v499, %v501
    %v512 = vsel %vm508, %v501, %v503
    %v513 = vsel %vm508, %v503, %v505
    %v514 = vsel %vm508, %v505, %v507
    %s522 = scalar_lea.vmem [#allocation1], 1
    %523 = vst [vmem:[%s522] ss:$2 sm:$0xff] %v401
    %s524 = scalar_lea.vmem [#allocation1], 17
    %525 = vst [vmem:[%s524] ss:$2 sm:$0xff] %v402
    %s526 = scalar_lea.vmem [#allocation1], 33
    %527 = vst [vmem:[%s526] ss:$2 sm:$0xff] %v403
    %s528 = scalar_lea.vmem [#allocation1], 49
    %529 = vst [vmem:[%s528] ss:$2 sm:$0xff] %v404
    %v530 = vld.sshfl [vmem:[#allocation1] sm:$0xff pattern:$0x75316420]
    %v531 = vld.sshfl [vmem:[#allocation1 + $0x8] sm:$0xff pattern:$0x75316420]
    %v532 = vld.sshfl [vmem:[#allocation1 + $0x10] sm:$0xff pattern:$0x75316420]
    %v533 = vld.sshfl [vmem:[#allocation1 + $0x18] sm:$0xff pattern:$0x75316420]
    %v534 = vld.sshfl [vmem:[#allocation1 + $0x20] sm:$0xff pattern:$0x75316420]
    %v535 = vld.sshfl [vmem:[#allocation1 + $0x28] sm:$0xff pattern:$0x75316420]
    %v536 = vld.sshfl [vmem:[#allocation1 + $0x30] sm:$0xff pattern:$0x75316420]
    %537 = vrot.lane.b32.xlu0 %v530, 110
    %v538 = vpop.permute.xlu0 %537
    %539 = vrot.lane.b32.xlu0 %v531, 110
    %v540 = vpop.permute.xlu0 %539
    %541 = vrot.lane.b32.xlu0 %v532, 110
    %v542 = vpop.permute.xlu0 %541
    %543 = vrot.lane.b32.xlu0 %v533, 110
    %v544 = vpop.permute.xlu0 %543
    %545 = vrot.lane.b32.xlu0 %v534, 110
    %v546 = vpop.permute.xlu0 %545
    %547 = vrot.lane.b32.xlu0 %v535, 110
    %v548 = vpop.permute.xlu0 %547
    %549 = vrot.lane.b32.xlu0 %v536, 110
    %v550 = vpop.permute.xlu0 %549
    %vm551 = vcmask 900096
    %v552 = vsel %vm551, %v538, %v540
    %v553 = vsel %vm551, %v540, %v542
    %v554 = vsel %vm551, %v542, %v544
    %v555 = vsel %vm551, %v544, %v546
    %v556 = vsel %vm551, %v546, %v548
    %v557 = vsel %vm551, %v548, %v550
    %568 = vst [vmem:[#allocation1] ss:$2 sm:$0xff] %v405
    %s569 = scalar_lea.vmem [#allocation1], 16
    %570 = vst [vmem:[%s569] ss:$2 sm:$0xff] %v406
    %s571 = scalar_lea.vmem [#allocation1], 32
    %572 = vst [vmem:[%s571] ss:$2 sm:$0xff] %v407
    %v573 = vld.sshfl [vmem:[#allocation1] sm:$0xff pattern:$0x75316420]
    %v574 = vld.sshfl [vmem:[#allocation1 + $0x8] sm:$0xff pattern:$0x75316420]
    %v575 = vld.sshfl [vmem:[#allocation1 + $0x10] sm:$0xff pattern:$0x75316420]
    %v576 = vld.sshfl [vmem:[#allocation1 + $0x18] sm:$0xff pattern:$0x75316420]
    %v577 = vld.sshfl [vmem:[#allocation1 + $0x20] sm:$0xff pattern:$0x75316420]
    %v578 = vld.sshfl [vmem:[#allocation1 + $0x28] sm:$0xff pattern:$0x75316420]
    %579 = vrot.lane.b32.xlu0 %v573, 109
    %v580 = vpop.permute.xlu0 %579
    %581 = vrot.lane.b32.xlu0 %v574, 109
    %v582 = vpop.permute.xlu0 %581
    %583 = vrot.lane.b32.xlu0 %v575, 109
    %v584 = vpop.permute.xlu0 %583
    %585 = vrot.lane.b32.xlu0 %v576, 109
    %v586 = vpop.permute.xlu0 %585
    %587 = vrot.lane.b32.xlu0 %v577, 109
    %v588 = vpop.permute.xlu0 %587
    %589 = vrot.lane.b32.xlu0 %v578, 109
    %v590 = vpop.permute.xlu0 %589
    %vm591 = vcmask 891904
    %v592 = vsel %vm591, %v580, %v582
    %v593 = vsel %vm591, %v582, %v584
    %v594 = vsel %vm591, %v584, %v586
    %v595 = vsel %vm591, %v586, %v588
    %v596 = vsel %vm591, %v588, %v590
    %s608 = scalar_lea.vmem [#allocation1], 1
    %609 = vst [vmem:[%s608] ss:$2 sm:$0xff] %v408
    %s610 = scalar_lea.vmem [#allocation1], 17
    %611 = vst [vmem:[%s610] ss:$2 sm:$0xff] %v409
    %s612 = scalar_lea.vmem [#allocation1], 33
    %613 = vst [vmem:[%s612] ss:$2 sm:$0xff] %v410
    %s614 = scalar_lea.vmem [#allocation1], 49
    %615 = vst [vmem:[%s614] ss:$2 sm:$0xff] %v411
    %v616 = vld.sshfl [vmem:[#allocation1] sm:$0xff pattern:$0x75316420]
    %v617 = vld.sshfl [vmem:[#allocation1 + $0x8] sm:$0xff pattern:$0x75316420]
    %v618 = vld.sshfl [vmem:[#allocation1 + $0x10] sm:$0xff pattern:$0x75316420]
    %v619 = vld.sshfl [vmem:[#allocation1 + $0x18] sm:$0xff pattern:$0x75316420]
    %v620 = vld.sshfl [vmem:[#allocation1 + $0x20] sm:$0xff pattern:$0x75316420]
    %v621 = vld.sshfl [vmem:[#allocation1 + $0x28] sm:$0xff pattern:$0x75316420]
    %v622 = vld.sshfl [vmem:[#allocation1 + $0x30] sm:$0xff pattern:$0x75316420]
    %623 = vrot.lane.b32.xlu0 %v616, 108
    %v624 = vpop.permute.xlu0 %623
    %625 = vrot.lane.b32.xlu0 %v617, 108
    %v626 = vpop.permute.xlu0 %625
    %627 = vrot.lane.b32.xlu0 %v618, 108
    %v628 = vpop.permute.xlu0 %627
    %629 = vrot.lane.b32.xlu0 %v619, 108
    %v630 = vpop.permute.xlu0 %629
    %631 = vrot.lane.b32.xlu0 %v620, 108
    %v632 = vpop.permute.xlu0 %631
    %633 = vrot.lane.b32.xlu0 %v621, 108
    %v634 = vpop.permute.xlu0 %633
    %635 = vrot.lane.b32.xlu0 %v622, 108
    %v636 = vpop.permute.xlu0 %635
    %vm637 = vcmask 883712
    %v638 = vsel %vm637, %v624, %v626
    %v639 = vsel %vm637, %v626, %v628
    %v640 = vsel %vm637, %v628, %v630
    %v641 = vsel %vm637, %v630, %v632
    %v642 = vsel %vm637, %v632, %v634
    %v643 = vsel %vm637, %v634, %v636
    %651 = vst [vmem:[#allocation1] ss:$2 sm:$0xff] %v408
    %s652 = scalar_lea.vmem [#allocation1], 16
    %653 = vst [vmem:[%s652] ss:$2 sm:$0xff] %v409
    %s654 = scalar_lea.vmem [#allocation1], 32
    %655 = vst [vmem:[%s654] ss:$2 sm:$0xff] %v410
    %s656 = scalar_lea.vmem [#allocation1], 48
    %657 = vst [vmem:[%s656] ss:$2 sm:$0xff] %v411
    %v658 = vld.sshfl [vmem:[#allocation1] sm:$0xff pattern:$0x75316420]
    %v659 = vld.sshfl [vmem:[#allocation1 + $0x8] sm:$0xff pattern:$0x75316420]
    %v660 = vld.sshfl [vmem:[#allocation1 + $0x10] sm:$0xff pattern:$0x75316420]
    %v661 = vld.sshfl [vmem:[#allocation1 + $0x18] sm:$0xff pattern:$0x75316420]
    %v662 = vld.sshfl [vmem:[#allocation1 + $0x20] sm:$0xff pattern:$0x75316420]
    %v663 = vld.sshfl [vmem:[#allocation1 + $0x28] sm:$0xff pattern:$0x75316420]
    %v664 = vld.sshfl [vmem:[#allocation1 + $0x30] sm:$0xff pattern:$0x75316420]
    %665 = vrot.lane.b32.xlu0 %v658, 92
    %v666 = vpop.permute.xlu0 %665
    %667 = vrot.lane.b32.xlu0 %v659, 92
    %v668 = vpop.permute.xlu0 %667
    %669 = vrot.lane.b32.xlu0 %v660, 92
    %v670 = vpop.permute.xlu0 %669
    %671 = vrot.lane.b32.xlu0 %v661, 92
    %v672 = vpop.permute.xlu0 %671
    %673 = vrot.lane.b32.xlu0 %v662, 92
    %v674 = vpop.permute.xlu0 %673
    %675 = vrot.lane.b32.xlu0 %v663, 92
    %v676 = vpop.permute.xlu0 %675
    %677 = vrot.lane.b32.xlu0 %v664, 92
    %v678 = vpop.permute.xlu0 %677
    %vm679 = vcmask 752640
    %v680 = vsel %vm679, %v666, %v668
    %v681 = vsel %vm679, %v668, %v670
    %v682 = vsel %vm679, %v670, %v672
    %v683 = vsel %vm679, %v672, %v674
    %v684 = vsel %vm679, %v674, %v676
    %v685 = vsel %vm679, %v676, %v678
    %s693 = scalar_lea.vmem [#allocation1], 1
    %694 = vst [vmem:[%s693] ss:$2 sm:$0xff] %v408
    %s695 = scalar_lea.vmem [#allocation1], 17
    %696 = vst [vmem:[%s695] ss:$2 sm:$0xff] %v409
    %s697 = scalar_lea.vmem [#allocation1], 33
    %698 = vst [vmem:[%s697] ss:$2 sm:$0xff] %v410
    %s699 = scalar_lea.vmem [#allocation1], 49
    %700 = vst [vmem:[%s699] ss:$2 sm:$0xff] %v411
    %v701 = vld.sshfl [vmem:[#allocation1] sm:$0xff pattern:$0x75316420]
    %v702 = vld.sshfl [vmem:[#allocation1 + $0x8] sm:$0xff pattern:$0x75316420]
    %v703 = vld.sshfl [vmem:[#allocation1 + $0x10] sm:$0xff pattern:$0x75316420]
    %v704 = vld.sshfl [vmem:[#allocation1 + $0x18] sm:$0xff pattern:$0x75316420]
    %v705 = vld.sshfl [vmem:[#allocation1 + $0x20] sm:$0xff pattern:$0x75316420]
    %v706 = vld.sshfl [vmem:[#allocation1 + $0x28] sm:$0xff pattern:$0x75316420]
    %v707 = vld.sshfl [vmem:[#allocation1 + $0x30] sm:$0xff pattern:$0x75316420]
    %708 = vrot.lane.b32.xlu0 %v701, 91
    %v709 = vpop.permute.xlu0 %708
    %710 = vrot.lane.b32.xlu0 %v702, 91
    %v711 = vpop.permute.xlu0 %710
    %712 = vrot.lane.b32.xlu0 %v703, 91
    %v713 = vpop.permute.xlu0 %712
    %714 = vrot.lane.b32.xlu0 %v704, 91
    %v715 = vpop.permute.xlu0 %714
    %716 = vrot.lane.b32.xlu0 %v705, 91
    %v717 = vpop.permute.xlu0 %716
    %718 = vrot.lane.b32.xlu0 %v706, 91
    %v719 = vpop.permute.xlu0 %718
    %720 = vrot.lane.b32.xlu0 %v707, 91
    %v721 = vpop.permute.xlu0 %720
    %vm722 = vcmask 744448
    %v723 = vsel %vm722, %v709, %v711
    %v724 = vsel %vm722, %v711, %v713
    %v725 = vsel %vm722, %v713, %v715
    %v726 = vsel %vm722, %v715, %v717
    %v727 = vsel %vm722, %v717, %v719
    %v728 = vsel %vm722, %v719, %v721
    %736 = vst [vmem:[#allocation1] ss:$2 sm:$0xff] %v408
    %s737 = scalar_lea.vmem [#allocation1], 16
    %738 = vst [vmem:[%s737] ss:$2 sm:$0xff] %v409
    %s739 = scalar_lea.vmem [#allocation1], 32
    %740 = vst [vmem:[%s739] ss:$2 sm:$0xff] %v410
    %s741 = scalar_lea.vmem [#allocation1], 48
    %742 = vst [vmem:[%s741] ss:$2 sm:$0xff] %v411
    %v743 = vld.sshfl [vmem:[#allocation1] sm:$0xff pattern:$0x75316420]
    %v744 = vld.sshfl [vmem:[#allocation1 + $0x8] sm:$0xff pattern:$0x75316420]
    %v745 = vld.sshfl [vmem:[#allocation1 + $0x10] sm:$0xff pattern:$0x75316420]
    %v746 = vld.sshfl [vmem:[#allocation1 + $0x18] sm:$0xff pattern:$0x75316420]
    %v747 = vld.sshfl [vmem:[#allocation1 + $0x20] sm:$0xff pattern:$0x75316420]
    %v748 = vld.sshfl [vmem:[#allocation1 + $0x28] sm:$0xff pattern:$0x75316420]
    %v749 = vld.sshfl [vmem:[#allocation1 + $0x30] sm:$0xff pattern:$0x75316420]
    %750 = vrot.lane.b32.xlu0 %v743, 90
    %v751 = vpop.permute.xlu0 %750
    %752 = vrot.lane.b32.xlu0 %v744, 90
    %v753 = vpop.permute.xlu0 %752
    %754 = vrot.lane.b32.xlu0 %v745, 90
    %v755 = vpop.permute.xlu0 %754
    %756 = vrot.lane.b32.xlu0 %v746, 90
    %v757 = vpop.permute.xlu0 %756
    %758 = vrot.lane.b32.xlu0 %v747, 90
    %v759 = vpop.permute.xlu0 %758
    %760 = vrot.lane.b32.xlu0 %v748, 90
    %v761 = vpop.permute.xlu0 %760
    %762 = vrot.lane.b32.xlu0 %v749, 90
    %v763 = vpop.permute.xlu0 %762
    %vm764 = vcmask 736256
    %v765 = vsel %vm764, %v751, %v753
    %v766 = vsel %vm764, %v753, %v755
    %v767 = vsel %vm764, %v755, %v757
    %v768 = vsel %vm764, %v757, %v759
    %v769 = vsel %vm764, %v759, %v761
    %v770 = vsel %vm764, %v761, %v763
    %vm771 = vcmask 1043456
    %v772 = vsel %vm771, %v423, %v467
    %v773 = vsel %vm771, %v424, %v468
    %v774 = vsel %vm771, %v425, %v469
    %v775 = vsel %vm771, %v426, %v470
    %v776 = vsel %vm771, %v427, %v471
    %v777 = vsel %vm771, %v428, %v472
    %v778 = vsel %vm771, %v429, %v465
    %v779 = vsel %vm771, %v509, %v552
    %v780 = vsel %vm771, %v510, %v553
    %v781 = vsel %vm771, %v511, %v554
    %v782 = vsel %vm771, %v512, %v555
    %v783 = vsel %vm771, %v513, %v556
    %v784 = vsel %vm771, %v514, %v557
    %v785 = vsel %vm771, %v507, %v550
    %v786 = vsel %vm771, %v580, %v624
    %v787 = vsel %vm771, %v592, %v638
    %v788 = vsel %vm771, %v593, %v639
    %v789 = vsel %vm771, %v594, %v640
    %v790 = vsel %vm771, %v595, %v641
    %v791 = vsel %vm771, %v596, %v642
    %v792 = vsel %vm771, %v590, %v643
    %v793 = vsel %vm771, %v666, %v709
    %v794 = vsel %vm771, %v680, %v723
    %v795 = vsel %vm771, %v681, %v724
    %v796 = vsel %vm771, %v682, %v725
    %v797 = vsel %vm771, %v683, %v726
    %v798 = vsel %vm771, %v684, %v727
    %v799 = vsel %vm771, %v685, %v728
    %v800 = vld [vmem:[%s1] sm:$0xf]
    %v801 = vld [vmem:[%s2] sm:$0xf]
    %803 = vset.pattern.permute.xlu0 0
    %804 = vperm.xlu0 %803, %v801
    %v805 = vpop.permute.xlu0 %804
    %835 = vrot.lane.b32.xlu0 %v772, 19
    %v836 = vpop.permute.xlu0 %835
    %837 = vrot.lane.b32.xlu0 %v773, 19
    %v838 = vpop.permute.xlu0 %837
    %839 = vrot.lane.b32.xlu0 %v774, 19
    %v840 = vpop.permute.xlu0 %839
    %841 = vrot.lane.b32.xlu0 %v775, 19
    %v842 = vpop.permute.xlu0 %841
    %843 = vrot.lane.b32.xlu0 %v776, 19
    %v844 = vpop.permute.xlu0 %843
    %845 = vrot.lane.b32.xlu0 %v777, 19
    %v846 = vpop.permute.xlu0 %845
    %847 = vrot.lane.b32.xlu0 %v778, 19
    %v848 = vpop.permute.xlu0 %847
    %849 = vrot.lane.b32.xlu0 %v779, 19
    %v850 = vpop.permute.xlu0 %849
    %851 = vrot.lane.b32.xlu0 %v780, 19
    %v852 = vpop.permute.xlu0 %851
    %853 = vrot.lane.b32.xlu0 %v781, 19
    %v854 = vpop.permute.xlu0 %853
    %855 = vrot.lane.b32.xlu0 %v782, 19
    %v856 = vpop.permute.xlu0 %855
    %857 = vrot.lane.b32.xlu0 %v783, 19
    %v858 = vpop.permute.xlu0 %857
    %859 = vrot.lane.b32.xlu0 %v784, 19
    %v860 = vpop.permute.xlu0 %859
    %861 = vrot.lane.b32.xlu0 %v785, 19
    %v862 = vpop.permute.xlu0 %861
    %863 = vrot.lane.b32.xlu0 %v786, 19
    %v864 = vpop.permute.xlu0 %863
    %865 = vrot.lane.b32.xlu0 %v787, 19
    %v866 = vpop.permute.xlu0 %865
    %867 = vrot.lane.b32.xlu0 %v788, 19
    %v868 = vpop.permute.xlu0 %867
    %869 = vrot.lane.b32.xlu0 %v789, 19
    %v870 = vpop.permute.xlu0 %869
    %871 = vrot.lane.b32.xlu0 %v790, 19
    %v872 = vpop.permute.xlu0 %871
    %873 = vrot.lane.b32.xlu0 %v791, 19
    %v874 = vpop.permute.xlu0 %873
    %875 = vrot.lane.b32.xlu0 %v792, 19
    %v876 = vpop.permute.xlu0 %875
    %877 = vrot.lane.b32.xlu0 %v793, 19
    %v878 = vpop.permute.xlu0 %877
    %879 = vrot.lane.b32.xlu0 %v794, 19
    %v880 = vpop.permute.xlu0 %879
    %881 = vrot.lane.b32.xlu0 %v795, 19
    %v882 = vpop.permute.xlu0 %881
    %883 = vrot.lane.b32.xlu0 %v796, 19
    %v884 = vpop.permute.xlu0 %883
    %885 = vrot.lane.b32.xlu0 %v797, 19
    %v886 = vpop.permute.xlu0 %885
    %887 = vrot.lane.b32.xlu0 %v798, 19
    %v888 = vpop.permute.xlu0 %887
    %889 = vrot.lane.b32.xlu0 %v799, 19
    %v890 = vpop.permute.xlu0 %889
    %891 = vrot.lane.b32.xlu0 %v751, 19
    %v892 = vpop.permute.xlu0 %891
    %893 = vrot.lane.b32.xlu0 %v765, 19
    %v894 = vpop.permute.xlu0 %893
    %895 = vrot.lane.b32.xlu0 %v766, 19
    %v896 = vpop.permute.xlu0 %895
    %897 = vrot.lane.b32.xlu0 %v767, 19
    %v898 = vpop.permute.xlu0 %897
    %899 = vrot.lane.b32.xlu0 %v768, 19
    %v900 = vpop.permute.xlu0 %899
    %901 = vrot.lane.b32.xlu0 %v769, 19
    %v902 = vpop.permute.xlu0 %901
    %903 = vrot.lane.b32.xlu0 %v770, 19
    %v904 = vpop.permute.xlu0 %903
    %vm905 = vcmask 154624
    %v906 = vsel %vm905, %v836, %v838
    %v907 = vsel %vm905, %v838, %v840
    %v908 = vsel %vm905, %v840, %v842
    %v909 = vsel %vm905, %v842, %v844
    %v910 = vsel %vm905, %v844, %v846
    %v911 = vsel %vm905, %v846, %v848
    %v912 = vsel %vm905, %v850, %v852
    %v913 = vsel %vm905, %v852, %v854
    %v914 = vsel %vm905, %v854, %v856
    %v915 = vsel %vm905, %v856, %v858
    %v916 = vsel %vm905, %v858, %v860
    %v917 = vsel %vm905, %v860, %v862
    %v918 = vsel %vm905, %v864, %v866
    %v919 = vsel %vm905, %v866, %v868
    %v920 = vsel %vm905, %v868, %v870
    %v921 = vsel %vm905, %v870, %v872
    %v922 = vsel %vm905, %v872, %v874
    %v923 = vsel %vm905, %v874, %v876
    %v924 = vsel %vm905, %v878, %v880
    %v925 = vsel %vm905, %v880, %v882
    %v926 = vsel %vm905, %v882, %v884
    %v927 = vsel %vm905, %v884, %v886
    %v928 = vsel %vm905, %v886, %v888
    %v929 = vsel %vm905, %v888, %v890
    %v930 = vsel %vm905, %v892, %v894
    %v931 = vsel %vm905, %v894, %v896
    %v932 = vsel %vm905, %v896, %v898
    %v933 = vsel %vm905, %v898, %v900
    %v934 = vsel %vm905, %v900, %v902
    %v935 = vsel %vm905, %v902, %v904
    %vm960 = vcmask 293888
    %v962 = vsel %vm960, %v800, 0
    %v964 = vsel %vm771, %v930, 0
    %v966 = vsel %vm771, %v931, 0
    %v968 = vsel %vm771, %v932, 0
    %v970 = vsel %vm771, %v933, 0
    %v972 = vsel %vm771, %v934, 0
    %v974 = vsel %vm771, %v935, 0
    %976 = vmatpush.msra.mxu0 0.0
    %977 = vmatpush.msra.mxu0 0.0
    %978 = vmatpush.msra.mxu0 0.0
    %979 = vmatpush.msra.mxu0 0.0
    %980 = vmatpush.msra.mxu0 0.0
    %981 = vmatpush.msra.mxu0 0.0
    %982 = vmatpush.msra.mxu0 0.0
    %983 = vmatpush.msra.mxu0 0.0
    %984 = vmatpush.msra.mxu0 0.0
    %985 = vmatpush.msra.mxu0 0.0
    %986 = vmatpush.msra.mxu0 0.0
    %v987 = vand.u32 %v964, 4294901760
    %988 = vmatpush.msra.mxu0 %v987
    %v989 = vand.u32 %v924, 4294901760
    %990 = vmatpush.msra.mxu0 %v989
    %v991 = vand.u32 %v918, 4294901760
    %992 = vmatpush.msra.mxu0 %v991
    %v993 = vand.u32 %v912, 4294901760
    %994 = vmatpush.msra.mxu0 %v993
    %v995 = vand.u32 %v906, 4294901760
    %996 = vmatpush.msra.mxu0 %v995
    %v997 = vand.u32 %v962, 4294901760
    %v998 = vsub.f32 %v962, %v997
    %v999 = vand.u32 %v998, 4294901760
    %v1000 = vsub.f32 %v998, %v999
    %v1001 = vand.u32 %v1000, 4294901760
    %1002 = vmatmul.f32.gmra.mxu0 %v1001
    %v1003 = vpop.f32.mrf.mxu0
    %v1004 = vadd.f32 %v805, %v1003
    %1005 = vdwg.mxu0
    %1006 = vmatpush.msra.mxu0 0.0
    %1007 = vmatpush.msra.mxu0 0.0
    %1008 = vmatpush.msra.mxu0 0.0
    %1009 = vmatpush.msra.mxu0 0.0
    %1010 = vmatpush.msra.mxu0 0.0
    %1011 = vmatpush.msra.mxu0 0.0
    %1012 = vmatpush.msra.mxu0 0.0
    %1013 = vmatpush.msra.mxu0 0.0
    %1014 = vmatpush.msra.mxu0 0.0
    %1015 = vmatpush.msra.mxu0 0.0
    %1016 = vmatpush.msra.mxu0 0.0
    %v1017 = vand.u32 %v964, 4294901760
    %v1018 = vsub.f32 %v964, %v1017
    %v1019 = vand.u32 %v1018, 4294901760
    %v1020 = vsub.f32 %v1018, %v1019
    %v1021 = vand.u32 %v1020, 4294901760
    %1022 = vmatpush.msra.mxu0 %v1021
    %v1023 = vand.u32 %v924, 4294901760
    %v1024 = vsub.f32 %v924, %v1023
    %v1025 = vand.u32 %v1024, 4294901760
    %v1026 = vsub.f32 %v1024, %v1025
    %v1027 = vand.u32 %v1026, 4294901760
    %1028 = vmatpush.msra.mxu0 %v1027
    %v1029 = vand.u32 %v918, 4294901760
    %v1030 = vsub.f32 %v918, %v1029
    %v1031 = vand.u32 %v1030, 4294901760
    %v1032 = vsub.f32 %v1030, %v1031
    %v1033 = vand.u32 %v1032, 4294901760
    %1034 = vmatpush.msra.mxu0 %v1033
    %v1035 = vand.u32 %v912, 4294901760
    %v1036 = vsub.f32 %v912, %v1035
    %v1037 = vand.u32 %v1036, 4294901760
    %v1038 = vsub.f32 %v1036, %v1037
    %v1039 = vand.u32 %v1038, 4294901760
    %1040 = vmatpush.msra.mxu0 %v1039
    %v1041 = vand.u32 %v906, 4294901760
    %v1042 = vsub.f32 %v906, %v1041
    %v1043 = vand.u32 %v1042, 4294901760
    %v1044 = vsub.f32 %v1042, %v1043
    %v1045 = vand.u32 %v1044, 4294901760
    %1046 = vmatpush.msra.mxu0 %v1045
    %v1047 = vand.u32 %v962, 4294901760
    %1048 = vmatmul.f32.gmra.mxu0 %v1047
    %v1049 = vpop.f32.mrf.mxu0
    %v1050 = vadd.f32 %v1004, %v1049
    %1051 = vdwg.mxu0
    %1052 = vmatpush.msra.mxu0 0.0
    %1053 = vmatpush.msra.mxu0 0.0
    %1054 = vmatpush.msra.mxu0 0.0
    %1055 = vmatpush.msra.mxu0 0.0
    %1056 = vmatpush.msra.mxu0 0.0
    %1057 = vmatpush.msra.mxu0 0.0
    %1058 = vmatpush.msra.mxu0 0.0
    %1059 = vmatpush.msra.mxu0 0.0
    %1060 = vmatpush.msra.mxu0 0.0
    %1061 = vmatpush.msra.mxu0 0.0
    %1062 = vmatpush.msra.mxu0 0.0
    %v1063 = vand.u32 %v964, 4294901760
    %v1064 = vsub.f32 %v964, %v1063
    %1065 = vmatpush.msra.mxu0 %v1064
    %v1066 = vand.u32 %v924, 4294901760
    %v1067 = vsub.f32 %v924, %v1066
    %1068 = vmatpush.msra.mxu0 %v1067
    %v1069 = vand.u32 %v918, 4294901760
    %v1070 = vsub.f32 %v918, %v1069
    %1071 = vmatpush.msra.mxu0 %v1070
    %v1072 = vand.u32 %v912, 4294901760
    %v1073 = vsub.f32 %v912, %v1072
    %1074 = vmatpush.msra.mxu0 %v1073
    %v1075 = vand.u32 %v906, 4294901760
    %v1076 = vsub.f32 %v906, %v1075
    %1077 = vmatpush.msra.mxu0 %v1076
    %v1078 = vand.u32 %v962, 4294901760
    %v1079 = vsub.f32 %v962, %v1078
    %1080 = vmatmul.f32.gmra.mxu0 %v1079
    %v1081 = vpop.f32.mrf.mxu0
    %v1082 = vadd.f32 %v1050, %v1081
    %1083 = vdwg.mxu0
    %1084 = vmatpush.msra.mxu0 0.0
    %1085 = vmatpush.msra.mxu0 0.0
    %1086 = vmatpush.msra.mxu0 0.0
    %1087 = vmatpush.msra.mxu0 0.0
    %1088 = vmatpush.msra.mxu0 0.0
    %1089 = vmatpush.msra.mxu0 0.0
    %1090 = vmatpush.msra.mxu0 0.0
    %1091 = vmatpush.msra.mxu0 0.0
    %1092 = vmatpush.msra.mxu0 0.0
    %1093 = vmatpush.msra.mxu0 0.0
    %1094 = vmatpush.msra.mxu0 0.0
    %v1095 = vand.u32 %v964, 4294901760
    %1096 = vmatpush.msra.mxu0 %v1095
    %v1097 = vand.u32 %v924, 4294901760
    %1098 = vmatpush.msra.mxu0 %v1097
    %v1099 = vand.u32 %v918, 4294901760
    %1100 = vmatpush.msra.mxu0 %v1099
    %v1101 = vand.u32 %v912, 4294901760
    %1102 = vmatpush.msra.mxu0 %v1101
    %v1103 = vand.u32 %v906, 4294901760
    %1104 = vmatpush.msra.mxu0 %v1103
    %v1105 = vand.u32 %v962, 4294901760
    %v1106 = vsub.f32 %v962, %v1105
    %v1107 = vand.u32 %v1106, 4294901760
    %1108 = vmatmul.f32.gmra.mxu0 %v1107
    %v1109 = vpop.f32.mrf.mxu0
    %v1110 = vadd.f32 %v1082, %v1109
    %1111 = vdwg.mxu0
    %1112 = vmatpush.msra.mxu0 0.0
    %1113 = vmatpush.msra.mxu0 0.0
    %1114 = vmatpush.msra.mxu0 0.0
    %1115 = vmatpush.msra.mxu0 0.0
    %1116 = vmatpush.msra.mxu0 0.0
    %1117 = vmatpush.msra.mxu0 0.0
    %1118 = vmatpush.msra.mxu0 0.0
    %1119 = vmatpush.msra.mxu0 0.0
    %1120 = vmatpush.msra.mxu0 0.0
    %1121 = vmatpush.msra.mxu0 0.0
    %1122 = vmatpush.msra.mxu0 0.0
    %v1123 = vand.u32 %v964, 4294901760
    %v1124 = vsub.f32 %v964, %v1123
    %v1125 = vand.u32 %v1124, 4294901760
    %1126 = vmatpush.msra.mxu0 %v1125
    %v1127 = vand.u32 %v924, 4294901760
    %v1128 = vsub.f32 %v924, %v1127
    %v1129 = vand.u32 %v1128, 4294901760
    %1130 = vmatpush.msra.mxu0 %v1129
    %v1131 = vand.u32 %v918, 4294901760
    %v1132 = vsub.f32 %v918, %v1131
    %v1133 = vand.u32 %v1132, 4294901760
    %1134 = vmatpush.msra.mxu0 %v1133
    %v1135 = vand.u32 %v912, 4294901760
    %v1136 = vsub.f32 %v912, %v1135
    %v1137 = vand.u32 %v1136, 4294901760
    %1138 = vmatpush.msra.mxu0 %v1137
    %v1139 = vand.u32 %v906, 4294901760
    %v1140 = vsub.f32 %v906, %v1139
    %v1141 = vand.u32 %v1140, 4294901760
    %1142 = vmatpush.msra.mxu0 %v1141
    %v1143 = vand.u32 %v962, 4294901760
    %1144 = vmatmul.f32.gmra.mxu0 %v1143
    %v1145 = vpop.f32.mrf.mxu0
    %v1146 = vadd.f32 %v1110, %v1145
    %1147 = vdwg.mxu0
    %1148 = vmatpush.msra.mxu0 0.0
    %1149 = vmatpush.msra.mxu0 0.0
    %1150 = vmatpush.msra.mxu0 0.0
    %1151 = vmatpush.msra.mxu0 0.0
    %1152 = vmatpush.msra.mxu0 0.0
    %1153 = vmatpush.msra.mxu0 0.0
    %1154 = vmatpush.msra.mxu0 0.0
    %1155 = vmatpush.msra.mxu0 0.0
    %1156 = vmatpush.msra.mxu0 0.0
    %1157 = vmatpush.msra.mxu0 0.0
    %1158 = vmatpush.msra.mxu0 0.0
    %v1159 = vand.u32 %v964, 4294901760
    %1160 = vmatpush.msra.mxu0 %v1159
    %v1161 = vand.u32 %v924, 4294901760
    %1162 = vmatpush.msra.mxu0 %v1161
    %v1163 = vand.u32 %v918, 4294901760
    %1164 = vmatpush.msra.mxu0 %v1163
    %v1165 = vand.u32 %v912, 4294901760
    %1166 = vmatpush.msra.mxu0 %v1165
    %v1167 = vand.u32 %v906, 4294901760
    %1168 = vmatpush.msra.mxu0 %v1167
    %v1169 = vand.u32 %v962, 4294901760
    %1170 = vmatmul.f32.gmra.mxu0 %v1169
    %v1171 = vpop.f32.mrf.mxu0
    %v1172 = vadd.f32 %v1146, %v1171
    %1173 = vdwg.mxu0
    %1174 = vmatpush.msra.mxu0 0.0
    %1175 = vmatpush.msra.mxu0 0.0
    %1176 = vmatpush.msra.mxu0 0.0
    %1177 = vmatpush.msra.mxu0 0.0
    %1178 = vmatpush.msra.mxu0 0.0
    %1179 = vmatpush.msra.mxu0 0.0
    %1180 = vmatpush.msra.mxu0 0.0
    %1181 = vmatpush.msra.mxu0 0.0
    %1182 = vmatpush.msra.mxu0 0.0
    %1183 = vmatpush.msra.mxu0 0.0
    %1184 = vmatpush.msra.mxu0 0.0
    %v1185 = vand.u32 %v966, 4294901760
    %1186 = vmatpush.msra.mxu0 %v1185
    %v1187 = vand.u32 %v925, 4294901760
    %1188 = vmatpush.msra.mxu0 %v1187
    %v1189 = vand.u32 %v919, 4294901760
    %1190 = vmatpush.msra.mxu0 %v1189
    %v1191 = vand.u32 %v913, 4294901760
    %1192 = vmatpush.msra.mxu0 %v1191
    %v1193 = vand.u32 %v907, 4294901760
    %1194 = vmatpush.msra.mxu0 %v1193
    %v1195 = vand.u32 %v962, 4294901760
    %v1196 = vsub.f32 %v962, %v1195
    %v1197 = vand.u32 %v1196, 4294901760
    %v1198 = vsub.f32 %v1196, %v1197
    %v1199 = vand.u32 %v1198, 4294901760
    %1200 = vmatmul.f32.gmra.mxu0 %v1199
    %v1201 = vpop.f32.mrf.mxu0
    %v1202 = vadd.f32 %v805, %v1201
    %1203 = vdwg.mxu0
    %1204 = vmatpush.msra.mxu0 0.0
    %1205 = vmatpush.msra.mxu0 0.0
    %1206 = vmatpush.msra.mxu0 0.0
    %1207 = vmatpush.msra.mxu0 0.0
    %1208 = vmatpush.msra.mxu0 0.0
    %1209 = vmatpush.msra.mxu0 0.0
    %1210 = vmatpush.msra.mxu0 0.0
    %1211 = vmatpush.msra.mxu0 0.0
    %1212 = vmatpush.msra.mxu0 0.0
    %1213 = vmatpush.msra.mxu0 0.0
    %1214 = vmatpush.msra.mxu0 0.0
    %v1215 = vand.u32 %v966, 4294901760
    %v1216 = vsub.f32 %v966, %v1215
    %v1217 = vand.u32 %v1216, 4294901760
    %v1218 = vsub.f32 %v1216, %v1217
    %v1219 = vand.u32 %v1218, 4294901760
    %1220 = vmatpush.msra.mxu0 %v1219
    %v1221 = vand.u32 %v925, 4294901760
    %v1222 = vsub.f32 %v925, %v1221
    %v1223 = vand.u32 %v1222, 4294901760
    %v1224 = vsub.f32 %v1222, %v1223
    %v1225 = vand.u32 %v1224, 4294901760
    %1226 = vmatpush.msra.mxu0 %v1225
    %v1227 = vand.u32 %v919, 4294901760
    %v1228 = vsub.f32 %v919, %v1227
    %v1229 = vand.u32 %v1228, 4294901760
    %v1230 = vsub.f32 %v1228, %v1229
    %v1231 = vand.u32 %v1230, 4294901760
    %1232 = vmatpush.msra.mxu0 %v1231
    %v1233 = vand.u32 %v913, 4294901760
    %v1234 = vsub.f32 %v913, %v1233
    %v1235 = vand.u32 %v1234, 4294901760
    %v1236 = vsub.f32 %v1234, %v1235
    %v1237 = vand.u32 %v1236, 4294901760
    %1238 = vmatpush.msra.mxu0 %v1237
    %v1239 = vand.u32 %v907, 4294901760
    %v1240 = vsub.f32 %v907, %v1239
    %v1241 = vand.u32 %v1240, 4294901760
    %v1242 = vsub.f32 %v1240, %v1241
    %v1243 = vand.u32 %v1242, 4294901760
    %1244 = vmatpush.msra.mxu0 %v1243
    %v1245 = vand.u32 %v962, 4294901760
    %1246 = vmatmul.f32.gmra.mxu0 %v1245
    %v1247 = vpop.f32.mrf.mxu0
    %v1248 = vadd.f32 %v1202, %v1247
    %1249 = vdwg.mxu0
    %1250 = vmatpush.msra.mxu0 0.0
    %1251 = vmatpush.msra.mxu0 0.0
    %1252 = vmatpush.msra.mxu0 0.0
    %1253 = vmatpush.msra.mxu0 0.0
    %1254 = vmatpush.msra.mxu0 0.0
    %1255 = vmatpush.msra.mxu0 0.0
    %1256 = vmatpush.msra.mxu0 0.0
    %1257 = vmatpush.msra.mxu0 0.0
    %1258 = vmatpush.msra.mxu0 0.0
    %1259 = vmatpush.msra.mxu0 0.0
    %1260 = vmatpush.msra.mxu0 0.0
    %v1261 = vand.u32 %v966, 4294901760
    %v1262 = vsub.f32 %v966, %v1261
    %1263 = vmatpush.msra.mxu0 %v1262
    %v1264 = vand.u32 %v925, 4294901760
    %v1265 = vsub.f32 %v925, %v1264
    %1266 = vmatpush.msra.mxu0 %v1265
    %v1267 = vand.u32 %v919, 4294901760
    %v1268 = vsub.f32 %v919, %v1267
    %1269 = vmatpush.msra.mxu0 %v1268
    %v1270 = vand.u32 %v913, 4294901760
    %v1271 = vsub.f32 %v913, %v1270
    %1272 = vmatpush.msra.mxu0 %v1271
    %v1273 = vand.u32 %v907, 4294901760
    %v1274 = vsub.f32 %v907, %v1273
    %1275 = vmatpush.msra.mxu0 %v1274
    %v1276 = vand.u32 %v962, 4294901760
    %v1277 = vsub.f32 %v962, %v1276
    %1278 = vmatmul.f32.gmra.mxu0 %v1277
    %v1279 = vpop.f32.mrf.mxu0
    %v1280 = vadd.f32 %v1248, %v1279
    %1281 = vdwg.mxu0
    %1282 = vmatpush.msra.mxu0 0.0
    %1283 = vmatpush.msra.mxu0 0.0
    %1284 = vmatpush.msra.mxu0 0.0
    %1285 = vmatpush.msra.mxu0 0.0
    %1286 = vmatpush.msra.mxu0 0.0
    %1287 = vmatpush.msra.mxu0 0.0
    %1288 = vmatpush.msra.mxu0 0.0
    %1289 = vmatpush.msra.mxu0 0.0
    %1290 = vmatpush.msra.mxu0 0.0
    %1291 = vmatpush.msra.mxu0 0.0
    %1292 = vmatpush.msra.mxu0 0.0
    %v1293 = vand.u32 %v966, 4294901760
    %1294 = vmatpush.msra.mxu0 %v1293
    %v1295 = vand.u32 %v925, 4294901760
    %1296 = vmatpush.msra.mxu0 %v1295
    %v1297 = vand.u32 %v919, 4294901760
    %1298 = vmatpush.msra.mxu0 %v1297
    %v1299 = vand.u32 %v913, 4294901760
    %1300 = vmatpush.msra.mxu0 %v1299
    %v1301 = vand.u32 %v907, 4294901760
    %1302 = vmatpush.msra.mxu0 %v1301
    %v1303 = vand.u32 %v962, 4294901760
    %v1304 = vsub.f32 %v962, %v1303
    %v1305 = vand.u32 %v1304, 4294901760
    %1306 = vmatmul.f32.gmra.mxu0 %v1305
    %v1307 = vpop.f32.mrf.mxu0
    %v1308 = vadd.f32 %v1280, %v1307
    %1309 = vdwg.mxu0
    %1310 = vmatpush.msra.mxu0 0.0
    %1311 = vmatpush.msra.mxu0 0.0
    %1312 = vmatpush.msra.mxu0 0.0
    %1313 = vmatpush.msra.mxu0 0.0
    %1314 = vmatpush.msra.mxu0 0.0
    %1315 = vmatpush.msra.mxu0 0.0
    %1316 = vmatpush.msra.mxu0 0.0
    %1317 = vmatpush.msra.mxu0 0.0
    %1318 = vmatpush.msra.mxu0 0.0
    %1319 = vmatpush.msra.mxu0 0.0
    %1320 = vmatpush.msra.mxu0 0.0
    %v1321 = vand.u32 %v966, 4294901760
    %v1322 = vsub.f32 %v966, %v1321
    %v1323 = vand.u32 %v1322, 4294901760
    %1324 = vmatpush.msra.mxu0 %v1323
    %v1325 = vand.u32 %v925, 4294901760
    %v1326 = vsub.f32 %v925, %v1325
    %v1327 = vand.u32 %v1326, 4294901760
    %1328 = vmatpush.msra.mxu0 %v1327
    %v1329 = vand.u32 %v919, 4294901760
    %v1330 = vsub.f32 %v919, %v1329
    %v1331 = vand.u32 %v1330, 4294901760
    %1332 = vmatpush.msra.mxu0 %v1331
    %v1333 = vand.u32 %v913, 4294901760
    %v1334 = vsub.f32 %v913, %v1333
    %v1335 = vand.u32 %v1334, 4294901760
    %1336 = vmatpush.msra.mxu0 %v1335
    %v1337 = vand.u32 %v907, 4294901760
    %v1338 = vsub.f32 %v907, %v1337
    %v1339 = vand.u32 %v1338, 4294901760
    %1340 = vmatpush.msra.mxu0 %v1339
    %v1341 = vand.u32 %v962, 4294901760
    %1342 = vmatmul.f32.gmra.mxu0 %v1341
    %v1343 = vpop.f32.mrf.mxu0
    %v1344 = vadd.f32 %v1308, %v1343
    %1345 = vdwg.mxu0
    %1346 = vmatpush.msra.mxu0 0.0
    %1347 = vmatpush.msra.mxu0 0.0
    %1348 = vmatpush.msra.mxu0 0.0
    %1349 = vmatpush.msra.mxu0 0.0
    %1350 = vmatpush.msra.mxu0 0.0
    %1351 = vmatpush.msra.mxu0 0.0
    %1352 = vmatpush.msra.mxu0 0.0
    %1353 = vmatpush.msra.mxu0 0.0
    %1354 = vmatpush.msra.mxu0 0.0
    %1355 = vmatpush.msra.mxu0 0.0
    %1356 = vmatpush.msra.mxu0 0.0
    %v1357 = vand.u32 %v966, 4294901760
    %1358 = vmatpush.msra.mxu0 %v1357
    %v1359 = vand.u32 %v925, 4294901760
    %1360 = vmatpush.msra.mxu0 %v1359
    %v1361 = vand.u32 %v919, 4294901760
    %1362 = vmatpush.msra.mxu0 %v1361
    %v1363 = vand.u32 %v913, 4294901760
    %1364 = vmatpush.msra.mxu0 %v1363
    %v1365 = vand.u32 %v907, 4294901760
    %1366 = vmatpush.msra.mxu0 %v1365
    %v1367 = vand.u32 %v962, 4294901760
    %1368 = vmatmul.f32.gmra.mxu0 %v1367
    %v1369 = vpop.f32.mrf.mxu0
    %v1370 = vadd.f32 %v1344, %v1369
    %1371 = vdwg.mxu0
    %1372 = vmatpush.msra.mxu0 0.0
    %1373 = vmatpush.msra.mxu0 0.0
    %1374 = vmatpush.msra.mxu0 0.0
    %1375 = vmatpush.msra.mxu0 0.0
    %1376 = vmatpush.msra.mxu0 0.0
    %1377 = vmatpush.msra.mxu0 0.0
    %1378 = vmatpush.msra.mxu0 0.0
    %1379 = vmatpush.msra.mxu0 0.0
    %1380 = vmatpush.msra.mxu0 0.0
    %1381 = vmatpush.msra.mxu0 0.0
    %1382 = vmatpush.msra.mxu0 0.0
    %v1383 = vand.u32 %v968, 4294901760
    %1384 = vmatpush.msra.mxu0 %v1383
    %v1385 = vand.u32 %v926, 4294901760
    %1386 = vmatpush.msra.mxu0 %v1385
    %v1387 = vand.u32 %v920, 4294901760
    %1388 = vmatpush.msra.mxu0 %v1387
    %v1389 = vand.u32 %v914, 4294901760
    %1390 = vmatpush.msra.mxu0 %v1389
    %v1391 = vand.u32 %v908, 4294901760
    %1392 = vmatpush.msra.mxu0 %v1391
    %v1393 = vand.u32 %v962, 4294901760
    %v1394 = vsub.f32 %v962, %v1393
    %v1395 = vand.u32 %v1394, 4294901760
    %v1396 = vsub.f32 %v1394, %v1395
    %v1397 = vand.u32 %v1396, 4294901760
    %1398 = vmatmul.f32.gmra.mxu0 %v1397
    %v1399 = vpop.f32.mrf.mxu0
    %v1400 = vadd.f32 %v805, %v1399
    %1401 = vdwg.mxu0
    %1402 = vmatpush.msra.mxu0 0.0
    %1403 = vmatpush.msra.mxu0 0.0
    %1404 = vmatpush.msra.mxu0 0.0
    %1405 = vmatpush.msra.mxu0 0.0
    %1406 = vmatpush.msra.mxu0 0.0
    %1407 = vmatpush.msra.mxu0 0.0
    %1408 = vmatpush.msra.mxu0 0.0
    %1409 = vmatpush.msra.mxu0 0.0
    %1410 = vmatpush.msra.mxu0 0.0
    %1411 = vmatpush.msra.mxu0 0.0
    %1412 = vmatpush.msra.mxu0 0.0
    %v1413 = vand.u32 %v968, 4294901760
    %v1414 = vsub.f32 %v968, %v1413
    %v1415 = vand.u32 %v1414, 4294901760
    %v1416 = vsub.f32 %v1414, %v1415
    %v1417 = vand.u32 %v1416, 4294901760
    %1418 = vmatpush.msra.mxu0 %v1417
    %v1419 = vand.u32 %v926, 4294901760
    %v1420 = vsub.f32 %v926, %v1419
    %v1421 = vand.u32 %v1420, 4294901760
    %v1422 = vsub.f32 %v1420, %v1421
    %v1423 = vand.u32 %v1422, 4294901760
    %1424 = vmatpush.msra.mxu0 %v1423
    %v1425 = vand.u32 %v920, 4294901760
    %v1426 = vsub.f32 %v920, %v1425
    %v1427 = vand.u32 %v1426, 4294901760
    %v1428 = vsub.f32 %v1426, %v1427
    %v1429 = vand.u32 %v1428, 4294901760
    %1430 = vmatpush.msra.mxu0 %v1429
    %v1431 = vand.u32 %v914, 4294901760
    %v1432 = vsub.f32 %v914, %v1431
    %v1433 = vand.u32 %v1432, 4294901760
    %v1434 = vsub.f32 %v1432, %v1433
    %v1435 = vand.u32 %v1434, 4294901760
    %1436 = vmatpush.msra.mxu0 %v1435
    %v1437 = vand.u32 %v908, 4294901760
    %v1438 = vsub.f32 %v908, %v1437
    %v1439 = vand.u32 %v1438, 4294901760
    %v1440 = vsub.f32 %v1438, %v1439
    %v1441 = vand.u32 %v1440, 4294901760
    %1442 = vmatpush.msra.mxu0 %v1441
    %v1443 = vand.u32 %v962, 4294901760
    %1444 = vmatmul.f32.gmra.mxu0 %v1443
    %v1445 = vpop.f32.mrf.mxu0
    %v1446 = vadd.f32 %v1400, %v1445
    %1447 = vdwg.mxu0
    %1448 = vmatpush.msra.mxu0 0.0
    %1449 = vmatpush.msra.mxu0 0.0
    %1450 = vmatpush.msra.mxu0 0.0
    %1451 = vmatpush.msra.mxu0 0.0
    %1452 = vmatpush.msra.mxu0 0.0
    %1453 = vmatpush.msra.mxu0 0.0
    %1454 = vmatpush.msra.mxu0 0.0
    %1455 = vmatpush.msra.mxu0 0.0
    %1456 = vmatpush.msra.mxu0 0.0
    %1457 = vmatpush.msra.mxu0 0.0
    %1458 = vmatpush.msra.mxu0 0.0
    %v1459 = vand.u32 %v968, 4294901760
    %v1460 = vsub.f32 %v968, %v1459
    %1461 = vmatpush.msra.mxu0 %v1460
    %v1462 = vand.u32 %v926, 4294901760
    %v1463 = vsub.f32 %v926, %v1462
    %1464 = vmatpush.msra.mxu0 %v1463
    %v1465 = vand.u32 %v920, 4294901760
    %v1466 = vsub.f32 %v920, %v1465
    %1467 = vmatpush.msra.mxu0 %v1466
    %v1468 = vand.u32 %v914, 4294901760
    %v1469 = vsub.f32 %v914, %v1468
    %1470 = vmatpush.msra.mxu0 %v1469
    %v1471 = vand.u32 %v908, 4294901760
    %v1472 = vsub.f32 %v908, %v1471
    %1473 = vmatpush.msra.mxu0 %v1472
    %v1474 = vand.u32 %v962, 4294901760
    %v1475 = vsub.f32 %v962, %v1474
    %1476 = vmatmul.f32.gmra.mxu0 %v1475
    %v1477 = vpop.f32.mrf.mxu0
    %v1478 = vadd.f32 %v1446, %v1477
    %1479 = vdwg.mxu0
    %1480 = vmatpush.msra.mxu0 0.0
    %1481 = vmatpush.msra.mxu0 0.0
    %1482 = vmatpush.msra.mxu0 0.0
    %1483 = vmatpush.msra.mxu0 0.0
    %1484 = vmatpush.msra.mxu0 0.0
    %1485 = vmatpush.msra.mxu0 0.0
    %1486 = vmatpush.msra.mxu0 0.0
    %1487 = vmatpush.msra.mxu0 0.0
    %1488 = vmatpush.msra.mxu0 0.0
    %1489 = vmatpush.msra.mxu0 0.0
    %1490 = vmatpush.msra.mxu0 0.0
    %v1491 = vand.u32 %v968, 4294901760
    %1492 = vmatpush.msra.mxu0 %v1491
    %v1493 = vand.u32 %v926, 4294901760
    %1494 = vmatpush.msra.mxu0 %v1493
    %v1495 = vand.u32 %v920, 4294901760
    %1496 = vmatpush.msra.mxu0 %v1495
    %v1497 = vand.u32 %v914, 4294901760
    %1498 = vmatpush.msra.mxu0 %v1497
    %v1499 = vand.u32 %v908, 4294901760
    %1500 = vmatpush.msra.mxu0 %v1499
    %v1501 = vand.u32 %v962, 4294901760
    %v1502 = vsub.f32 %v962, %v1501
    %v1503 = vand.u32 %v1502, 4294901760
    %1504 = vmatmul.f32.gmra.mxu0 %v1503
    %v1505 = vpop.f32.mrf.mxu0
    %v1506 = vadd.f32 %v1478, %v1505
    %1507 = vdwg.mxu0
    %1508 = vmatpush.msra.mxu0 0.0
    %1509 = vmatpush.msra.mxu0 0.0
    %1510 = vmatpush.msra.mxu0 0.0
    %1511 = vmatpush.msra.mxu0 0.0
    %1512 = vmatpush.msra.mxu0 0.0
    %1513 = vmatpush.msra.mxu0 0.0
    %1514 = vmatpush.msra.mxu0 0.0
    %1515 = vmatpush.msra.mxu0 0.0
    %1516 = vmatpush.msra.mxu0 0.0
    %1517 = vmatpush.msra.mxu0 0.0
    %1518 = vmatpush.msra.mxu0 0.0
    %v1519 = vand.u32 %v968, 4294901760
    %v1520 = vsub.f32 %v968, %v1519
    %v1521 = vand.u32 %v1520, 4294901760
    %1522 = vmatpush.msra.mxu0 %v1521
    %v1523 = vand.u32 %v926, 4294901760
    %v1524 = vsub.f32 %v926, %v1523
    %v1525 = vand.u32 %v1524, 4294901760
    %1526 = vmatpush.msra.mxu0 %v1525
    %v1527 = vand.u32 %v920, 4294901760
    %v1528 = vsub.f32 %v920, %v1527
    %v1529 = vand.u32 %v1528, 4294901760
    %1530 = vmatpush.msra.mxu0 %v1529
    %v1531 = vand.u32 %v914, 4294901760
    %v1532 = vsub.f32 %v914, %v1531
    %v1533 = vand.u32 %v1532, 4294901760
    %1534 = vmatpush.msra.mxu0 %v1533
    %v1535 = vand.u32 %v908, 4294901760
    %v1536 = vsub.f32 %v908, %v1535
    %v1537 = vand.u32 %v1536, 4294901760
    %1538 = vmatpush.msra.mxu0 %v1537
    %v1539 = vand.u32 %v962, 4294901760
    %1540 = vmatmul.f32.gmra.mxu0 %v1539
    %v1541 = vpop.f32.mrf.mxu0
    %v1542 = vadd.f32 %v1506, %v1541
    %1543 = vdwg.mxu0
    %1544 = vmatpush.msra.mxu0 0.0
    %1545 = vmatpush.msra.mxu0 0.0
    %1546 = vmatpush.msra.mxu0 0.0
    %1547 = vmatpush.msra.mxu0 0.0
    %1548 = vmatpush.msra.mxu0 0.0
    %1549 = vmatpush.msra.mxu0 0.0
    %1550 = vmatpush.msra.mxu0 0.0
    %1551 = vmatpush.msra.mxu0 0.0
    %1552 = vmatpush.msra.mxu0 0.0
    %1553 = vmatpush.msra.mxu0 0.0
    %1554 = vmatpush.msra.mxu0 0.0
    %v1555 = vand.u32 %v968, 4294901760
    %1556 = vmatpush.msra.mxu0 %v1555
    %v1557 = vand.u32 %v926, 4294901760
    %1558 = vmatpush.msra.mxu0 %v1557
    %v1559 = vand.u32 %v920, 4294901760
    %1560 = vmatpush.msra.mxu0 %v1559
    %v1561 = vand.u32 %v914, 4294901760
    %1562 = vmatpush.msra.mxu0 %v1561
    %v1563 = vand.u32 %v908, 4294901760
    %1564 = vmatpush.msra.mxu0 %v1563
    %v1565 = vand.u32 %v962, 4294901760
    %1566 = vmatmul.f32.gmra.mxu0 %v1565
    %v1567 = vpop.f32.mrf.mxu0
    %v1568 = vadd.f32 %v1542, %v1567
    %1569 = vdwg.mxu0
    %1570 = vmatpush.msra.mxu0 0.0
    %1571 = vmatpush.msra.mxu0 0.0
    %1572 = vmatpush.msra.mxu0 0.0
    %1573 = vmatpush.msra.mxu0 0.0
    %1574 = vmatpush.msra.mxu0 0.0
    %1575 = vmatpush.msra.mxu0 0.0
    %1576 = vmatpush.msra.mxu0 0.0
    %1577 = vmatpush.msra.mxu0 0.0
    %1578 = vmatpush.msra.mxu0 0.0
    %1579 = vmatpush.msra.mxu0 0.0
    %1580 = vmatpush.msra.mxu0 0.0
    %v1581 = vand.u32 %v970, 4294901760
    %1582 = vmatpush.msra.mxu0 %v1581
    %v1583 = vand.u32 %v927, 4294901760
    %1584 = vmatpush.msra.mxu0 %v1583
    %v1585 = vand.u32 %v921, 4294901760
    %1586 = vmatpush.msra.mxu0 %v1585
    %v1587 = vand.u32 %v915, 4294901760
    %1588 = vmatpush.msra.mxu0 %v1587
    %v1589 = vand.u32 %v909, 4294901760
    %1590 = vmatpush.msra.mxu0 %v1589
    %v1591 = vand.u32 %v962, 4294901760
    %v1592 = vsub.f32 %v962, %v1591
    %v1593 = vand.u32 %v1592, 4294901760
    %v1594 = vsub.f32 %v1592, %v1593
    %v1595 = vand.u32 %v1594, 4294901760
    %1596 = vmatmul.f32.gmra.mxu0 %v1595
    %v1597 = vpop.f32.mrf.mxu0
    %v1598 = vadd.f32 %v805, %v1597
    %1599 = vdwg.mxu0
    %1600 = vmatpush.msra.mxu0 0.0
    %1601 = vmatpush.msra.mxu0 0.0
    %1602 = vmatpush.msra.mxu0 0.0
    %1603 = vmatpush.msra.mxu0 0.0
    %1604 = vmatpush.msra.mxu0 0.0
    %1605 = vmatpush.msra.mxu0 0.0
    %1606 = vmatpush.msra.mxu0 0.0
    %1607 = vmatpush.msra.mxu0 0.0
    %1608 = vmatpush.msra.mxu0 0.0
    %1609 = vmatpush.msra.mxu0 0.0
    %1610 = vmatpush.msra.mxu0 0.0
    %v1611 = vand.u32 %v970, 4294901760
    %v1612 = vsub.f32 %v970, %v1611
    %v1613 = vand.u32 %v1612, 4294901760
    %v1614 = vsub.f32 %v1612, %v1613
    %v1615 = vand.u32 %v1614, 4294901760
    %1616 = vmatpush.msra.mxu0 %v1615
    %v1617 = vand.u32 %v927, 4294901760
    %v1618 = vsub.f32 %v927, %v1617
    %v1619 = vand.u32 %v1618, 4294901760
    %v1620 = vsub.f32 %v1618, %v1619
    %v1621 = vand.u32 %v1620, 4294901760
    %1622 = vmatpush.msra.mxu0 %v1621
    %v1623 = vand.u32 %v921, 4294901760
    %v1624 = vsub.f32 %v921, %v1623
    %v1625 = vand.u32 %v1624, 4294901760
    %v1626 = vsub.f32 %v1624, %v1625
    %v1627 = vand.u32 %v1626, 4294901760
    %1628 = vmatpush.msra.mxu0 %v1627
    %v1629 = vand.u32 %v915, 4294901760
    %v1630 = vsub.f32 %v915, %v1629
    %v1631 = vand.u32 %v1630, 4294901760
    %v1632 = vsub.f32 %v1630, %v1631
    %v1633 = vand.u32 %v1632, 4294901760
    %1634 = vmatpush.msra.mxu0 %v1633
    %v1635 = vand.u32 %v909, 4294901760
    %v1636 = vsub.f32 %v909, %v1635
    %v1637 = vand.u32 %v1636, 4294901760
    %v1638 = vsub.f32 %v1636, %v1637
    %v1639 = vand.u32 %v1638, 4294901760
    %1640 = vmatpush.msra.mxu0 %v1639
    %v1641 = vand.u32 %v962, 4294901760
    %1642 = vmatmul.f32.gmra.mxu0 %v1641
    %v1643 = vpop.f32.mrf.mxu0
    %v1644 = vadd.f32 %v1598, %v1643
    %1645 = vdwg.mxu0
    %1646 = vmatpush.msra.mxu0 0.0
    %1647 = vmatpush.msra.mxu0 0.0
    %1648 = vmatpush.msra.mxu0 0.0
    %1649 = vmatpush.msra.mxu0 0.0
    %1650 = vmatpush.msra.mxu0 0.0
    %1651 = vmatpush.msra.mxu0 0.0
    %1652 = vmatpush.msra.mxu0 0.0
    %1653 = vmatpush.msra.mxu0 0.0
    %1654 = vmatpush.msra.mxu0 0.0
    %1655 = vmatpush.msra.mxu0 0.0
    %1656 = vmatpush.msra.mxu0 0.0
    %v1657 = vand.u32 %v970, 4294901760
    %v1658 = vsub.f32 %v970, %v1657
    %1659 = vmatpush.msra.mxu0 %v1658
    %v1660 = vand.u32 %v927, 4294901760
    %v1661 = vsub.f32 %v927, %v1660
    %1662 = vmatpush.msra.mxu0 %v1661
    %v1663 = vand.u32 %v921, 4294901760
    %v1664 = vsub.f32 %v921, %v1663
    %1665 = vmatpush.msra.mxu0 %v1664
    %v1666 = vand.u32 %v915, 4294901760
    %v1667 = vsub.f32 %v915, %v1666
    %1668 = vmatpush.msra.mxu0 %v1667
    %v1669 = vand.u32 %v909, 4294901760
    %v1670 = vsub.f32 %v909, %v1669
    %1671 = vmatpush.msra.mxu0 %v1670
    %v1672 = vand.u32 %v962, 4294901760
    %v1673 = vsub.f32 %v962, %v1672
    %1674 = vmatmul.f32.gmra.mxu0 %v1673
    %v1675 = vpop.f32.mrf.mxu0
    %v1676 = vadd.f32 %v1644, %v1675
    %1677 = vdwg.mxu0
    %1678 = vmatpush.msra.mxu0 0.0
    %1679 = vmatpush.msra.mxu0 0.0
    %1680 = vmatpush.msra.mxu0 0.0
    %1681 = vmatpush.msra.mxu0 0.0
    %1682 = vmatpush.msra.mxu0 0.0
    %1683 = vmatpush.msra.mxu0 0.0
    %1684 = vmatpush.msra.mxu0 0.0
    %1685 = vmatpush.msra.mxu0 0.0
    %1686 = vmatpush.msra.mxu0 0.0
    %1687 = vmatpush.msra.mxu0 0.0
    %1688 = vmatpush.msra.mxu0 0.0
    %v1689 = vand.u32 %v970, 4294901760
    %1690 = vmatpush.msra.mxu0 %v1689
    %v1691 = vand.u32 %v927, 4294901760
    %1692 = vmatpush.msra.mxu0 %v1691
    %v1693 = vand.u32 %v921, 4294901760
    %1694 = vmatpush.msra.mxu0 %v1693
    %v1695 = vand.u32 %v915, 4294901760
    %1696 = vmatpush.msra.mxu0 %v1695
    %v1697 = vand.u32 %v909, 4294901760
    %1698 = vmatpush.msra.mxu0 %v1697
    %v1699 = vand.u32 %v962, 4294901760
    %v1700 = vsub.f32 %v962, %v1699
    %v1701 = vand.u32 %v1700, 4294901760
    %1702 = vmatmul.f32.gmra.mxu0 %v1701
    %v1703 = vpop.f32.mrf.mxu0
    %v1704 = vadd.f32 %v1676, %v1703
    %1705 = vdwg.mxu0
    %1706 = vmatpush.msra.mxu0 0.0
    %1707 = vmatpush.msra.mxu0 0.0
    %1708 = vmatpush.msra.mxu0 0.0
    %1709 = vmatpush.msra.mxu0 0.0
    %1710 = vmatpush.msra.mxu0 0.0
    %1711 = vmatpush.msra.mxu0 0.0
    %1712 = vmatpush.msra.mxu0 0.0
    %1713 = vmatpush.msra.mxu0 0.0
    %1714 = vmatpush.msra.mxu0 0.0
    %1715 = vmatpush.msra.mxu0 0.0
    %1716 = vmatpush.msra.mxu0 0.0
    %v1717 = vand.u32 %v970, 4294901760
    %v1718 = vsub.f32 %v970, %v1717
    %v1719 = vand.u32 %v1718, 4294901760
    %1720 = vmatpush.msra.mxu0 %v1719
    %v1721 = vand.u32 %v927, 4294901760
    %v1722 = vsub.f32 %v927, %v1721
    %v1723 = vand.u32 %v1722, 4294901760
    %1724 = vmatpush.msra.mxu0 %v1723
    %v1725 = vand.u32 %v921, 4294901760
    %v1726 = vsub.f32 %v921, %v1725
    %v1727 = vand.u32 %v1726, 4294901760
    %1728 = vmatpush.msra.mxu0 %v1727
    %v1729 = vand.u32 %v915, 4294901760
    %v1730 = vsub.f32 %v915, %v1729
    %v1731 = vand.u32 %v1730, 4294901760
    %1732 = vmatpush.msra.mxu0 %v1731
    %v1733 = vand.u32 %v909, 4294901760
    %v1734 = vsub.f32 %v909, %v1733
    %v1735 = vand.u32 %v1734, 4294901760
    %1736 = vmatpush.msra.mxu0 %v1735
    %v1737 = vand.u32 %v962, 4294901760
    %1738 = vmatmul.f32.gmra.mxu0 %v1737
    %v1739 = vpop.f32.mrf.mxu0
    %v1740 = vadd.f32 %v1704, %v1739
    %1741 = vdwg.mxu0
    %1742 = vmatpush.msra.mxu0 0.0
    %1743 = vmatpush.msra.mxu0 0.0
    %1744 = vmatpush.msra.mxu0 0.0
    %1745 = vmatpush.msra.mxu0 0.0
    %1746 = vmatpush.msra.mxu0 0.0
    %1747 = vmatpush.msra.mxu0 0.0
    %1748 = vmatpush.msra.mxu0 0.0
    %1749 = vmatpush.msra.mxu0 0.0
    %1750 = vmatpush.msra.mxu0 0.0
    %1751 = vmatpush.msra.mxu0 0.0
    %1752 = vmatpush.msra.mxu0 0.0
    %v1753 = vand.u32 %v970, 4294901760
    %1754 = vmatpush.msra.mxu0 %v1753
    %v1755 = vand.u32 %v927, 4294901760
    %1756 = vmatpush.msra.mxu0 %v1755
    %v1757 = vand.u32 %v921, 4294901760
    %1758 = vmatpush.msra.mxu0 %v1757
    %v1759 = vand.u32 %v915, 4294901760
    %1760 = vmatpush.msra.mxu0 %v1759
    %v1761 = vand.u32 %v909, 4294901760
    %1762 = vmatpush.msra.mxu0 %v1761
    %v1763 = vand.u32 %v962, 4294901760
    %1764 = vmatmul.f32.gmra.mxu0 %v1763
    %v1765 = vpop.f32.mrf.mxu0
    %v1766 = vadd.f32 %v1740, %v1765
    %1767 = vdwg.mxu0
    %1768 = vmatpush.msra.mxu0 0.0
    %1769 = vmatpush.msra.mxu0 0.0
    %1770 = vmatpush.msra.mxu0 0.0
    %1771 = vmatpush.msra.mxu0 0.0
    %1772 = vmatpush.msra.mxu0 0.0
    %1773 = vmatpush.msra.mxu0 0.0
    %1774 = vmatpush.msra.mxu0 0.0
    %1775 = vmatpush.msra.mxu0 0.0
    %1776 = vmatpush.msra.mxu0 0.0
    %1777 = vmatpush.msra.mxu0 0.0
    %1778 = vmatpush.msra.mxu0 0.0
    %v1779 = vand.u32 %v972, 4294901760
    %1780 = vmatpush.msra.mxu0 %v1779
    %v1781 = vand.u32 %v928, 4294901760
    %1782 = vmatpush.msra.mxu0 %v1781
    %v1783 = vand.u32 %v922, 4294901760
    %1784 = vmatpush.msra.mxu0 %v1783
    %v1785 = vand.u32 %v916, 4294901760
    %1786 = vmatpush.msra.mxu0 %v1785
    %v1787 = vand.u32 %v910, 4294901760
    %1788 = vmatpush.msra.mxu0 %v1787
    %v1789 = vand.u32 %v962, 4294901760
    %v1790 = vsub.f32 %v962, %v1789
    %v1791 = vand.u32 %v1790, 4294901760
    %v1792 = vsub.f32 %v1790, %v1791
    %v1793 = vand.u32 %v1792, 4294901760
    %1794 = vmatmul.f32.gmra.mxu0 %v1793
    %v1795 = vpop.f32.mrf.mxu0
    %v1796 = vadd.f32 %v805, %v1795
    %1797 = vdwg.mxu0
    %1798 = vmatpush.msra.mxu0 0.0
    %1799 = vmatpush.msra.mxu0 0.0
    %1800 = vmatpush.msra.mxu0 0.0
    %1801 = vmatpush.msra.mxu0 0.0
    %1802 = vmatpush.msra.mxu0 0.0
    %1803 = vmatpush.msra.mxu0 0.0
    %1804 = vmatpush.msra.mxu0 0.0
    %1805 = vmatpush.msra.mxu0 0.0
    %1806 = vmatpush.msra.mxu0 0.0
    %1807 = vmatpush.msra.mxu0 0.0
    %1808 = vmatpush.msra.mxu0 0.0
    %v1809 = vand.u32 %v972, 4294901760
    %v1810 = vsub.f32 %v972, %v1809
    %v1811 = vand.u32 %v1810, 4294901760
    %v1812 = vsub.f32 %v1810, %v1811
    %v1813 = vand.u32 %v1812, 4294901760
    %1814 = vmatpush.msra.mxu0 %v1813
    %v1815 = vand.u32 %v928, 4294901760
    %v1816 = vsub.f32 %v928, %v1815
    %v1817 = vand.u32 %v1816, 4294901760
    %v1818 = vsub.f32 %v1816, %v1817
    %v1819 = vand.u32 %v1818, 4294901760
    %1820 = vmatpush.msra.mxu0 %v1819
    %v1821 = vand.u32 %v922, 4294901760
    %v1822 = vsub.f32 %v922, %v1821
    %v1823 = vand.u32 %v1822, 4294901760
    %v1824 = vsub.f32 %v1822, %v1823
    %v1825 = vand.u32 %v1824, 4294901760
    %1826 = vmatpush.msra.mxu0 %v1825
    %v1827 = vand.u32 %v916, 4294901760
    %v1828 = vsub.f32 %v916, %v1827
    %v1829 = vand.u32 %v1828, 4294901760
    %v1830 = vsub.f32 %v1828, %v1829
    %v1831 = vand.u32 %v1830, 4294901760
    %1832 = vmatpush.msra.mxu0 %v1831
    %v1833 = vand.u32 %v910, 4294901760
    %v1834 = vsub.f32 %v910, %v1833
    %v1835 = vand.u32 %v1834, 4294901760
    %v1836 = vsub.f32 %v1834, %v1835
    %v1837 = vand.u32 %v1836, 4294901760
    %1838 = vmatpush.msra.mxu0 %v1837
    %v1839 = vand.u32 %v962, 4294901760
    %1840 = vmatmul.f32.gmra.mxu0 %v1839
    %v1841 = vpop.f32.mrf.mxu0
    %v1842 = vadd.f32 %v1796, %v1841
    %1843 = vdwg.mxu0
    %1844 = vmatpush.msra.mxu0 0.0
    %1845 = vmatpush.msra.mxu0 0.0
    %1846 = vmatpush.msra.mxu0 0.0
    %1847 = vmatpush.msra.mxu0 0.0
    %1848 = vmatpush.msra.mxu0 0.0
    %1849 = vmatpush.msra.mxu0 0.0
    %1850 = vmatpush.msra.mxu0 0.0
    %1851 = vmatpush.msra.mxu0 0.0
    %1852 = vmatpush.msra.mxu0 0.0
    %1853 = vmatpush.msra.mxu0 0.0
    %1854 = vmatpush.msra.mxu0 0.0
    %v1855 = vand.u32 %v972, 4294901760
    %v1856 = vsub.f32 %v972, %v1855
    %1857 = vmatpush.msra.mxu0 %v1856
    %v1858 = vand.u32 %v928, 4294901760
    %v1859 = vsub.f32 %v928, %v1858
    %1860 = vmatpush.msra.mxu0 %v1859
    %v1861 = vand.u32 %v922, 4294901760
    %v1862 = vsub.f32 %v922, %v1861
    %1863 = vmatpush.msra.mxu0 %v1862
    %v1864 = vand.u32 %v916, 4294901760
    %v1865 = vsub.f32 %v916, %v1864
    %1866 = vmatpush.msra.mxu0 %v1865
    %v1867 = vand.u32 %v910, 4294901760
    %v1868 = vsub.f32 %v910, %v1867
    %1869 = vmatpush.msra.mxu0 %v1868
    %v1870 = vand.u32 %v962, 4294901760
    %v1871 = vsub.f32 %v962, %v1870
    %1872 = vmatmul.f32.gmra.mxu0 %v1871
    %v1873 = vpop.f32.mrf.mxu0
    %v1874 = vadd.f32 %v1842, %v1873
    %1875 = vdwg.mxu0
    %1876 = vmatpush.msra.mxu0 0.0
    %1877 = vmatpush.msra.mxu0 0.0
    %1878 = vmatpush.msra.mxu0 0.0
    %1879 = vmatpush.msra.mxu0 0.0
    %1880 = vmatpush.msra.mxu0 0.0
    %1881 = vmatpush.msra.mxu0 0.0
    %1882 = vmatpush.msra.mxu0 0.0
    %1883 = vmatpush.msra.mxu0 0.0
    %1884 = vmatpush.msra.mxu0 0.0
    %1885 = vmatpush.msra.mxu0 0.0
    %1886 = vmatpush.msra.mxu0 0.0
    %v1887 = vand.u32 %v972, 4294901760
    %1888 = vmatpush.msra.mxu0 %v1887
    %v1889 = vand.u32 %v928, 4294901760
    %1890 = vmatpush.msra.mxu0 %v1889
    %v1891 = vand.u32 %v922, 4294901760
    %1892 = vmatpush.msra.mxu0 %v1891
    %v1893 = vand.u32 %v916, 4294901760
    %1894 = vmatpush.msra.mxu0 %v1893
    %v1895 = vand.u32 %v910, 4294901760
    %1896 = vmatpush.msra.mxu0 %v1895
    %v1897 = vand.u32 %v962, 4294901760
    %v1898 = vsub.f32 %v962, %v1897
    %v1899 = vand.u32 %v1898, 4294901760
    %1900 = vmatmul.f32.gmra.mxu0 %v1899
    %v1901 = vpop.f32.mrf.mxu0
    %v1902 = vadd.f32 %v1874, %v1901
    %1903 = vdwg.mxu0
    %1904 = vmatpush.msra.mxu0 0.0
    %1905 = vmatpush.msra.mxu0 0.0
    %1906 = vmatpush.msra.mxu0 0.0
    %1907 = vmatpush.msra.mxu0 0.0
    %1908 = vmatpush.msra.mxu0 0.0
    %1909 = vmatpush.msra.mxu0 0.0
    %1910 = vmatpush.msra.mxu0 0.0
    %1911 = vmatpush.msra.mxu0 0.0
    %1912 = vmatpush.msra.mxu0 0.0
    %1913 = vmatpush.msra.mxu0 0.0
    %1914 = vmatpush.msra.mxu0 0.0
    %v1915 = vand.u32 %v972, 4294901760
    %v1916 = vsub.f32 %v972, %v1915
    %v1917 = vand.u32 %v1916, 4294901760
    %1918 = vmatpush.msra.mxu0 %v1917
    %v1919 = vand.u32 %v928, 4294901760
    %v1920 = vsub.f32 %v928, %v1919
    %v1921 = vand.u32 %v1920, 4294901760
    %1922 = vmatpush.msra.mxu0 %v1921
    %v1923 = vand.u32 %v922, 4294901760
    %v1924 = vsub.f32 %v922, %v1923
    %v1925 = vand.u32 %v1924, 4294901760
    %1926 = vmatpush.msra.mxu0 %v1925
    %v1927 = vand.u32 %v916, 4294901760
    %v1928 = vsub.f32 %v916, %v1927
    %v1929 = vand.u32 %v1928, 4294901760
    %1930 = vmatpush.msra.mxu0 %v1929
    %v1931 = vand.u32 %v910, 4294901760
    %v1932 = vsub.f32 %v910, %v1931
    %v1933 = vand.u32 %v1932, 4294901760
    %1934 = vmatpush.msra.mxu0 %v1933
    %v1935 = vand.u32 %v962, 4294901760
    %1936 = vmatmul.f32.gmra.mxu0 %v1935
    %v1937 = vpop.f32.mrf.mxu0
    %v1938 = vadd.f32 %v1902, %v1937
    %1939 = vdwg.mxu0
    %1940 = vmatpush.msra.mxu0 0.0
    %1941 = vmatpush.msra.mxu0 0.0
    %1942 = vmatpush.msra.mxu0 0.0
    %1943 = vmatpush.msra.mxu0 0.0
    %1944 = vmatpush.msra.mxu0 0.0
    %1945 = vmatpush.msra.mxu0 0.0
    %1946 = vmatpush.msra.mxu0 0.0
    %1947 = vmatpush.msra.mxu0 0.0
    %1948 = vmatpush.msra.mxu0 0.0
    %1949 = vmatpush.msra.mxu0 0.0
    %1950 = vmatpush.msra.mxu0 0.0
    %v1951 = vand.u32 %v972, 4294901760
    %1952 = vmatpush.msra.mxu0 %v1951
    %v1953 = vand.u32 %v928, 4294901760
    %1954 = vmatpush.msra.mxu0 %v1953
    %v1955 = vand.u32 %v922, 4294901760
    %1956 = vmatpush.msra.mxu0 %v1955
    %v1957 = vand.u32 %v916, 4294901760
    %1958 = vmatpush.msra.mxu0 %v1957
    %v1959 = vand.u32 %v910, 4294901760
    %1960 = vmatpush.msra.mxu0 %v1959
    %v1961 = vand.u32 %v962, 4294901760
    %1962 = vmatmul.f32.gmra.mxu0 %v1961
    %v1963 = vpop.f32.mrf.mxu0
    %v1964 = vadd.f32 %v1938, %v1963
    %1965 = vdwg.mxu0
    %1966 = vmatpush.msra.mxu0 0.0
    %1967 = vmatpush.msra.mxu0 0.0
    %1968 = vmatpush.msra.mxu0 0.0
    %1969 = vmatpush.msra.mxu0 0.0
    %1970 = vmatpush.msra.mxu0 0.0
    %1971 = vmatpush.msra.mxu0 0.0
    %1972 = vmatpush.msra.mxu0 0.0
    %1973 = vmatpush.msra.mxu0 0.0
    %1974 = vmatpush.msra.mxu0 0.0
    %1975 = vmatpush.msra.mxu0 0.0
    %1976 = vmatpush.msra.mxu0 0.0
    %v1977 = vand.u32 %v974, 4294901760
    %1978 = vmatpush.msra.mxu0 %v1977
    %v1979 = vand.u32 %v929, 4294901760
    %1980 = vmatpush.msra.mxu0 %v1979
    %v1981 = vand.u32 %v923, 4294901760
    %1982 = vmatpush.msra.mxu0 %v1981
    %v1983 = vand.u32 %v917, 4294901760
    %1984 = vmatpush.msra.mxu0 %v1983
    %v1985 = vand.u32 %v911, 4294901760
    %1986 = vmatpush.msra.mxu0 %v1985
    %v1987 = vand.u32 %v962, 4294901760
    %v1988 = vsub.f32 %v962, %v1987
    %v1989 = vand.u32 %v1988, 4294901760
    %v1990 = vsub.f32 %v1988, %v1989
    %v1991 = vand.u32 %v1990, 4294901760
    %1992 = vmatmul.f32.gmra.mxu0 %v1991
    %v1993 = vpop.f32.mrf.mxu0
    %v1994 = vadd.f32 %v805, %v1993
    %1995 = vdwg.mxu0
    %1996 = vmatpush.msra.mxu0 0.0
    %1997 = vmatpush.msra.mxu0 0.0
    %1998 = vmatpush.msra.mxu0 0.0
    %1999 = vmatpush.msra.mxu0 0.0
    %2000 = vmatpush.msra.mxu0 0.0
    %2001 = vmatpush.msra.mxu0 0.0
    %2002 = vmatpush.msra.mxu0 0.0
    %2003 = vmatpush.msra.mxu0 0.0
    %2004 = vmatpush.msra.mxu0 0.0
    %2005 = vmatpush.msra.mxu0 0.0
    %2006 = vmatpush.msra.mxu0 0.0
    %v2007 = vand.u32 %v974, 4294901760
    %v2008 = vsub.f32 %v974, %v2007
    %v2009 = vand.u32 %v2008, 4294901760
    %v2010 = vsub.f32 %v2008, %v2009
    %v2011 = vand.u32 %v2010, 4294901760
    %2012 = vmatpush.msra.mxu0 %v2011
    %v2013 = vand.u32 %v929, 4294901760
    %v2014 = vsub.f32 %v929, %v2013
    %v2015 = vand.u32 %v2014, 4294901760
    %v2016 = vsub.f32 %v2014, %v2015
    %v2017 = vand.u32 %v2016, 4294901760
    %2018 = vmatpush.msra.mxu0 %v2017
    %v2019 = vand.u32 %v923, 4294901760
    %v2020 = vsub.f32 %v923, %v2019
    %v2021 = vand.u32 %v2020, 4294901760
    %v2022 = vsub.f32 %v2020, %v2021
    %v2023 = vand.u32 %v2022, 4294901760
    %2024 = vmatpush.msra.mxu0 %v2023
    %v2025 = vand.u32 %v917, 4294901760
    %v2026 = vsub.f32 %v917, %v2025
    %v2027 = vand.u32 %v2026, 4294901760
    %v2028 = vsub.f32 %v2026, %v2027
    %v2029 = vand.u32 %v2028, 4294901760
    %2030 = vmatpush.msra.mxu0 %v2029
    %v2031 = vand.u32 %v911, 4294901760
    %v2032 = vsub.f32 %v911, %v2031
    %v2033 = vand.u32 %v2032, 4294901760
    %v2034 = vsub.f32 %v2032, %v2033
    %v2035 = vand.u32 %v2034, 4294901760
    %2036 = vmatpush.msra.mxu0 %v2035
    %v2037 = vand.u32 %v962, 4294901760
    %2038 = vmatmul.f32.gmra.mxu0 %v2037
    %v2039 = vpop.f32.mrf.mxu0
    %v2040 = vadd.f32 %v1994, %v2039
    %2041 = vdwg.mxu0
    %2042 = vmatpush.msra.mxu0 0.0
    %2043 = vmatpush.msra.mxu0 0.0
    %2044 = vmatpush.msra.mxu0 0.0
    %2045 = vmatpush.msra.mxu0 0.0
    %2046 = vmatpush.msra.mxu0 0.0
    %2047 = vmatpush.msra.mxu0 0.0
    %2048 = vmatpush.msra.mxu0 0.0
    %2049 = vmatpush.msra.mxu0 0.0
    %2050 = vmatpush.msra.mxu0 0.0
    %2051 = vmatpush.msra.mxu0 0.0
    %2052 = vmatpush.msra.mxu0 0.0
    %v2053 = vand.u32 %v974, 4294901760
    %v2054 = vsub.f32 %v974, %v2053
    %2055 = vmatpush.msra.mxu0 %v2054
    %v2056 = vand.u32 %v929, 4294901760
    %v2057 = vsub.f32 %v929, %v2056
    %2058 = vmatpush.msra.mxu0 %v2057
    %v2059 = vand.u32 %v923, 4294901760
    %v2060 = vsub.f32 %v923, %v2059
    %2061 = vmatpush.msra.mxu0 %v2060
    %v2062 = vand.u32 %v917, 4294901760
    %v2063 = vsub.f32 %v917, %v2062
    %2064 = vmatpush.msra.mxu0 %v2063
    %v2065 = vand.u32 %v911, 4294901760
    %v2066 = vsub.f32 %v911, %v2065
    %2067 = vmatpush.msra.mxu0 %v2066
    %v2068 = vand.u32 %v962, 4294901760
    %v2069 = vsub.f32 %v962, %v2068
    %2070 = vmatmul.f32.gmra.mxu0 %v2069
    %v2071 = vpop.f32.mrf.mxu0
    %v2072 = vadd.f32 %v2040, %v2071
    %2073 = vdwg.mxu0
    %2074 = vmatpush.msra.mxu0 0.0
    %2075 = vmatpush.msra.mxu0 0.0
    %2076 = vmatpush.msra.mxu0 0.0
    %2077 = vmatpush.msra.mxu0 0.0
    %2078 = vmatpush.msra.mxu0 0.0
    %2079 = vmatpush.msra.mxu0 0.0
    %2080 = vmatpush.msra.mxu0 0.0
    %2081 = vmatpush.msra.mxu0 0.0
    %2082 = vmatpush.msra.mxu0 0.0
    %2083 = vmatpush.msra.mxu0 0.0
    %2084 = vmatpush.msra.mxu0 0.0
    %v2085 = vand.u32 %v974, 4294901760
    %2086 = vmatpush.msra.mxu0 %v2085
    %v2087 = vand.u32 %v929, 4294901760
    %2088 = vmatpush.msra.mxu0 %v2087
    %v2089 = vand.u32 %v923, 4294901760
    %2090 = vmatpush.msra.mxu0 %v2089
    %v2091 = vand.u32 %v917, 4294901760
    %2092 = vmatpush.msra.mxu0 %v2091
    %v2093 = vand.u32 %v911, 4294901760
    %2094 = vmatpush.msra.mxu0 %v2093
    %v2095 = vand.u32 %v962, 4294901760
    %v2096 = vsub.f32 %v962, %v2095
    %v2097 = vand.u32 %v2096, 4294901760
    %2098 = vmatmul.f32.gmra.mxu0 %v2097
    %v2099 = vpop.f32.mrf.mxu0
    %v2100 = vadd.f32 %v2072, %v2099
    %2101 = vdwg.mxu0
    %2102 = vmatpush.msra.mxu0 0.0
    %2103 = vmatpush.msra.mxu0 0.0
    %2104 = vmatpush.msra.mxu0 0.0
    %2105 = vmatpush.msra.mxu0 0.0
    %2106 = vmatpush.msra.mxu0 0.0
    %2107 = vmatpush.msra.mxu0 0.0
    %2108 = vmatpush.msra.mxu0 0.0
    %2109 = vmatpush.msra.mxu0 0.0
    %2110 = vmatpush.msra.mxu0 0.0
    %2111 = vmatpush.msra.mxu0 0.0
    %2112 = vmatpush.msra.mxu0 0.0
    %v2113 = vand.u32 %v974, 4294901760
    %v2114 = vsub.f32 %v974, %v2113
    %v2115 = vand.u32 %v2114, 4294901760
    %2116 = vmatpush.msra.mxu0 %v2115
    %v2117 = vand.u32 %v929, 4294901760
    %v2118 = vsub.f32 %v929, %v2117
    %v2119 = vand.u32 %v2118, 4294901760
    %2120 = vmatpush.msra.mxu0 %v2119
    %v2121 = vand.u32 %v923, 4294901760
    %v2122 = vsub.f32 %v923, %v2121
    %v2123 = vand.u32 %v2122, 4294901760
    %2124 = vmatpush.msra.mxu0 %v2123
    %v2125 = vand.u32 %v917, 4294901760
    %v2126 = vsub.f32 %v917, %v2125
    %v2127 = vand.u32 %v2126, 4294901760
    %2128 = vmatpush.msra.mxu0 %v2127
    %v2129 = vand.u32 %v911, 4294901760
    %v2130 = vsub.f32 %v911, %v2129
    %v2131 = vand.u32 %v2130, 4294901760
    %2132 = vmatpush.msra.mxu0 %v2131
    %v2133 = vand.u32 %v962, 4294901760
    %2134 = vmatmul.f32.gmra.mxu0 %v2133
    %v2135 = vpop.f32.mrf.mxu0
    %v2136 = vadd.f32 %v2100, %v2135
    %2137 = vdwg.mxu0
    %2138 = vmatpush.msra.mxu0 0.0
    %2139 = vmatpush.msra.mxu0 0.0
    %2140 = vmatpush.msra.mxu0 0.0
    %2141 = vmatpush.msra.mxu0 0.0
    %2142 = vmatpush.msra.mxu0 0.0
    %2143 = vmatpush.msra.mxu0 0.0
    %2144 = vmatpush.msra.mxu0 0.0
    %2145 = vmatpush.msra.mxu0 0.0
    %2146 = vmatpush.msra.mxu0 0.0
    %2147 = vmatpush.msra.mxu0 0.0
    %2148 = vmatpush.msra.mxu0 0.0
    %v2149 = vand.u32 %v974, 4294901760
    %2150 = vmatpush.msra.mxu0 %v2149
    %v2151 = vand.u32 %v929, 4294901760
    %2152 = vmatpush.msra.mxu0 %v2151
    %v2153 = vand.u32 %v923, 4294901760
    %2154 = vmatpush.msra.mxu0 %v2153
    %v2155 = vand.u32 %v917, 4294901760
    %2156 = vmatpush.msra.mxu0 %v2155
    %v2157 = vand.u32 %v911, 4294901760
    %2158 = vmatpush.msra.mxu0 %v2157
    %v2159 = vand.u32 %v962, 4294901760
    %2160 = vmatmul.f32.gmra.mxu0 %v2159
    %v2161 = vpop.f32.mrf.mxu0
    %v2162 = vadd.f32 %v2136, %v2161
    %2163 = vdwg.mxu0
    %v2164 = vmax.f32 %v1172, 0.0
    %v2165 = vmax.f32 %v1370, 0.0
    %v2166 = vmax.f32 %v1568, 0.0
    %v2167 = vmax.f32 %v1766, 0.0
    %v2168 = vmax.f32 %v1964, 0.0
    %v2169 = vmax.f32 %v2162, 0.0
    %v2170 = vsel %vm389, 1, 0
    %v2171 = vsel %vm390, 1, 0
    %v2172 = vsel %vm391, 1, 0
    %v2173 = vsel %vm392, 1, 0
    %v2174 = vsel %vm393, 1, 0
    %v2175 = vsel %vm394, 1, 0
    %vm2176 = vcmp.eq.s32.totalorder %v2170, 1
    %vm2177 = vcmp.eq.s32.totalorder %v2171, 1
    %vm2178 = vcmp.eq.s32.totalorder %v2172, 1
    %vm2179 = vcmp.eq.s32.totalorder %v2173, 1
    %vm2180 = vcmp.eq.s32.totalorder %v2174, 1
    %vm2181 = vcmp.eq.s32.totalorder %v2175, 1
    %v2182 = vsel %vm2176, %v2164, 0.0
    %v2183 = vsel %vm2177, %v2165, 0.0
    %v2184 = vsel %vm2178, %v2166, 0.0
    %v2185 = vsel %vm2179, %v2167, 0.0
    %v2186 = vsel %vm2180, %v2168, 0.0
    %v2187 = vsel %vm2181, %v2169, 0.0
    %v2194 = vrot.slane %v2183, 4
    %v2195 = vrot.slane %v2185, 4
    %v2196 = vrot.slane %v2187, 4
    %v2197 = vsel %vm771, %v2182, %v2194
    %v2198 = vsel %vm771, %v2184, %v2195
    %v2199 = vsel %vm771, %v2186, %v2196
    %2203 = vst [vmem:[#allocation2 + $0x4] sm:$0xff] %v2197
    %2204 = vst [vmem:[#allocation2 + $0xc] sm:$0xff] %v2198
    %2205 = vst [vmem:[#allocation2 + $0x14] sm:$0xff] %v2199
    %v2206 = vld [vmem:[#allocation2] sm:$0xff]
    %v2207 = vld [vmem:[#allocation2 + $0x8] sm:$0xff]
    %v2208 = vld [vmem:[#allocation2 + $0x10] sm:$0xff]
    %v2209 = vld [vmem:[#allocation2 + $0x18] sm:$0xf]
    %v2210 = vld [vmem:[#allocation2 + $0x4] sm:$0xff]
    %v2211 = vld [vmem:[#allocation2 + $0xc] sm:$0xff]
    %v2212 = vld [vmem:[#allocation2 + $0x14] sm:$0xff]
    %v2213 = vld [vmem:[#allocation2 + $0x4] sm:$0xff]
    %v2214 = vld [vmem:[#allocation2 + $0xc] sm:$0xff]
    %v2215 = vld [vmem:[#allocation2 + $0x14] sm:$0xff]
    %v2216 = vld [vmem:[#allocation2 + $0x1c] sm:$0xf]
    %2221 = vst [vmem:[#allocation1] ss:$2 sm:$0xff] %v2206
    %s2222 = scalar_lea.vmem [#allocation1], 16
    %2223 = vst [vmem:[%s2222] ss:$2 sm:$0xff] %v2207
    %s2224 = scalar_lea.vmem [#allocation1], 32
    %2225 = vst [vmem:[%s2224] ss:$2 sm:$0xff] %v2208
    %s2226 = scalar_lea.vmem [#allocation1], 48
    %2227 = vst [vmem:[%s2226] ss:$2 sm:$0xff] %v2209
    %v2228 = vld.sshfl [vmem:[#allocation1] sm:$0xff pattern:$0x75316420]
    %v2229 = vld.sshfl [vmem:[#allocation1 + $0x8] sm:$0xff pattern:$0x75316420]
    %v2230 = vld.sshfl [vmem:[#allocation1 + $0x10] sm:$0xff pattern:$0x75316420]
    %v2231 = vld.sshfl [vmem:[#allocation1 + $0x18] sm:$0xff pattern:$0x75316420]
    %v2232 = vld.sshfl [vmem:[#allocation1 + $0x20] sm:$0xff pattern:$0x75316420]
    %v2233 = vld.sshfl [vmem:[#allocation1 + $0x28] sm:$0xff pattern:$0x75316420]
    %v2234 = vld.sshfl [vmem:[#allocation1 + $0x30] sm:$0xff pattern:$0x75316420]
    %s2242 = scalar_lea.vmem [#allocation1], 1
    %2243 = vst [vmem:[%s2242] ss:$2 sm:$0xff] %v2206
    %s2244 = scalar_lea.vmem [#allocation1], 17
    %2245 = vst [vmem:[%s2244] ss:$2 sm:$0xff] %v2207
    %s2246 = scalar_lea.vmem [#allocation1], 33
    %2247 = vst [vmem:[%s2246] ss:$2 sm:$0xff] %v2208
    %s2248 = scalar_lea.vmem [#allocation1], 49
    %2249 = vst [vmem:[%s2248] ss:$2 sm:$0xff] %v2209
    %v2250 = vld.sshfl [vmem:[#allocation1] sm:$0xff pattern:$0x75316420]
    %v2251 = vld.sshfl [vmem:[#allocation1 + $0x8] sm:$0xff pattern:$0x75316420]
    %v2252 = vld.sshfl [vmem:[#allocation1 + $0x10] sm:$0xff pattern:$0x75316420]
    %v2253 = vld.sshfl [vmem:[#allocation1 + $0x18] sm:$0xff pattern:$0x75316420]
    %v2254 = vld.sshfl [vmem:[#allocation1 + $0x20] sm:$0xff pattern:$0x75316420]
    %v2255 = vld.sshfl [vmem:[#allocation1 + $0x28] sm:$0xff pattern:$0x75316420]
    %v2256 = vld.sshfl [vmem:[#allocation1 + $0x30] sm:$0xff pattern:$0x75316420]
    %2257 = vrot.lane.b32.xlu0 %v2250, 127
    %v2258 = vpop.permute.xlu0 %2257
    %2259 = vrot.lane.b32.xlu0 %v2251, 127
    %v2260 = vpop.permute.xlu0 %2259
    %2261 = vrot.lane.b32.xlu0 %v2252, 127
    %v2262 = vpop.permute.xlu0 %2261
    %2263 = vrot.lane.b32.xlu0 %v2253, 127
    %v2264 = vpop.permute.xlu0 %2263
    %2265 = vrot.lane.b32.xlu0 %v2254, 127
    %v2266 = vpop.permute.xlu0 %2265
    %2267 = vrot.lane.b32.xlu0 %v2255, 127
    %v2268 = vpop.permute.xlu0 %2267
    %2269 = vrot.lane.b32.xlu0 %v2256, 127
    %v2270 = vpop.permute.xlu0 %2269
    %v2271 = vsel %vm466, %v2258, %v2260
    %v2272 = vsel %vm466, %v2260, %v2262
    %v2273 = vsel %vm466, %v2262, %v2264
    %v2274 = vsel %vm466, %v2264, %v2266
    %v2275 = vsel %vm466, %v2266, %v2268
    %v2276 = vsel %vm466, %v2268, %v2270
    %2284 = vst [vmem:[#allocation1] ss:$2 sm:$0xff] %v2206
    %s2285 = scalar_lea.vmem [#allocation1], 16
    %2286 = vst [vmem:[%s2285] ss:$2 sm:$0xff] %v2207
    %s2287 = scalar_lea.vmem [#allocation1], 32
    %2288 = vst [vmem:[%s2287] ss:$2 sm:$0xff] %v2208
    %s2289 = scalar_lea.vmem [#allocation1], 48
    %2290 = vst [vmem:[%s2289] ss:$2 sm:$0xff] %v2209
    %v2291 = vld.sshfl [vmem:[#allocation1] sm:$0xff pattern:$0x75316420]
    %v2292 = vld.sshfl [vmem:[#allocation1 + $0x8] sm:$0xff pattern:$0x75316420]
    %v2293 = vld.sshfl [vmem:[#allocation1 + $0x10] sm:$0xff pattern:$0x75316420]
    %v2294 = vld.sshfl [vmem:[#allocation1 + $0x18] sm:$0xff pattern:$0x75316420]
    %v2295 = vld.sshfl [vmem:[#allocation1 + $0x20] sm:$0xff pattern:$0x75316420]
    %v2296 = vld.sshfl [vmem:[#allocation1 + $0x28] sm:$0xff pattern:$0x75316420]
    %v2297 = vld.sshfl [vmem:[#allocation1 + $0x30] sm:$0xff pattern:$0x75316420]
    %2298 = vrot.lane.b32.xlu0 %v2291, 126
    %v2299 = vpop.permute.xlu0 %2298
    %2300 = vrot.lane.b32.xlu0 %v2292, 126
    %v2301 = vpop.permute.xlu0 %2300
    %2302 = vrot.lane.b32.xlu0 %v2293, 126
    %v2303 = vpop.permute.xlu0 %2302
    %2304 = vrot.lane.b32.xlu0 %v2294, 126
    %v2305 = vpop.permute.xlu0 %2304
    %2306 = vrot.lane.b32.xlu0 %v2295, 126
    %v2307 = vpop.permute.xlu0 %2306
    %2308 = vrot.lane.b32.xlu0 %v2296, 126
    %v2309 = vpop.permute.xlu0 %2308
    %2310 = vrot.lane.b32.xlu0 %v2297, 126
    %v2311 = vpop.permute.xlu0 %2310
    %v2312 = vsel %vm508, %v2299, %v2301
    %v2313 = vsel %vm508, %v2301, %v2303
    %v2314 = vsel %vm508, %v2303, %v2305
    %v2315 = vsel %vm508, %v2305, %v2307
    %v2316 = vsel %vm508, %v2307, %v2309
    %v2317 = vsel %vm508, %v2309, %v2311
    %s2325 = scalar_lea.vmem [#allocation1], 1
    %2326 = vst [vmem:[%s2325] ss:$2 sm:$0xff] %v2206
    %s2327 = scalar_lea.vmem [#allocation1], 17
    %2328 = vst [vmem:[%s2327] ss:$2 sm:$0xff] %v2207
    %s2329 = scalar_lea.vmem [#allocation1], 33
    %2330 = vst [vmem:[%s2329] ss:$2 sm:$0xff] %v2208
    %s2331 = scalar_lea.vmem [#allocation1], 49
    %2332 = vst [vmem:[%s2331] ss:$2 sm:$0xff] %v2209
    %v2333 = vld.sshfl [vmem:[#allocation1] sm:$0xff pattern:$0x75316420]
    %v2334 = vld.sshfl [vmem:[#allocation1 + $0x8] sm:$0xff pattern:$0x75316420]
    %v2335 = vld.sshfl [vmem:[#allocation1 + $0x10] sm:$0xff pattern:$0x75316420]
    %v2336 = vld.sshfl [vmem:[#allocation1 + $0x18] sm:$0xff pattern:$0x75316420]
    %v2337 = vld.sshfl [vmem:[#allocation1 + $0x20] sm:$0xff pattern:$0x75316420]
    %v2338 = vld.sshfl [vmem:[#allocation1 + $0x28] sm:$0xff pattern:$0x75316420]
    %v2339 = vld.sshfl [vmem:[#allocation1 + $0x30] sm:$0xff pattern:$0x75316420]
    %2340 = vrot.lane.b32.xlu0 %v2333, 110
    %v2341 = vpop.permute.xlu0 %2340
    %2342 = vrot.lane.b32.xlu0 %v2334, 110
    %v2343 = vpop.permute.xlu0 %2342
    %2344 = vrot.lane.b32.xlu0 %v2335, 110
    %v2345 = vpop.permute.xlu0 %2344
    %2346 = vrot.lane.b32.xlu0 %v2336, 110
    %v2347 = vpop.permute.xlu0 %2346
    %2348 = vrot.lane.b32.xlu0 %v2337, 110
    %v2349 = vpop.permute.xlu0 %2348
    %2350 = vrot.lane.b32.xlu0 %v2338, 110
    %v2351 = vpop.permute.xlu0 %2350
    %2352 = vrot.lane.b32.xlu0 %v2339, 110
    %v2353 = vpop.permute.xlu0 %2352
    %v2354 = vsel %vm551, %v2341, %v2343
    %v2355 = vsel %vm551, %v2343, %v2345
    %v2356 = vsel %vm551, %v2345, %v2347
    %v2357 = vsel %vm551, %v2347, %v2349
    %v2358 = vsel %vm551, %v2349, %v2351
    %v2359 = vsel %vm551, %v2351, %v2353
    %2370 = vst [vmem:[#allocation1] ss:$2 sm:$0xff] %v2210
    %s2371 = scalar_lea.vmem [#allocation1], 16
    %2372 = vst [vmem:[%s2371] ss:$2 sm:$0xff] %v2211
    %s2373 = scalar_lea.vmem [#allocation1], 32
    %2374 = vst [vmem:[%s2373] ss:$2 sm:$0xff] %v2212
    %v2375 = vld.sshfl [vmem:[#allocation1] sm:$0xff pattern:$0x75316420]
    %v2376 = vld.sshfl [vmem:[#allocation1 + $0x8] sm:$0xff pattern:$0x75316420]
    %v2377 = vld.sshfl [vmem:[#allocation1 + $0x10] sm:$0xff pattern:$0x75316420]
    %v2378 = vld.sshfl [vmem:[#allocation1 + $0x18] sm:$0xff pattern:$0x75316420]
    %v2379 = vld.sshfl [vmem:[#allocation1 + $0x20] sm:$0xff pattern:$0x75316420]
    %v2380 = vld.sshfl [vmem:[#allocation1 + $0x28] sm:$0xff pattern:$0x75316420]
    %2381 = vrot.lane.b32.xlu0 %v2375, 109
    %v2382 = vpop.permute.xlu0 %2381
    %2383 = vrot.lane.b32.xlu0 %v2376, 109
    %v2384 = vpop.permute.xlu0 %2383
    %2385 = vrot.lane.b32.xlu0 %v2377, 109
    %v2386 = vpop.permute.xlu0 %2385
    %2387 = vrot.lane.b32.xlu0 %v2378, 109
    %v2388 = vpop.permute.xlu0 %2387
    %2389 = vrot.lane.b32.xlu0 %v2379, 109
    %v2390 = vpop.permute.xlu0 %2389
    %2391 = vrot.lane.b32.xlu0 %v2380, 109
    %v2392 = vpop.permute.xlu0 %2391
    %v2393 = vsel %vm591, %v2382, %v2384
    %v2394 = vsel %vm591, %v2384, %v2386
    %v2395 = vsel %vm591, %v2386, %v2388
    %v2396 = vsel %vm591, %v2388, %v2390
    %v2397 = vsel %vm591, %v2390, %v2392
    %s2409 = scalar_lea.vmem [#allocation1], 1
    %2410 = vst [vmem:[%s2409] ss:$2 sm:$0xff] %v2213
    %s2411 = scalar_lea.vmem [#allocation1], 17
    %2412 = vst [vmem:[%s2411] ss:$2 sm:$0xff] %v2214
    %s2413 = scalar_lea.vmem [#allocation1], 33
    %2414 = vst [vmem:[%s2413] ss:$2 sm:$0xff] %v2215
    %s2415 = scalar_lea.vmem [#allocation1], 49
    %2416 = vst [vmem:[%s2415] ss:$2 sm:$0xff] %v2216
    %v2417 = vld.sshfl [vmem:[#allocation1] sm:$0xff pattern:$0x75316420]
    %v2418 = vld.sshfl [vmem:[#allocation1 + $0x8] sm:$0xff pattern:$0x75316420]
    %v2419 = vld.sshfl [vmem:[#allocation1 + $0x10] sm:$0xff pattern:$0x75316420]
    %v2420 = vld.sshfl [vmem:[#allocation1 + $0x18] sm:$0xff pattern:$0x75316420]
    %v2421 = vld.sshfl [vmem:[#allocation1 + $0x20] sm:$0xff pattern:$0x75316420]
    %v2422 = vld.sshfl [vmem:[#allocation1 + $0x28] sm:$0xff pattern:$0x75316420]
    %v2423 = vld.sshfl [vmem:[#allocation1 + $0x30] sm:$0xff pattern:$0x75316420]
    %2424 = vrot.lane.b32.xlu0 %v2417, 108
    %v2425 = vpop.permute.xlu0 %2424
    %2426 = vrot.lane.b32.xlu0 %v2418, 108
    %v2427 = vpop.permute.xlu0 %2426
    %2428 = vrot.lane.b32.xlu0 %v2419, 108
    %v2429 = vpop.permute.xlu0 %2428
    %2430 = vrot.lane.b32.xlu0 %v2420, 108
    %v2431 = vpop.permute.xlu0 %2430
    %2432 = vrot.lane.b32.xlu0 %v2421, 108
    %v2433 = vpop.permute.xlu0 %2432
    %2434 = vrot.lane.b32.xlu0 %v2422, 108
    %v2435 = vpop.permute.xlu0 %2434
    %2436 = vrot.lane.b32.xlu0 %v2423, 108
    %v2437 = vpop.permute.xlu0 %2436
    %v2438 = vsel %vm637, %v2425, %v2427
    %v2439 = vsel %vm637, %v2427, %v2429
    %v2440 = vsel %vm637, %v2429, %v2431
    %v2441 = vsel %vm637, %v2431, %v2433
    %v2442 = vsel %vm637, %v2433, %v2435
    %v2443 = vsel %vm637, %v2435, %v2437
    %2451 = vst [vmem:[#allocation1] ss:$2 sm:$0xff] %v2213
    %s2452 = scalar_lea.vmem [#allocation1], 16
    %2453 = vst [vmem:[%s2452] ss:$2 sm:$0xff] %v2214
    %s2454 = scalar_lea.vmem [#allocation1], 32
    %2455 = vst [vmem:[%s2454] ss:$2 sm:$0xff] %v2215
    %s2456 = scalar_lea.vmem [#allocation1], 48
    %2457 = vst [vmem:[%s2456] ss:$2 sm:$0xff] %v2216
    %v2458 = vld.sshfl [vmem:[#allocation1] sm:$0xff pattern:$0x75316420]
    %v2459 = vld.sshfl [vmem:[#allocation1 + $0x8] sm:$0xff pattern:$0x75316420]
    %v2460 = vld.sshfl [vmem:[#allocation1 + $0x10] sm:$0xff pattern:$0x75316420]
    %v2461 = vld.sshfl [vmem:[#allocation1 + $0x18] sm:$0xff pattern:$0x75316420]
    %v2462 = vld.sshfl [vmem:[#allocation1 + $0x20] sm:$0xff pattern:$0x75316420]
    %v2463 = vld.sshfl [vmem:[#allocation1 + $0x28] sm:$0xff pattern:$0x75316420]
    %v2464 = vld.sshfl [vmem:[#allocation1 + $0x30] sm:$0xff pattern:$0x75316420]
    %2465 = vrot.lane.b32.xlu0 %v2458, 92
    %v2466 = vpop.permute.xlu0 %2465
    %2467 = vrot.lane.b32.xlu0 %v2459, 92
    %v2468 = vpop.permute.xlu0 %2467
    %2469 = vrot.lane.b32.xlu0 %v2460, 92
    %v2470 = vpop.permute.xlu0 %2469
    %2471 = vrot.lane.b32.xlu0 %v2461, 92
    %v2472 = vpop.permute.xlu0 %2471
    %2473 = vrot.lane.b32.xlu0 %v2462, 92
    %v2474 = vpop.permute.xlu0 %2473
    %2475 = vrot.lane.b32.xlu0 %v2463, 92
    %v2476 = vpop.permute.xlu0 %2475
    %2477 = vrot.lane.b32.xlu0 %v2464, 92
    %v2478 = vpop.permute.xlu0 %2477
    %v2479 = vsel %vm679, %v2466, %v2468
    %v2480 = vsel %vm679, %v2468, %v2470
    %v2481 = vsel %vm679, %v2470, %v2472
    %v2482 = vsel %vm679, %v2472, %v2474
    %v2483 = vsel %vm679, %v2474, %v2476
    %v2484 = vsel %vm679, %v2476, %v2478
    %s2492 = scalar_lea.vmem [#allocation1], 1
    %2493 = vst [vmem:[%s2492] ss:$2 sm:$0xff] %v2213
    %s2494 = scalar_lea.vmem [#allocation1], 17
    %2495 = vst [vmem:[%s2494] ss:$2 sm:$0xff] %v2214
    %s2496 = scalar_lea.vmem [#allocation1], 33
    %2497 = vst [vmem:[%s2496] ss:$2 sm:$0xff] %v2215
    %s2498 = scalar_lea.vmem [#allocation1], 49
    %2499 = vst [vmem:[%s2498] ss:$2 sm:$0xff] %v2216
    %v2500 = vld.sshfl [vmem:[#allocation1] sm:$0xff pattern:$0x75316420]
    %v2501 = vld.sshfl [vmem:[#allocation1 + $0x8] sm:$0xff pattern:$0x75316420]
    %v2502 = vld.sshfl [vmem:[#allocation1 + $0x10] sm:$0xff pattern:$0x75316420]
    %v2503 = vld.sshfl [vmem:[#allocation1 + $0x18] sm:$0xff pattern:$0x75316420]
    %v2504 = vld.sshfl [vmem:[#allocation1 + $0x20] sm:$0xff pattern:$0x75316420]
    %v2505 = vld.sshfl [vmem:[#allocation1 + $0x28] sm:$0xff pattern:$0x75316420]
    %v2506 = vld.sshfl [vmem:[#allocation1 + $0x30] sm:$0xff pattern:$0x75316420]
    %2507 = vrot.lane.b32.xlu0 %v2500, 91
    %v2508 = vpop.permute.xlu0 %2507
    %2509 = vrot.lane.b32.xlu0 %v2501, 91
    %v2510 = vpop.permute.xlu0 %2509
    %2511 = vrot.lane.b32.xlu0 %v2502, 91
    %v2512 = vpop.permute.xlu0 %2511
    %2513 = vrot.lane.b32.xlu0 %v2503, 91
    %v2514 = vpop.permute.xlu0 %2513
    %2515 = vrot.lane.b32.xlu0 %v2504, 91
    %v2516 = vpop.permute.xlu0 %2515
    %2517 = vrot.lane.b32.xlu0 %v2505, 91
    %v2518 = vpop.permute.xlu0 %2517
    %2519 = vrot.lane.b32.xlu0 %v2506, 91
    %v2520 = vpop.permute.xlu0 %2519
    %v2521 = vsel %vm722, %v2508, %v2510
    %v2522 = vsel %vm722, %v2510, %v2512
    %v2523 = vsel %vm722, %v2512, %v2514
    %v2524 = vsel %vm722, %v2514, %v2516
    %v2525 = vsel %vm722, %v2516, %v2518
    %v2526 = vsel %vm722, %v2518, %v2520
    %2534 = vst [vmem:[#allocation1] ss:$2 sm:$0xff] %v2213
    %s2535 = scalar_lea.vmem [#allocation1], 16
    %2536 = vst [vmem:[%s2535] ss:$2 sm:$0xff] %v2214
    %s2537 = scalar_lea.vmem [#allocation1], 32
    %2538 = vst [vmem:[%s2537] ss:$2 sm:$0xff] %v2215
    %s2539 = scalar_lea.vmem [#allocation1], 48
    %2540 = vst [vmem:[%s2539] ss:$2 sm:$0xff] %v2216
    %v2541 = vld.sshfl [vmem:[#allocation1] sm:$0xff pattern:$0x75316420]
    %v2542 = vld.sshfl [vmem:[#allocation1 + $0x8] sm:$0xff pattern:$0x75316420]
    %v2543 = vld.sshfl [vmem:[#allocation1 + $0x10] sm:$0xff pattern:$0x75316420]
    %v2544 = vld.sshfl [vmem:[#allocation1 + $0x18] sm:$0xff pattern:$0x75316420]
    %v2545 = vld.sshfl [vmem:[#allocation1 + $0x20] sm:$0xff pattern:$0x75316420]
    %v2546 = vld.sshfl [vmem:[#allocation1 + $0x28] sm:$0xff pattern:$0x75316420]
    %v2547 = vld.sshfl [vmem:[#allocation1 + $0x30] sm:$0xff pattern:$0x75316420]
    %2548 = vrot.lane.b32.xlu0 %v2541, 90
    %v2549 = vpop.permute.xlu0 %2548
    %2550 = vrot.lane.b32.xlu0 %v2542, 90
    %v2551 = vpop.permute.xlu0 %2550
    %2552 = vrot.lane.b32.xlu0 %v2543, 90
    %v2553 = vpop.permute.xlu0 %2552
    %2554 = vrot.lane.b32.xlu0 %v2544, 90
    %v2555 = vpop.permute.xlu0 %2554
    %2556 = vrot.lane.b32.xlu0 %v2545, 90
    %v2557 = vpop.permute.xlu0 %2556
    %2558 = vrot.lane.b32.xlu0 %v2546, 90
    %v2559 = vpop.permute.xlu0 %2558
    %2560 = vrot.lane.b32.xlu0 %v2547, 90
    %v2561 = vpop.permute.xlu0 %2560
    %v2562 = vsel %vm764, %v2549, %v2551
    %v2563 = vsel %vm764, %v2551, %v2553
    %v2564 = vsel %vm764, %v2553, %v2555
    %v2565 = vsel %vm764, %v2555, %v2557
    %v2566 = vsel %vm764, %v2557, %v2559
    %v2567 = vsel %vm764, %v2559, %v2561
    %s2578 = scalar_lea.vmem [#allocation1], 1
    %2579 = vst [vmem:[%s2578] ss:$2 sm:$0xff] %v35
    %s2580 = scalar_lea.vmem [#allocation1], 17
    %2581 = vst [vmem:[%s2580] ss:$2 sm:$0xff] %v36
    %s2582 = scalar_lea.vmem [#allocation1], 33
    %2583 = vst [vmem:[%s2582] ss:$2 sm:$0xff] %v37
    %v2584 = vld.sshfl [vmem:[#allocation1] sm:$0xff pattern:$0x75316420]
    %v2585 = vld.sshfl [vmem:[#allocation1 + $0x8] sm:$0xff pattern:$0x75316420]
    %v2586 = vld.sshfl [vmem:[#allocation1 + $0x10] sm:$0xff pattern:$0x75316420]
    %v2587 = vld.sshfl [vmem:[#allocation1 + $0x18] sm:$0xff pattern:$0x75316420]
    %v2588 = vld.sshfl [vmem:[#allocation1 + $0x20] sm:$0xff pattern:$0x75316420]
    %v2589 = vld.sshfl [vmem:[#allocation1 + $0x28] sm:$0xff pattern:$0x75316420]
    %2590 = vrot.lane.b32.xlu0 %v2584, 109
    %v2591 = vpop.permute.xlu0 %2590
    %2592 = vrot.lane.b32.xlu0 %v2585, 109
    %v2593 = vpop.permute.xlu0 %2592
    %2594 = vrot.lane.b32.xlu0 %v2586, 109
    %v2595 = vpop.permute.xlu0 %2594
    %2596 = vrot.lane.b32.xlu0 %v2587, 109
    %v2597 = vpop.permute.xlu0 %2596
    %2598 = vrot.lane.b32.xlu0 %v2588, 109
    %v2599 = vpop.permute.xlu0 %2598
    %2600 = vrot.lane.b32.xlu0 %v2589, 109
    %v2601 = vpop.permute.xlu0 %2600
    %v2602 = vsel %vm591, %v2591, %v2593
    %v2603 = vsel %vm591, %v2593, %v2595
    %v2604 = vsel %vm591, %v2595, %v2597
    %v2605 = vsel %vm591, %v2597, %v2599
    %v2606 = vsel %vm591, %v2599, %v2601
    %v2614 = vsel %vm771, %v2228, %v2271
    %v2615 = vsel %vm771, %v2229, %v2272
    %v2616 = vsel %vm771, %v2230, %v2273
    %v2617 = vsel %vm771, %v2231, %v2274
    %v2618 = vsel %vm771, %v2232, %v2275
    %v2619 = vsel %vm771, %v2233, %v2276
    %v2620 = vsel %vm771, %v2234, %v2270
    %v2621 = vsel %vm771, %v2312, %v2354
    %v2622 = vsel %vm771, %v2313, %v2355
    %v2623 = vsel %vm771, %v2314, %v2356
    %v2624 = vsel %vm771, %v2315, %v2357
    %v2625 = vsel %vm771, %v2316, %v2358
    %v2626 = vsel %vm771, %v2317, %v2359
    %v2627 = vsel %vm771, %v2311, %v2353
    %v2628 = vsel %vm771, %v2382, %v2425
    %v2629 = vsel %vm771, %v2393, %v2438
    %v2630 = vsel %vm771, %v2394, %v2439
    %v2631 = vsel %vm771, %v2395, %v2440
    %v2632 = vsel %vm771, %v2396, %v2441
    %v2633 = vsel %vm771, %v2397, %v2442
    %v2634 = vsel %vm771, %v2392, %v2443
    %v2635 = vsel %vm771, %v2466, %v2508
    %v2636 = vsel %vm771, %v2479, %v2521
    %v2637 = vsel %vm771, %v2480, %v2522
    %v2638 = vsel %vm771, %v2481, %v2523
    %v2639 = vsel %vm771, %v2482, %v2524
    %v2640 = vsel %vm771, %v2483, %v2525
    %v2641 = vsel %vm771, %v2484, %v2526
    %v2642 = vsel %vm771, %v2549, %v2591
    %v2643 = vsel %vm771, %v2562, %v2602
    %v2644 = vsel %vm771, %v2563, %v2603
    %v2645 = vsel %vm771, %v2564, %v2604
    %v2646 = vsel %vm771, %v2565, %v2605
    %v2647 = vsel %vm771, %v2566, %v2606
    %v2648 = vsel %vm771, %v2567, %v2601
    %v2649 = vld [vmem:[%s3] sm:$0xff]
    %2685 = vrot.lane.b32.xlu0 %v2614, 19
    %v2686 = vpop.permute.xlu0 %2685
    %2687 = vrot.lane.b32.xlu0 %v2615, 19
    %v2688 = vpop.permute.xlu0 %2687
    %2689 = vrot.lane.b32.xlu0 %v2616, 19
    %v2690 = vpop.permute.xlu0 %2689
    %2691 = vrot.lane.b32.xlu0 %v2617, 19
    %v2692 = vpop.permute.xlu0 %2691
    %2693 = vrot.lane.b32.xlu0 %v2618, 19
    %v2694 = vpop.permute.xlu0 %2693
    %2695 = vrot.lane.b32.xlu0 %v2619, 19
    %v2696 = vpop.permute.xlu0 %2695
    %2697 = vrot.lane.b32.xlu0 %v2620, 19
    %v2698 = vpop.permute.xlu0 %2697
    %2699 = vrot.lane.b32.xlu0 %v2621, 19
    %v2700 = vpop.permute.xlu0 %2699
    %2701 = vrot.lane.b32.xlu0 %v2622, 19
    %v2702 = vpop.permute.xlu0 %2701
    %2703 = vrot.lane.b32.xlu0 %v2623, 19
    %v2704 = vpop.permute.xlu0 %2703
    %2705 = vrot.lane.b32.xlu0 %v2624, 19
    %v2706 = vpop.permute.xlu0 %2705
    %2707 = vrot.lane.b32.xlu0 %v2625, 19
    %v2708 = vpop.permute.xlu0 %2707
    %2709 = vrot.lane.b32.xlu0 %v2626, 19
    %v2710 = vpop.permute.xlu0 %2709
    %2711 = vrot.lane.b32.xlu0 %v2627, 19
    %v2712 = vpop.permute.xlu0 %2711
    %2713 = vrot.lane.b32.xlu0 %v2628, 19
    %v2714 = vpop.permute.xlu0 %2713
    %2715 = vrot.lane.b32.xlu0 %v2629, 19
    %v2716 = vpop.permute.xlu0 %2715
    %2717 = vrot.lane.b32.xlu0 %v2630, 19
    %v2718 = vpop.permute.xlu0 %2717
    %2719 = vrot.lane.b32.xlu0 %v2631, 19
    %v2720 = vpop.permute.xlu0 %2719
    %2721 = vrot.lane.b32.xlu0 %v2632, 19
    %v2722 = vpop.permute.xlu0 %2721
    %2723 = vrot.lane.b32.xlu0 %v2633, 19
    %v2724 = vpop.permute.xlu0 %2723
    %2725 = vrot.lane.b32.xlu0 %v2634, 19
    %v2726 = vpop.permute.xlu0 %2725
    %2727 = vrot.lane.b32.xlu0 %v2635, 19
    %v2728 = vpop.permute.xlu0 %2727
    %2729 = vrot.lane.b32.xlu0 %v2636, 19
    %v2730 = vpop.permute.xlu0 %2729
    %2731 = vrot.lane.b32.xlu0 %v2637, 19
    %v2732 = vpop.permute.xlu0 %2731
    %2733 = vrot.lane.b32.xlu0 %v2638, 19
    %v2734 = vpop.permute.xlu0 %2733
    %2735 = vrot.lane.b32.xlu0 %v2639, 19
    %v2736 = vpop.permute.xlu0 %2735
    %2737 = vrot.lane.b32.xlu0 %v2640, 19
    %v2738 = vpop.permute.xlu0 %2737
    %2739 = vrot.lane.b32.xlu0 %v2641, 19
    %v2740 = vpop.permute.xlu0 %2739
    %2741 = vrot.lane.b32.xlu0 %v2642, 19
    %v2742 = vpop.permute.xlu0 %2741
    %2743 = vrot.lane.b32.xlu0 %v2643, 19
    %v2744 = vpop.permute.xlu0 %2743
    %2745 = vrot.lane.b32.xlu0 %v2644, 19
    %v2746 = vpop.permute.xlu0 %2745
    %2747 = vrot.lane.b32.xlu0 %v2645, 19
    %v2748 = vpop.permute.xlu0 %2747
    %2749 = vrot.lane.b32.xlu0 %v2646, 19
    %v2750 = vpop.permute.xlu0 %2749
    %2751 = vrot.lane.b32.xlu0 %v2647, 19
    %v2752 = vpop.permute.xlu0 %2751
    %2753 = vrot.lane.b32.xlu0 %v2648, 19
    %v2754 = vpop.permute.xlu0 %2753
    %v2755 = vsel %vm905, %v2686, %v2688
    %v2756 = vsel %vm905, %v2688, %v2690
    %v2757 = vsel %vm905, %v2690, %v2692
    %v2758 = vsel %vm905, %v2692, %v2694
    %v2759 = vsel %vm905, %v2694, %v2696
    %v2760 = vsel %vm905, %v2696, %v2698
    %v2761 = vsel %vm905, %v2700, %v2702
    %v2762 = vsel %vm905, %v2702, %v2704
    %v2763 = vsel %vm905, %v2704, %v2706
    %v2764 = vsel %vm905, %v2706, %v2708
    %v2765 = vsel %vm905, %v2708, %v2710
    %v2766 = vsel %vm905, %v2710, %v2712
    %v2767 = vsel %vm905, %v2714, %v2716
    %v2768 = vsel %vm905, %v2716, %v2718
    %v2769 = vsel %vm905, %v2718, %v2720
    %v2770 = vsel %vm905, %v2720, %v2722
    %v2771 = vsel %vm905, %v2722, %v2724
    %v2772 = vsel %vm905, %v2724, %v2726
    %v2773 = vsel %vm905, %v2728, %v2730
    %v2774 = vsel %vm905, %v2730, %v2732
    %v2775 = vsel %vm905, %v2732, %v2734
    %v2776 = vsel %vm905, %v2734, %v2736
    %v2777 = vsel %vm905, %v2736, %v2738
    %v2778 = vsel %vm905, %v2738, %v2740
    %v2779 = vsel %vm905, %v2742, %v2744
    %v2780 = vsel %vm905, %v2744, %v2746
    %v2781 = vsel %vm905, %v2746, %v2748
    %v2782 = vsel %vm905, %v2748, %v2750
    %v2783 = vsel %vm905, %v2750, %v2752
    %v2784 = vsel %vm905, %v2752, %v2754
    %vm2815 = vcmask 326656
    %v2817 = vsel %vm2815, %v2649, 0
    %2819 = vmatpush.msra.mxu0 0.0
    %2820 = vmatpush.msra.mxu0 0.0
    %2821 = vmatpush.msra.mxu0 0.0
    %2822 = vmatpush.msra.mxu0 0.0
    %2823 = vmatpush.msra.mxu0 0.0
    %2824 = vmatpush.msra.mxu0 0.0
    %2825 = vmatpush.msra.mxu0 0.0
    %2826 = vmatpush.msra.mxu0 0.0
    %2827 = vmatpush.msra.mxu0 0.0
    %2828 = vmatpush.msra.mxu0 0.0
    %2829 = vmatpush.msra.mxu0 0.0
    %v2830 = vand.u32 %v2779, 4294901760
    %2831 = vmatpush.msra.mxu0 %v2830
    %v2832 = vand.u32 %v2773, 4294901760
    %2833 = vmatpush.msra.mxu0 %v2832
    %v2834 = vand.u32 %v2767, 4294901760
    %2835 = vmatpush.msra.mxu0 %v2834
    %v2836 = vand.u32 %v2761, 4294901760
    %2837 = vmatpush.msra.mxu0 %v2836
    %v2838 = vand.u32 %v2755, 4294901760
    %2839 = vmatpush.msra.mxu0 %v2838
    %v2840 = vand.u32 %v2817, 4294901760
    %v2841 = vsub.f32 %v2817, %v2840
    %v2842 = vand.u32 %v2841, 4294901760
    %v2843 = vsub.f32 %v2841, %v2842
    %v2844 = vand.u32 %v2843, 4294901760
    %2845 = vmatmul.f32.gmra.mxu0 %v2844
    %v2846 = vpop.f32.mrf.mxu0
    %v2847 = vadd.f32 0.0, %v2846
    %2848 = vdwg.mxu0
    %2849 = vmatpush.msra.mxu0 0.0
    %2850 = vmatpush.msra.mxu0 0.0
    %2851 = vmatpush.msra.mxu0 0.0
    %2852 = vmatpush.msra.mxu0 0.0
    %2853 = vmatpush.msra.mxu0 0.0
    %2854 = vmatpush.msra.mxu0 0.0
    %2855 = vmatpush.msra.mxu0 0.0
    %2856 = vmatpush.msra.mxu0 0.0
    %2857 = vmatpush.msra.mxu0 0.0
    %2858 = vmatpush.msra.mxu0 0.0
    %2859 = vmatpush.msra.mxu0 0.0
    %v2860 = vand.u32 %v2779, 4294901760
    %v2861 = vsub.f32 %v2779, %v2860
    %v2862 = vand.u32 %v2861, 4294901760
    %v2863 = vsub.f32 %v2861, %v2862
    %v2864 = vand.u32 %v2863, 4294901760
    %2865 = vmatpush.msra.mxu0 %v2864
    %v2866 = vand.u32 %v2773, 4294901760
    %v2867 = vsub.f32 %v2773, %v2866
    %v2868 = vand.u32 %v2867, 4294901760
    %v2869 = vsub.f32 %v2867, %v2868
    %v2870 = vand.u32 %v2869, 4294901760
    %2871 = vmatpush.msra.mxu0 %v2870
    %v2872 = vand.u32 %v2767, 4294901760
    %v2873 = vsub.f32 %v2767, %v2872
    %v2874 = vand.u32 %v2873, 4294901760
    %v2875 = vsub.f32 %v2873, %v2874
    %v2876 = vand.u32 %v2875, 4294901760
    %2877 = vmatpush.msra.mxu0 %v2876
    %v2878 = vand.u32 %v2761, 4294901760
    %v2879 = vsub.f32 %v2761, %v2878
    %v2880 = vand.u32 %v2879, 4294901760
    %v2881 = vsub.f32 %v2879, %v2880
    %v2882 = vand.u32 %v2881, 4294901760
    %2883 = vmatpush.msra.mxu0 %v2882
    %v2884 = vand.u32 %v2755, 4294901760
    %v2885 = vsub.f32 %v2755, %v2884
    %v2886 = vand.u32 %v2885, 4294901760
    %v2887 = vsub.f32 %v2885, %v2886
    %v2888 = vand.u32 %v2887, 4294901760
    %2889 = vmatpush.msra.mxu0 %v2888
    %v2890 = vand.u32 %v2817, 4294901760
    %2891 = vmatmul.f32.gmra.mxu0 %v2890
    %v2892 = vpop.f32.mrf.mxu0
    %v2893 = vadd.f32 %v2847, %v2892
    %2894 = vdwg.mxu0
    %2895 = vmatpush.msra.mxu0 0.0
    %2896 = vmatpush.msra.mxu0 0.0
    %2897 = vmatpush.msra.mxu0 0.0
    %2898 = vmatpush.msra.mxu0 0.0
    %2899 = vmatpush.msra.mxu0 0.0
    %2900 = vmatpush.msra.mxu0 0.0
    %2901 = vmatpush.msra.mxu0 0.0
    %2902 = vmatpush.msra.mxu0 0.0
    %2903 = vmatpush.msra.mxu0 0.0
    %2904 = vmatpush.msra.mxu0 0.0
    %2905 = vmatpush.msra.mxu0 0.0
    %v2906 = vand.u32 %v2779, 4294901760
    %v2907 = vsub.f32 %v2779, %v2906
    %2908 = vmatpush.msra.mxu0 %v2907
    %v2909 = vand.u32 %v2773, 4294901760
    %v2910 = vsub.f32 %v2773, %v2909
    %2911 = vmatpush.msra.mxu0 %v2910
    %v2912 = vand.u32 %v2767, 4294901760
    %v2913 = vsub.f32 %v2767, %v2912
    %2914 = vmatpush.msra.mxu0 %v2913
    %v2915 = vand.u32 %v2761, 4294901760
    %v2916 = vsub.f32 %v2761, %v2915
    %2917 = vmatpush.msra.mxu0 %v2916
    %v2918 = vand.u32 %v2755, 4294901760
    %v2919 = vsub.f32 %v2755, %v2918
    %2920 = vmatpush.msra.mxu0 %v2919
    %v2921 = vand.u32 %v2817, 4294901760
    %v2922 = vsub.f32 %v2817, %v2921
    %2923 = vmatmul.f32.gmra.mxu0 %v2922
    %v2924 = vpop.f32.mrf.mxu0
    %v2925 = vadd.f32 %v2893, %v2924
    %2926 = vdwg.mxu0
    %2927 = vmatpush.msra.mxu0 0.0
    %2928 = vmatpush.msra.mxu0 0.0
    %2929 = vmatpush.msra.mxu0 0.0
    %2930 = vmatpush.msra.mxu0 0.0
    %2931 = vmatpush.msra.mxu0 0.0
    %2932 = vmatpush.msra.mxu0 0.0
    %2933 = vmatpush.msra.mxu0 0.0
    %2934 = vmatpush.msra.mxu0 0.0
    %2935 = vmatpush.msra.mxu0 0.0
    %2936 = vmatpush.msra.mxu0 0.0
    %2937 = vmatpush.msra.mxu0 0.0
    %v2938 = vand.u32 %v2779, 4294901760
    %2939 = vmatpush.msra.mxu0 %v2938
    %v2940 = vand.u32 %v2773, 4294901760
    %2941 = vmatpush.msra.mxu0 %v2940
    %v2942 = vand.u32 %v2767, 4294901760
    %2943 = vmatpush.msra.mxu0 %v2942
    %v2944 = vand.u32 %v2761, 4294901760
    %2945 = vmatpush.msra.mxu0 %v2944
    %v2946 = vand.u32 %v2755, 4294901760
    %2947 = vmatpush.msra.mxu0 %v2946
    %v2948 = vand.u32 %v2817, 4294901760
    %v2949 = vsub.f32 %v2817, %v2948
    %v2950 = vand.u32 %v2949, 4294901760
    %2951 = vmatmul.f32.gmra.mxu0 %v2950
    %v2952 = vpop.f32.mrf.mxu0
    %v2953 = vadd.f32 %v2925, %v2952
    %2954 = vdwg.mxu0
    %2955 = vmatpush.msra.mxu0 0.0
    %2956 = vmatpush.msra.mxu0 0.0
    %2957 = vmatpush.msra.mxu0 0.0
    %2958 = vmatpush.msra.mxu0 0.0
    %2959 = vmatpush.msra.mxu0 0.0
    %2960 = vmatpush.msra.mxu0 0.0
    %2961 = vmatpush.msra.mxu0 0.0
    %2962 = vmatpush.msra.mxu0 0.0
    %2963 = vmatpush.msra.mxu0 0.0
    %2964 = vmatpush.msra.mxu0 0.0
    %2965 = vmatpush.msra.mxu0 0.0
    %v2966 = vand.u32 %v2779, 4294901760
    %v2967 = vsub.f32 %v2779, %v2966
    %v2968 = vand.u32 %v2967, 4294901760
    %2969 = vmatpush.msra.mxu0 %v2968
    %v2970 = vand.u32 %v2773, 4294901760
    %v2971 = vsub.f32 %v2773, %v2970
    %v2972 = vand.u32 %v2971, 4294901760
    %2973 = vmatpush.msra.mxu0 %v2972
    %v2974 = vand.u32 %v2767, 4294901760
    %v2975 = vsub.f32 %v2767, %v2974
    %v2976 = vand.u32 %v2975, 4294901760
    %2977 = vmatpush.msra.mxu0 %v2976
    %v2978 = vand.u32 %v2761, 4294901760
    %v2979 = vsub.f32 %v2761, %v2978
    %v2980 = vand.u32 %v2979, 4294901760
    %2981 = vmatpush.msra.mxu0 %v2980
    %v2982 = vand.u32 %v2755, 4294901760
    %v2983 = vsub.f32 %v2755, %v2982
    %v2984 = vand.u32 %v2983, 4294901760
    %2985 = vmatpush.msra.mxu0 %v2984
    %v2986 = vand.u32 %v2817, 4294901760
    %2987 = vmatmul.f32.gmra.mxu0 %v2986
    %v2988 = vpop.f32.mrf.mxu0
    %v2989 = vadd.f32 %v2953, %v2988
    %2990 = vdwg.mxu0
    %2991 = vmatpush.msra.mxu0 0.0
    %2992 = vmatpush.msra.mxu0 0.0
    %2993 = vmatpush.msra.mxu0 0.0
    %2994 = vmatpush.msra.mxu0 0.0
    %2995 = vmatpush.msra.mxu0 0.0
    %2996 = vmatpush.msra.mxu0 0.0
    %2997 = vmatpush.msra.mxu0 0.0
    %2998 = vmatpush.msra.mxu0 0.0
    %2999 = vmatpush.msra.mxu0 0.0
    %3000 = vmatpush.msra.mxu0 0.0
    %3001 = vmatpush.msra.mxu0 0.0
    %v3002 = vand.u32 %v2779, 4294901760
    %3003 = vmatpush.msra.mxu0 %v3002
    %v3004 = vand.u32 %v2773, 4294901760
    %3005 = vmatpush.msra.mxu0 %v3004
    %v3006 = vand.u32 %v2767, 4294901760
    %3007 = vmatpush.msra.mxu0 %v3006
    %v3008 = vand.u32 %v2761, 4294901760
    %3009 = vmatpush.msra.mxu0 %v3008
    %v3010 = vand.u32 %v2755, 4294901760
    %3011 = vmatpush.msra.mxu0 %v3010
    %v3012 = vand.u32 %v2817, 4294901760
    %3013 = vmatmul.f32.gmra.mxu0 %v3012
    %v3014 = vpop.f32.mrf.mxu0
    %v3015 = vadd.f32 %v2989, %v3014
    %3016 = vdwg.mxu0
    %3017 = vmatpush.msra.mxu0 0.0
    %3018 = vmatpush.msra.mxu0 0.0
    %3019 = vmatpush.msra.mxu0 0.0
    %3020 = vmatpush.msra.mxu0 0.0
    %3021 = vmatpush.msra.mxu0 0.0
    %3022 = vmatpush.msra.mxu0 0.0
    %3023 = vmatpush.msra.mxu0 0.0
    %3024 = vmatpush.msra.mxu0 0.0
    %3025 = vmatpush.msra.mxu0 0.0
    %3026 = vmatpush.msra.mxu0 0.0
    %3027 = vmatpush.msra.mxu0 0.0
    %v3028 = vand.u32 %v2780, 4294901760
    %3029 = vmatpush.msra.mxu0 %v3028
    %v3030 = vand.u32 %v2774, 4294901760
    %3031 = vmatpush.msra.mxu0 %v3030
    %v3032 = vand.u32 %v2768, 4294901760
    %3033 = vmatpush.msra.mxu0 %v3032
    %v3034 = vand.u32 %v2762, 4294901760
    %3035 = vmatpush.msra.mxu0 %v3034
    %v3036 = vand.u32 %v2756, 4294901760
    %3037 = vmatpush.msra.mxu0 %v3036
    %v3038 = vand.u32 %v2817, 4294901760
    %v3039 = vsub.f32 %v2817, %v3038
    %v3040 = vand.u32 %v3039, 4294901760
    %v3041 = vsub.f32 %v3039, %v3040
    %v3042 = vand.u32 %v3041, 4294901760
    %3043 = vmatmul.f32.gmra.mxu0 %v3042
    %v3044 = vpop.f32.mrf.mxu0
    %v3045 = vadd.f32 0.0, %v3044
    %3046 = vdwg.mxu0
    %3047 = vmatpush.msra.mxu0 0.0
    %3048 = vmatpush.msra.mxu0 0.0
    %3049 = vmatpush.msra.mxu0 0.0
    %3050 = vmatpush.msra.mxu0 0.0
    %3051 = vmatpush.msra.mxu0 0.0
    %3052 = vmatpush.msra.mxu0 0.0
    %3053 = vmatpush.msra.mxu0 0.0
    %3054 = vmatpush.msra.mxu0 0.0
    %3055 = vmatpush.msra.mxu0 0.0
    %3056 = vmatpush.msra.mxu0 0.0
    %3057 = vmatpush.msra.mxu0 0.0
    %v3058 = vand.u32 %v2780, 4294901760
    %v3059 = vsub.f32 %v2780, %v3058
    %v3060 = vand.u32 %v3059, 4294901760
    %v3061 = vsub.f32 %v3059, %v3060
    %v3062 = vand.u32 %v3061, 4294901760
    %3063 = vmatpush.msra.mxu0 %v3062
    %v3064 = vand.u32 %v2774, 4294901760
    %v3065 = vsub.f32 %v2774, %v3064
    %v3066 = vand.u32 %v3065, 4294901760
    %v3067 = vsub.f32 %v3065, %v3066
    %v3068 = vand.u32 %v3067, 4294901760
    %3069 = vmatpush.msra.mxu0 %v3068
    %v3070 = vand.u32 %v2768, 4294901760
    %v3071 = vsub.f32 %v2768, %v3070
    %v3072 = vand.u32 %v3071, 4294901760
    %v3073 = vsub.f32 %v3071, %v3072
    %v3074 = vand.u32 %v3073, 4294901760
    %3075 = vmatpush.msra.mxu0 %v3074
    %v3076 = vand.u32 %v2762, 4294901760
    %v3077 = vsub.f32 %v2762, %v3076
    %v3078 = vand.u32 %v3077, 4294901760
    %v3079 = vsub.f32 %v3077, %v3078
    %v3080 = vand.u32 %v3079, 4294901760
    %3081 = vmatpush.msra.mxu0 %v3080
    %v3082 = vand.u32 %v2756, 4294901760
    %v3083 = vsub.f32 %v2756, %v3082
    %v3084 = vand.u32 %v3083, 4294901760
    %v3085 = vsub.f32 %v3083, %v3084
    %v3086 = vand.u32 %v3085, 4294901760
    %3087 = vmatpush.msra.mxu0 %v3086
    %v3088 = vand.u32 %v2817, 4294901760
    %3089 = vmatmul.f32.gmra.mxu0 %v3088
    %v3090 = vpop.f32.mrf.mxu0
    %v3091 = vadd.f32 %v3045, %v3090
    %3092 = vdwg.mxu0
    %3093 = vmatpush.msra.mxu0 0.0
    %3094 = vmatpush.msra.mxu0 0.0
    %3095 = vmatpush.msra.mxu0 0.0
    %3096 = vmatpush.msra.mxu0 0.0
    %3097 = vmatpush.msra.mxu0 0.0
    %3098 = vmatpush.msra.mxu0 0.0
    %3099 = vmatpush.msra.mxu0 0.0
    %3100 = vmatpush.msra.mxu0 0.0
    %3101 = vmatpush.msra.mxu0 0.0
    %3102 = vmatpush.msra.mxu0 0.0
    %3103 = vmatpush.msra.mxu0 0.0
    %v3104 = vand.u32 %v2780, 4294901760
    %v3105 = vsub.f32 %v2780, %v3104
    %3106 = vmatpush.msra.mxu0 %v3105
    %v3107 = vand.u32 %v2774, 4294901760
    %v3108 = vsub.f32 %v2774, %v3107
    %3109 = vmatpush.msra.mxu0 %v3108
    %v3110 = vand.u32 %v2768, 4294901760
    %v3111 = vsub.f32 %v2768, %v3110
    %3112 = vmatpush.msra.mxu0 %v3111
    %v3113 = vand.u32 %v2762, 4294901760
    %v3114 = vsub.f32 %v2762, %v3113
    %3115 = vmatpush.msra.mxu0 %v3114
    %v3116 = vand.u32 %v2756, 4294901760
    %v3117 = vsub.f32 %v2756, %v3116
    %3118 = vmatpush.msra.mxu0 %v3117
    %v3119 = vand.u32 %v2817, 4294901760
    %v3120 = vsub.f32 %v2817, %v3119
    %3121 = vmatmul.f32.gmra.mxu0 %v3120
    %v3122 = vpop.f32.mrf.mxu0
    %v3123 = vadd.f32 %v3091, %v3122
    %3124 = vdwg.mxu0
    %3125 = vmatpush.msra.mxu0 0.0
    %3126 = vmatpush.msra.mxu0 0.0
    %3127 = vmatpush.msra.mxu0 0.0
    %3128 = vmatpush.msra.mxu0 0.0
    %3129 = vmatpush.msra.mxu0 0.0
    %3130 = vmatpush.msra.mxu0 0.0
    %3131 = vmatpush.msra.mxu0 0.0
    %3132 = vmatpush.msra.mxu0 0.0
    %3133 = vmatpush.msra.mxu0 0.0
    %3134 = vmatpush.msra.mxu0 0.0
    %3135 = vmatpush.msra.mxu0 0.0
    %v3136 = vand.u32 %v2780, 4294901760
    %3137 = vmatpush.msra.mxu0 %v3136
    %v3138 = vand.u32 %v2774, 4294901760
    %3139 = vmatpush.msra.mxu0 %v3138
    %v3140 = vand.u32 %v2768, 4294901760
    %3141 = vmatpush.msra.mxu0 %v3140
    %v3142 = vand.u32 %v2762, 4294901760
    %3143 = vmatpush.msra.mxu0 %v3142
    %v3144 = vand.u32 %v2756, 4294901760
    %3145 = vmatpush.msra.mxu0 %v3144
    %v3146 = vand.u32 %v2817, 4294901760
    %v3147 = vsub.f32 %v2817, %v3146
    %v3148 = vand.u32 %v3147, 4294901760
    %3149 = vmatmul.f32.gmra.mxu0 %v3148
    %v3150 = vpop.f32.mrf.mxu0
    %v3151 = vadd.f32 %v3123, %v3150
    %3152 = vdwg.mxu0
    %3153 = vmatpush.msra.mxu0 0.0
    %3154 = vmatpush.msra.mxu0 0.0
    %3155 = vmatpush.msra.mxu0 0.0
    %3156 = vmatpush.msra.mxu0 0.0
    %3157 = vmatpush.msra.mxu0 0.0
    %3158 = vmatpush.msra.mxu0 0.0
    %3159 = vmatpush.msra.mxu0 0.0
    %3160 = vmatpush.msra.mxu0 0.0
    %3161 = vmatpush.msra.mxu0 0.0
    %3162 = vmatpush.msra.mxu0 0.0
    %3163 = vmatpush.msra.mxu0 0.0
    %v3164 = vand.u32 %v2780, 4294901760
    %v3165 = vsub.f32 %v2780, %v3164
    %v3166 = vand.u32 %v3165, 4294901760
    %3167 = vmatpush.msra.mxu0 %v3166
    %v3168 = vand.u32 %v2774, 4294901760
    %v3169 = vsub.f32 %v2774, %v3168
    %v3170 = vand.u32 %v3169, 4294901760
    %3171 = vmatpush.msra.mxu0 %v3170
    %v3172 = vand.u32 %v2768, 4294901760
    %v3173 = vsub.f32 %v2768, %v3172
    %v3174 = vand.u32 %v3173, 4294901760
    %3175 = vmatpush.msra.mxu0 %v3174
    %v3176 = vand.u32 %v2762, 4294901760
    %v3177 = vsub.f32 %v2762, %v3176
    %v3178 = vand.u32 %v3177, 4294901760
    %3179 = vmatpush.msra.mxu0 %v3178
    %v3180 = vand.u32 %v2756, 4294901760
    %v3181 = vsub.f32 %v2756, %v3180
    %v3182 = vand.u32 %v3181, 4294901760
    %3183 = vmatpush.msra.mxu0 %v3182
    %v3184 = vand.u32 %v2817, 4294901760
    %3185 = vmatmul.f32.gmra.mxu0 %v3184
    %v3186 = vpop.f32.mrf.mxu0
    %v3187 = vadd.f32 %v3151, %v3186
    %3188 = vdwg.mxu0
    %3189 = vmatpush.msra.mxu0 0.0
    %3190 = vmatpush.msra.mxu0 0.0
    %3191 = vmatpush.msra.mxu0 0.0
    %3192 = vmatpush.msra.mxu0 0.0
    %3193 = vmatpush.msra.mxu0 0.0
    %3194 = vmatpush.msra.mxu0 0.0
    %3195 = vmatpush.msra.mxu0 0.0
    %3196 = vmatpush.msra.mxu0 0.0
    %3197 = vmatpush.msra.mxu0 0.0
    %3198 = vmatpush.msra.mxu0 0.0
    %3199 = vmatpush.msra.mxu0 0.0
    %v3200 = vand.u32 %v2780, 4294901760
    %3201 = vmatpush.msra.mxu0 %v3200
    %v3202 = vand.u32 %v2774, 4294901760
    %3203 = vmatpush.msra.mxu0 %v3202
    %v3204 = vand.u32 %v2768, 4294901760
    %3205 = vmatpush.msra.mxu0 %v3204
    %v3206 = vand.u32 %v2762, 4294901760
    %3207 = vmatpush.msra.mxu0 %v3206
    %v3208 = vand.u32 %v2756, 4294901760
    %3209 = vmatpush.msra.mxu0 %v3208
    %v3210 = vand.u32 %v2817, 4294901760
    %3211 = vmatmul.f32.gmra.mxu0 %v3210
    %v3212 = vpop.f32.mrf.mxu0
    %v3213 = vadd.f32 %v3187, %v3212
    %3214 = vdwg.mxu0
    %3215 = vmatpush.msra.mxu0 0.0
    %3216 = vmatpush.msra.mxu0 0.0
    %3217 = vmatpush.msra.mxu0 0.0
    %3218 = vmatpush.msra.mxu0 0.0
    %3219 = vmatpush.msra.mxu0 0.0
    %3220 = vmatpush.msra.mxu0 0.0
    %3221 = vmatpush.msra.mxu0 0.0
    %3222 = vmatpush.msra.mxu0 0.0
    %3223 = vmatpush.msra.mxu0 0.0
    %3224 = vmatpush.msra.mxu0 0.0
    %3225 = vmatpush.msra.mxu0 0.0
    %v3226 = vand.u32 %v2781, 4294901760
    %3227 = vmatpush.msra.mxu0 %v3226
    %v3228 = vand.u32 %v2775, 4294901760
    %3229 = vmatpush.msra.mxu0 %v3228
    %v3230 = vand.u32 %v2769, 4294901760
    %3231 = vmatpush.msra.mxu0 %v3230
    %v3232 = vand.u32 %v2763, 4294901760
    %3233 = vmatpush.msra.mxu0 %v3232
    %v3234 = vand.u32 %v2757, 4294901760
    %3235 = vmatpush.msra.mxu0 %v3234
    %v3236 = vand.u32 %v2817, 4294901760
    %v3237 = vsub.f32 %v2817, %v3236
    %v3238 = vand.u32 %v3237, 4294901760
    %v3239 = vsub.f32 %v3237, %v3238
    %v3240 = vand.u32 %v3239, 4294901760
    %3241 = vmatmul.f32.gmra.mxu0 %v3240
    %v3242 = vpop.f32.mrf.mxu0
    %v3243 = vadd.f32 0.0, %v3242
    %3244 = vdwg.mxu0
    %3245 = vmatpush.msra.mxu0 0.0
    %3246 = vmatpush.msra.mxu0 0.0
    %3247 = vmatpush.msra.mxu0 0.0
    %3248 = vmatpush.msra.mxu0 0.0
    %3249 = vmatpush.msra.mxu0 0.0
    %3250 = vmatpush.msra.mxu0 0.0
    %3251 = vmatpush.msra.mxu0 0.0
    %3252 = vmatpush.msra.mxu0 0.0
    %3253 = vmatpush.msra.mxu0 0.0
    %3254 = vmatpush.msra.mxu0 0.0
    %3255 = vmatpush.msra.mxu0 0.0
    %v3256 = vand.u32 %v2781, 4294901760
    %v3257 = vsub.f32 %v2781, %v3256
    %v3258 = vand.u32 %v3257, 4294901760
    %v3259 = vsub.f32 %v3257, %v3258
    %v3260 = vand.u32 %v3259, 4294901760
    %3261 = vmatpush.msra.mxu0 %v3260
    %v3262 = vand.u32 %v2775, 4294901760
    %v3263 = vsub.f32 %v2775, %v3262
    %v3264 = vand.u32 %v3263, 4294901760
    %v3265 = vsub.f32 %v3263, %v3264
    %v3266 = vand.u32 %v3265, 4294901760
    %3267 = vmatpush.msra.mxu0 %v3266
    %v3268 = vand.u32 %v2769, 4294901760
    %v3269 = vsub.f32 %v2769, %v3268
    %v3270 = vand.u32 %v3269, 4294901760
    %v3271 = vsub.f32 %v3269, %v3270
    %v3272 = vand.u32 %v3271, 4294901760
    %3273 = vmatpush.msra.mxu0 %v3272
    %v3274 = vand.u32 %v2763, 4294901760
    %v3275 = vsub.f32 %v2763, %v3274
    %v3276 = vand.u32 %v3275, 4294901760
    %v3277 = vsub.f32 %v3275, %v3276
    %v3278 = vand.u32 %v3277, 4294901760
    %3279 = vmatpush.msra.mxu0 %v3278
    %v3280 = vand.u32 %v2757, 4294901760
    %v3281 = vsub.f32 %v2757, %v3280
    %v3282 = vand.u32 %v3281, 4294901760
    %v3283 = vsub.f32 %v3281, %v3282
    %v3284 = vand.u32 %v3283, 4294901760
    %3285 = vmatpush.msra.mxu0 %v3284
    %v3286 = vand.u32 %v2817, 4294901760
    %3287 = vmatmul.f32.gmra.mxu0 %v3286
    %v3288 = vpop.f32.mrf.mxu0
    %v3289 = vadd.f32 %v3243, %v3288
    %3290 = vdwg.mxu0
    %3291 = vmatpush.msra.mxu0 0.0
    %3292 = vmatpush.msra.mxu0 0.0
    %3293 = vmatpush.msra.mxu0 0.0
    %3294 = vmatpush.msra.mxu0 0.0
    %3295 = vmatpush.msra.mxu0 0.0
    %3296 = vmatpush.msra.mxu0 0.0
    %3297 = vmatpush.msra.mxu0 0.0
    %3298 = vmatpush.msra.mxu0 0.0
    %3299 = vmatpush.msra.mxu0 0.0
    %3300 = vmatpush.msra.mxu0 0.0
    %3301 = vmatpush.msra.mxu0 0.0
    %v3302 = vand.u32 %v2781, 4294901760
    %v3303 = vsub.f32 %v2781, %v3302
    %3304 = vmatpush.msra.mxu0 %v3303
    %v3305 = vand.u32 %v2775, 4294901760
    %v3306 = vsub.f32 %v2775, %v3305
    %3307 = vmatpush.msra.mxu0 %v3306
    %v3308 = vand.u32 %v2769, 4294901760
    %v3309 = vsub.f32 %v2769, %v3308
    %3310 = vmatpush.msra.mxu0 %v3309
    %v3311 = vand.u32 %v2763, 4294901760
    %v3312 = vsub.f32 %v2763, %v3311
    %3313 = vmatpush.msra.mxu0 %v3312
    %v3314 = vand.u32 %v2757, 4294901760
    %v3315 = vsub.f32 %v2757, %v3314
    %3316 = vmatpush.msra.mxu0 %v3315
    %v3317 = vand.u32 %v2817, 4294901760
    %v3318 = vsub.f32 %v2817, %v3317
    %3319 = vmatmul.f32.gmra.mxu0 %v3318
    %v3320 = vpop.f32.mrf.mxu0
    %v3321 = vadd.f32 %v3289, %v3320
    %3322 = vdwg.mxu0
    %3323 = vmatpush.msra.mxu0 0.0
    %3324 = vmatpush.msra.mxu0 0.0
    %3325 = vmatpush.msra.mxu0 0.0
    %3326 = vmatpush.msra.mxu0 0.0
    %3327 = vmatpush.msra.mxu0 0.0
    %3328 = vmatpush.msra.mxu0 0.0
    %3329 = vmatpush.msra.mxu0 0.0
    %3330 = vmatpush.msra.mxu0 0.0
    %3331 = vmatpush.msra.mxu0 0.0
    %3332 = vmatpush.msra.mxu0 0.0
    %3333 = vmatpush.msra.mxu0 0.0
    %v3334 = vand.u32 %v2781, 4294901760
    %3335 = vmatpush.msra.mxu0 %v3334
    %v3336 = vand.u32 %v2775, 4294901760
    %3337 = vmatpush.msra.mxu0 %v3336
    %v3338 = vand.u32 %v2769, 4294901760
    %3339 = vmatpush.msra.mxu0 %v3338
    %v3340 = vand.u32 %v2763, 4294901760
    %3341 = vmatpush.msra.mxu0 %v3340
    %v3342 = vand.u32 %v2757, 4294901760
    %3343 = vmatpush.msra.mxu0 %v3342
    %v3344 = vand.u32 %v2817, 4294901760
    %v3345 = vsub.f32 %v2817, %v3344
    %v3346 = vand.u32 %v3345, 4294901760
    %3347 = vmatmul.f32.gmra.mxu0 %v3346
    %v3348 = vpop.f32.mrf.mxu0
    %v3349 = vadd.f32 %v3321, %v3348
    %3350 = vdwg.mxu0
    %3351 = vmatpush.msra.mxu0 0.0
    %3352 = vmatpush.msra.mxu0 0.0
    %3353 = vmatpush.msra.mxu0 0.0
    %3354 = vmatpush.msra.mxu0 0.0
    %3355 = vmatpush.msra.mxu0 0.0
    %3356 = vmatpush.msra.mxu0 0.0
    %3357 = vmatpush.msra.mxu0 0.0
    %3358 = vmatpush.msra.mxu0 0.0
    %3359 = vmatpush.msra.mxu0 0.0
    %3360 = vmatpush.msra.mxu0 0.0
    %3361 = vmatpush.msra.mxu0 0.0
    %v3362 = vand.u32 %v2781, 4294901760
    %v3363 = vsub.f32 %v2781, %v3362
    %v3364 = vand.u32 %v3363, 4294901760
    %3365 = vmatpush.msra.mxu0 %v3364
    %v3366 = vand.u32 %v2775, 4294901760
    %v3367 = vsub.f32 %v2775, %v3366
    %v3368 = vand.u32 %v3367, 4294901760
    %3369 = vmatpush.msra.mxu0 %v3368
    %v3370 = vand.u32 %v2769, 4294901760
    %v3371 = vsub.f32 %v2769, %v3370
    %v3372 = vand.u32 %v3371, 4294901760
    %3373 = vmatpush.msra.mxu0 %v3372
    %v3374 = vand.u32 %v2763, 4294901760
    %v3375 = vsub.f32 %v2763, %v3374
    %v3376 = vand.u32 %v3375, 4294901760
    %3377 = vmatpush.msra.mxu0 %v3376
    %v3378 = vand.u32 %v2757, 4294901760
    %v3379 = vsub.f32 %v2757, %v3378
    %v3380 = vand.u32 %v3379, 4294901760
    %3381 = vmatpush.msra.mxu0 %v3380
    %v3382 = vand.u32 %v2817, 4294901760
    %3383 = vmatmul.f32.gmra.mxu0 %v3382
    %v3384 = vpop.f32.mrf.mxu0
    %v3385 = vadd.f32 %v3349, %v3384
    %3386 = vdwg.mxu0
    %3387 = vmatpush.msra.mxu0 0.0
    %3388 = vmatpush.msra.mxu0 0.0
    %3389 = vmatpush.msra.mxu0 0.0
    %3390 = vmatpush.msra.mxu0 0.0
    %3391 = vmatpush.msra.mxu0 0.0
    %3392 = vmatpush.msra.mxu0 0.0
    %3393 = vmatpush.msra.mxu0 0.0
    %3394 = vmatpush.msra.mxu0 0.0
    %3395 = vmatpush.msra.mxu0 0.0
    %3396 = vmatpush.msra.mxu0 0.0
    %3397 = vmatpush.msra.mxu0 0.0
    %v3398 = vand.u32 %v2781, 4294901760
    %3399 = vmatpush.msra.mxu0 %v3398
    %v3400 = vand.u32 %v2775, 4294901760
    %3401 = vmatpush.msra.mxu0 %v3400
    %v3402 = vand.u32 %v2769, 4294901760
    %3403 = vmatpush.msra.mxu0 %v3402
    %v3404 = vand.u32 %v2763, 4294901760
    %3405 = vmatpush.msra.mxu0 %v3404
    %v3406 = vand.u32 %v2757, 4294901760
    %3407 = vmatpush.msra.mxu0 %v3406
    %v3408 = vand.u32 %v2817, 4294901760
    %3409 = vmatmul.f32.gmra.mxu0 %v3408
    %v3410 = vpop.f32.mrf.mxu0
    %v3411 = vadd.f32 %v3385, %v3410
    %3412 = vdwg.mxu0
    %3413 = vmatpush.msra.mxu0 0.0
    %3414 = vmatpush.msra.mxu0 0.0
    %3415 = vmatpush.msra.mxu0 0.0
    %3416 = vmatpush.msra.mxu0 0.0
    %3417 = vmatpush.msra.mxu0 0.0
    %3418 = vmatpush.msra.mxu0 0.0
    %3419 = vmatpush.msra.mxu0 0.0
    %3420 = vmatpush.msra.mxu0 0.0
    %3421 = vmatpush.msra.mxu0 0.0
    %3422 = vmatpush.msra.mxu0 0.0
    %3423 = vmatpush.msra.mxu0 0.0
    %v3424 = vand.u32 %v2782, 4294901760
    %3425 = vmatpush.msra.mxu0 %v3424
    %v3426 = vand.u32 %v2776, 4294901760
    %3427 = vmatpush.msra.mxu0 %v3426
    %v3428 = vand.u32 %v2770, 4294901760
    %3429 = vmatpush.msra.mxu0 %v3428
    %v3430 = vand.u32 %v2764, 4294901760
    %3431 = vmatpush.msra.mxu0 %v3430
    %v3432 = vand.u32 %v2758, 4294901760
    %3433 = vmatpush.msra.mxu0 %v3432
    %v3434 = vand.u32 %v2817, 4294901760
    %v3435 = vsub.f32 %v2817, %v3434
    %v3436 = vand.u32 %v3435, 4294901760
    %v3437 = vsub.f32 %v3435, %v3436
    %v3438 = vand.u32 %v3437, 4294901760
    %3439 = vmatmul.f32.gmra.mxu0 %v3438
    %v3440 = vpop.f32.mrf.mxu0
    %v3441 = vadd.f32 0.0, %v3440
    %3442 = vdwg.mxu0
    %3443 = vmatpush.msra.mxu0 0.0
    %3444 = vmatpush.msra.mxu0 0.0
    %3445 = vmatpush.msra.mxu0 0.0
    %3446 = vmatpush.msra.mxu0 0.0
    %3447 = vmatpush.msra.mxu0 0.0
    %3448 = vmatpush.msra.mxu0 0.0
    %3449 = vmatpush.msra.mxu0 0.0
    %3450 = vmatpush.msra.mxu0 0.0
    %3451 = vmatpush.msra.mxu0 0.0
    %3452 = vmatpush.msra.mxu0 0.0
    %3453 = vmatpush.msra.mxu0 0.0
    %v3454 = vand.u32 %v2782, 4294901760
    %v3455 = vsub.f32 %v2782, %v3454
    %v3456 = vand.u32 %v3455, 4294901760
    %v3457 = vsub.f32 %v3455, %v3456
    %v3458 = vand.u32 %v3457, 4294901760
    %3459 = vmatpush.msra.mxu0 %v3458
    %v3460 = vand.u32 %v2776, 4294901760
    %v3461 = vsub.f32 %v2776, %v3460
    %v3462 = vand.u32 %v3461, 4294901760
    %v3463 = vsub.f32 %v3461, %v3462
    %v3464 = vand.u32 %v3463, 4294901760
    %3465 = vmatpush.msra.mxu0 %v3464
    %v3466 = vand.u32 %v2770, 4294901760
    %v3467 = vsub.f32 %v2770, %v3466
    %v3468 = vand.u32 %v3467, 4294901760
    %v3469 = vsub.f32 %v3467, %v3468
    %v3470 = vand.u32 %v3469, 4294901760
    %3471 = vmatpush.msra.mxu0 %v3470
    %v3472 = vand.u32 %v2764, 4294901760
    %v3473 = vsub.f32 %v2764, %v3472
    %v3474 = vand.u32 %v3473, 4294901760
    %v3475 = vsub.f32 %v3473, %v3474
    %v3476 = vand.u32 %v3475, 4294901760
    %3477 = vmatpush.msra.mxu0 %v3476
    %v3478 = vand.u32 %v2758, 4294901760
    %v3479 = vsub.f32 %v2758, %v3478
    %v3480 = vand.u32 %v3479, 4294901760
    %v3481 = vsub.f32 %v3479, %v3480
    %v3482 = vand.u32 %v3481, 4294901760
    %3483 = vmatpush.msra.mxu0 %v3482
    %v3484 = vand.u32 %v2817, 4294901760
    %3485 = vmatmul.f32.gmra.mxu0 %v3484
    %v3486 = vpop.f32.mrf.mxu0
    %v3487 = vadd.f32 %v3441, %v3486
    %3488 = vdwg.mxu0
    %3489 = vmatpush.msra.mxu0 0.0
    %3490 = vmatpush.msra.mxu0 0.0
    %3491 = vmatpush.msra.mxu0 0.0
    %3492 = vmatpush.msra.mxu0 0.0
    %3493 = vmatpush.msra.mxu0 0.0
    %3494 = vmatpush.msra.mxu0 0.0
    %3495 = vmatpush.msra.mxu0 0.0
    %3496 = vmatpush.msra.mxu0 0.0
    %3497 = vmatpush.msra.mxu0 0.0
    %3498 = vmatpush.msra.mxu0 0.0
    %3499 = vmatpush.msra.mxu0 0.0
    %v3500 = vand.u32 %v2782, 4294901760
    %v3501 = vsub.f32 %v2782, %v3500
    %3502 = vmatpush.msra.mxu0 %v3501
    %v3503 = vand.u32 %v2776, 4294901760
    %v3504 = vsub.f32 %v2776, %v3503
    %3505 = vmatpush.msra.mxu0 %v3504
    %v3506 = vand.u32 %v2770, 4294901760
    %v3507 = vsub.f32 %v2770, %v3506
    %3508 = vmatpush.msra.mxu0 %v3507
    %v3509 = vand.u32 %v2764, 4294901760
    %v3510 = vsub.f32 %v2764, %v3509
    %3511 = vmatpush.msra.mxu0 %v3510
    %v3512 = vand.u32 %v2758, 4294901760
    %v3513 = vsub.f32 %v2758, %v3512
    %3514 = vmatpush.msra.mxu0 %v3513
    %v3515 = vand.u32 %v2817, 4294901760
    %v3516 = vsub.f32 %v2817, %v3515
    %3517 = vmatmul.f32.gmra.mxu0 %v3516
    %v3518 = vpop.f32.mrf.mxu0
    %v3519 = vadd.f32 %v3487, %v3518
    %3520 = vdwg.mxu0
    %3521 = vmatpush.msra.mxu0 0.0
    %3522 = vmatpush.msra.mxu0 0.0
    %3523 = vmatpush.msra.mxu0 0.0
    %3524 = vmatpush.msra.mxu0 0.0
    %3525 = vmatpush.msra.mxu0 0.0
    %3526 = vmatpush.msra.mxu0 0.0
    %3527 = vmatpush.msra.mxu0 0.0
    %3528 = vmatpush.msra.mxu0 0.0
    %3529 = vmatpush.msra.mxu0 0.0
    %3530 = vmatpush.msra.mxu0 0.0
    %3531 = vmatpush.msra.mxu0 0.0
    %v3532 = vand.u32 %v2782, 4294901760
    %3533 = vmatpush.msra.mxu0 %v3532
    %v3534 = vand.u32 %v2776, 4294901760
    %3535 = vmatpush.msra.mxu0 %v3534
    %v3536 = vand.u32 %v2770, 4294901760
    %3537 = vmatpush.msra.mxu0 %v3536
    %v3538 = vand.u32 %v2764, 4294901760
    %3539 = vmatpush.msra.mxu0 %v3538
    %v3540 = vand.u32 %v2758, 4294901760
    %3541 = vmatpush.msra.mxu0 %v3540
    %v3542 = vand.u32 %v2817, 4294901760
    %v3543 = vsub.f32 %v2817, %v3542
    %v3544 = vand.u32 %v3543, 4294901760
    %3545 = vmatmul.f32.gmra.mxu0 %v3544
    %v3546 = vpop.f32.mrf.mxu0
    %v3547 = vadd.f32 %v3519, %v3546
    %3548 = vdwg.mxu0
    %3549 = vmatpush.msra.mxu0 0.0
    %3550 = vmatpush.msra.mxu0 0.0
    %3551 = vmatpush.msra.mxu0 0.0
    %3552 = vmatpush.msra.mxu0 0.0
    %3553 = vmatpush.msra.mxu0 0.0
    %3554 = vmatpush.msra.mxu0 0.0
    %3555 = vmatpush.msra.mxu0 0.0
    %3556 = vmatpush.msra.mxu0 0.0
    %3557 = vmatpush.msra.mxu0 0.0
    %3558 = vmatpush.msra.mxu0 0.0
    %3559 = vmatpush.msra.mxu0 0.0
    %v3560 = vand.u32 %v2782, 4294901760
    %v3561 = vsub.f32 %v2782, %v3560
    %v3562 = vand.u32 %v3561, 4294901760
    %3563 = vmatpush.msra.mxu0 %v3562
    %v3564 = vand.u32 %v2776, 4294901760
    %v3565 = vsub.f32 %v2776, %v3564
    %v3566 = vand.u32 %v3565, 4294901760
    %3567 = vmatpush.msra.mxu0 %v3566
    %v3568 = vand.u32 %v2770, 4294901760
    %v3569 = vsub.f32 %v2770, %v3568
    %v3570 = vand.u32 %v3569, 4294901760
    %3571 = vmatpush.msra.mxu0 %v3570
    %v3572 = vand.u32 %v2764, 4294901760
    %v3573 = vsub.f32 %v2764, %v3572
    %v3574 = vand.u32 %v3573, 4294901760
    %3575 = vmatpush.msra.mxu0 %v3574
    %v3576 = vand.u32 %v2758, 4294901760
    %v3577 = vsub.f32 %v2758, %v3576
    %v3578 = vand.u32 %v3577, 4294901760
    %3579 = vmatpush.msra.mxu0 %v3578
    %v3580 = vand.u32 %v2817, 4294901760
    %3581 = vmatmul.f32.gmra.mxu0 %v3580
    %v3582 = vpop.f32.mrf.mxu0
    %v3583 = vadd.f32 %v3547, %v3582
    %3584 = vdwg.mxu0
    %3585 = vmatpush.msra.mxu0 0.0
    %3586 = vmatpush.msra.mxu0 0.0
    %3587 = vmatpush.msra.mxu0 0.0
    %3588 = vmatpush.msra.mxu0 0.0
    %3589 = vmatpush.msra.mxu0 0.0
    %3590 = vmatpush.msra.mxu0 0.0
    %3591 = vmatpush.msra.mxu0 0.0
    %3592 = vmatpush.msra.mxu0 0.0
    %3593 = vmatpush.msra.mxu0 0.0
    %3594 = vmatpush.msra.mxu0 0.0
    %3595 = vmatpush.msra.mxu0 0.0
    %v3596 = vand.u32 %v2782, 4294901760
    %3597 = vmatpush.msra.mxu0 %v3596
    %v3598 = vand.u32 %v2776, 4294901760
    %3599 = vmatpush.msra.mxu0 %v3598
    %v3600 = vand.u32 %v2770, 4294901760
    %3601 = vmatpush.msra.mxu0 %v3600
    %v3602 = vand.u32 %v2764, 4294901760
    %3603 = vmatpush.msra.mxu0 %v3602
    %v3604 = vand.u32 %v2758, 4294901760
    %3605 = vmatpush.msra.mxu0 %v3604
    %v3606 = vand.u32 %v2817, 4294901760
    %3607 = vmatmul.f32.gmra.mxu0 %v3606
    %v3608 = vpop.f32.mrf.mxu0
    %v3609 = vadd.f32 %v3583, %v3608
    %3610 = vdwg.mxu0
    %3611 = vmatpush.msra.mxu0 0.0
    %3612 = vmatpush.msra.mxu0 0.0
    %3613 = vmatpush.msra.mxu0 0.0
    %3614 = vmatpush.msra.mxu0 0.0
    %3615 = vmatpush.msra.mxu0 0.0
    %3616 = vmatpush.msra.mxu0 0.0
    %3617 = vmatpush.msra.mxu0 0.0
    %3618 = vmatpush.msra.mxu0 0.0
    %3619 = vmatpush.msra.mxu0 0.0
    %3620 = vmatpush.msra.mxu0 0.0
    %3621 = vmatpush.msra.mxu0 0.0
    %v3622 = vand.u32 %v2783, 4294901760
    %3623 = vmatpush.msra.mxu0 %v3622
    %v3624 = vand.u32 %v2777, 4294901760
    %3625 = vmatpush.msra.mxu0 %v3624
    %v3626 = vand.u32 %v2771, 4294901760
    %3627 = vmatpush.msra.mxu0 %v3626
    %v3628 = vand.u32 %v2765, 4294901760
    %3629 = vmatpush.msra.mxu0 %v3628
    %v3630 = vand.u32 %v2759, 4294901760
    %3631 = vmatpush.msra.mxu0 %v3630
    %v3632 = vand.u32 %v2817, 4294901760
    %v3633 = vsub.f32 %v2817, %v3632
    %v3634 = vand.u32 %v3633, 4294901760
    %v3635 = vsub.f32 %v3633, %v3634
    %v3636 = vand.u32 %v3635, 4294901760
    %3637 = vmatmul.f32.gmra.mxu0 %v3636
    %v3638 = vpop.f32.mrf.mxu0
    %v3639 = vadd.f32 0.0, %v3638
    %3640 = vdwg.mxu0
    %3641 = vmatpush.msra.mxu0 0.0
    %3642 = vmatpush.msra.mxu0 0.0
    %3643 = vmatpush.msra.mxu0 0.0
    %3644 = vmatpush.msra.mxu0 0.0
    %3645 = vmatpush.msra.mxu0 0.0
    %3646 = vmatpush.msra.mxu0 0.0
    %3647 = vmatpush.msra.mxu0 0.0
    %3648 = vmatpush.msra.mxu0 0.0
    %3649 = vmatpush.msra.mxu0 0.0
    %3650 = vmatpush.msra.mxu0 0.0
    %3651 = vmatpush.msra.mxu0 0.0
    %v3652 = vand.u32 %v2783, 4294901760
    %v3653 = vsub.f32 %v2783, %v3652
    %v3654 = vand.u32 %v3653, 4294901760
    %v3655 = vsub.f32 %v3653, %v3654
    %v3656 = vand.u32 %v3655, 4294901760
    %3657 = vmatpush.msra.mxu0 %v3656
    %v3658 = vand.u32 %v2777, 4294901760
    %v3659 = vsub.f32 %v2777, %v3658
    %v3660 = vand.u32 %v3659, 4294901760
    %v3661 = vsub.f32 %v3659, %v3660
    %v3662 = vand.u32 %v3661, 4294901760
    %3663 = vmatpush.msra.mxu0 %v3662
    %v3664 = vand.u32 %v2771, 4294901760
    %v3665 = vsub.f32 %v2771, %v3664
    %v3666 = vand.u32 %v3665, 4294901760
    %v3667 = vsub.f32 %v3665, %v3666
    %v3668 = vand.u32 %v3667, 4294901760
    %3669 = vmatpush.msra.mxu0 %v3668
    %v3670 = vand.u32 %v2765, 4294901760
    %v3671 = vsub.f32 %v2765, %v3670
    %v3672 = vand.u32 %v3671, 4294901760
    %v3673 = vsub.f32 %v3671, %v3672
    %v3674 = vand.u32 %v3673, 4294901760
    %3675 = vmatpush.msra.mxu0 %v3674
    %v3676 = vand.u32 %v2759, 4294901760
    %v3677 = vsub.f32 %v2759, %v3676
    %v3678 = vand.u32 %v3677, 4294901760
    %v3679 = vsub.f32 %v3677, %v3678
    %v3680 = vand.u32 %v3679, 4294901760
    %3681 = vmatpush.msra.mxu0 %v3680
    %v3682 = vand.u32 %v2817, 4294901760
    %3683 = vmatmul.f32.gmra.mxu0 %v3682
    %v3684 = vpop.f32.mrf.mxu0
    %v3685 = vadd.f32 %v3639, %v3684
    %3686 = vdwg.mxu0
    %3687 = vmatpush.msra.mxu0 0.0
    %3688 = vmatpush.msra.mxu0 0.0
    %3689 = vmatpush.msra.mxu0 0.0
    %3690 = vmatpush.msra.mxu0 0.0
    %3691 = vmatpush.msra.mxu0 0.0
    %3692 = vmatpush.msra.mxu0 0.0
    %3693 = vmatpush.msra.mxu0 0.0
    %3694 = vmatpush.msra.mxu0 0.0
    %3695 = vmatpush.msra.mxu0 0.0
    %3696 = vmatpush.msra.mxu0 0.0
    %3697 = vmatpush.msra.mxu0 0.0
    %v3698 = vand.u32 %v2783, 4294901760
    %v3699 = vsub.f32 %v2783, %v3698
    %3700 = vmatpush.msra.mxu0 %v3699
    %v3701 = vand.u32 %v2777, 4294901760
    %v3702 = vsub.f32 %v2777, %v3701
    %3703 = vmatpush.msra.mxu0 %v3702
    %v3704 = vand.u32 %v2771, 4294901760
    %v3705 = vsub.f32 %v2771, %v3704
    %3706 = vmatpush.msra.mxu0 %v3705
    %v3707 = vand.u32 %v2765, 4294901760
    %v3708 = vsub.f32 %v2765, %v3707
    %3709 = vmatpush.msra.mxu0 %v3708
    %v3710 = vand.u32 %v2759, 4294901760
    %v3711 = vsub.f32 %v2759, %v3710
    %3712 = vmatpush.msra.mxu0 %v3711
    %v3713 = vand.u32 %v2817, 4294901760
    %v3714 = vsub.f32 %v2817, %v3713
    %3715 = vmatmul.f32.gmra.mxu0 %v3714
    %v3716 = vpop.f32.mrf.mxu0
    %v3717 = vadd.f32 %v3685, %v3716
    %3718 = vdwg.mxu0
    %3719 = vmatpush.msra.mxu0 0.0
    %3720 = vmatpush.msra.mxu0 0.0
    %3721 = vmatpush.msra.mxu0 0.0
    %3722 = vmatpush.msra.mxu0 0.0
    %3723 = vmatpush.msra.mxu0 0.0
    %3724 = vmatpush.msra.mxu0 0.0
    %3725 = vmatpush.msra.mxu0 0.0
    %3726 = vmatpush.msra.mxu0 0.0
    %3727 = vmatpush.msra.mxu0 0.0
    %3728 = vmatpush.msra.mxu0 0.0
    %3729 = vmatpush.msra.mxu0 0.0
    %v3730 = vand.u32 %v2783, 4294901760
    %3731 = vmatpush.msra.mxu0 %v3730
    %v3732 = vand.u32 %v2777, 4294901760
    %3733 = vmatpush.msra.mxu0 %v3732
    %v3734 = vand.u32 %v2771, 4294901760
    %3735 = vmatpush.msra.mxu0 %v3734
    %v3736 = vand.u32 %v2765, 4294901760
    %3737 = vmatpush.msra.mxu0 %v3736
    %v3738 = vand.u32 %v2759, 4294901760
    %3739 = vmatpush.msra.mxu0 %v3738
    %v3740 = vand.u32 %v2817, 4294901760
    %v3741 = vsub.f32 %v2817, %v3740
    %v3742 = vand.u32 %v3741, 4294901760
    %3743 = vmatmul.f32.gmra.mxu0 %v3742
    %v3744 = vpop.f32.mrf.mxu0
    %v3745 = vadd.f32 %v3717, %v3744
    %3746 = vdwg.mxu0
    %3747 = vmatpush.msra.mxu0 0.0
    %3748 = vmatpush.msra.mxu0 0.0
    %3749 = vmatpush.msra.mxu0 0.0
    %3750 = vmatpush.msra.mxu0 0.0
    %3751 = vmatpush.msra.mxu0 0.0
    %3752 = vmatpush.msra.mxu0 0.0
    %3753 = vmatpush.msra.mxu0 0.0
    %3754 = vmatpush.msra.mxu0 0.0
    %3755 = vmatpush.msra.mxu0 0.0
    %3756 = vmatpush.msra.mxu0 0.0
    %3757 = vmatpush.msra.mxu0 0.0
    %v3758 = vand.u32 %v2783, 4294901760
    %v3759 = vsub.f32 %v2783, %v3758
    %v3760 = vand.u32 %v3759, 4294901760
    %3761 = vmatpush.msra.mxu0 %v3760
    %v3762 = vand.u32 %v2777, 4294901760
    %v3763 = vsub.f32 %v2777, %v3762
    %v3764 = vand.u32 %v3763, 4294901760
    %3765 = vmatpush.msra.mxu0 %v3764
    %v3766 = vand.u32 %v2771, 4294901760
    %v3767 = vsub.f32 %v2771, %v3766
    %v3768 = vand.u32 %v3767, 4294901760
    %3769 = vmatpush.msra.mxu0 %v3768
    %v3770 = vand.u32 %v2765, 4294901760
    %v3771 = vsub.f32 %v2765, %v3770
    %v3772 = vand.u32 %v3771, 4294901760
    %3773 = vmatpush.msra.mxu0 %v3772
    %v3774 = vand.u32 %v2759, 4294901760
    %v3775 = vsub.f32 %v2759, %v3774
    %v3776 = vand.u32 %v3775, 4294901760
    %3777 = vmatpush.msra.mxu0 %v3776
    %v3778 = vand.u32 %v2817, 4294901760
    %3779 = vmatmul.f32.gmra.mxu0 %v3778
    %v3780 = vpop.f32.mrf.mxu0
    %v3781 = vadd.f32 %v3745, %v3780
    %3782 = vdwg.mxu0
    %3783 = vmatpush.msra.mxu0 0.0
    %3784 = vmatpush.msra.mxu0 0.0
    %3785 = vmatpush.msra.mxu0 0.0
    %3786 = vmatpush.msra.mxu0 0.0
    %3787 = vmatpush.msra.mxu0 0.0
    %3788 = vmatpush.msra.mxu0 0.0
    %3789 = vmatpush.msra.mxu0 0.0
    %3790 = vmatpush.msra.mxu0 0.0
    %3791 = vmatpush.msra.mxu0 0.0
    %3792 = vmatpush.msra.mxu0 0.0
    %3793 = vmatpush.msra.mxu0 0.0
    %v3794 = vand.u32 %v2783, 4294901760
    %3795 = vmatpush.msra.mxu0 %v3794
    %v3796 = vand.u32 %v2777, 4294901760
    %3797 = vmatpush.msra.mxu0 %v3796
    %v3798 = vand.u32 %v2771, 4294901760
    %3799 = vmatpush.msra.mxu0 %v3798
    %v3800 = vand.u32 %v2765, 4294901760
    %3801 = vmatpush.msra.mxu0 %v3800
    %v3802 = vand.u32 %v2759, 4294901760
    %3803 = vmatpush.msra.mxu0 %v3802
    %v3804 = vand.u32 %v2817, 4294901760
    %3805 = vmatmul.f32.gmra.mxu0 %v3804
    %v3806 = vpop.f32.mrf.mxu0
    %v3807 = vadd.f32 %v3781, %v3806
    %3808 = vdwg.mxu0
    %3809 = vmatpush.msra.mxu0 0.0
    %3810 = vmatpush.msra.mxu0 0.0
    %3811 = vmatpush.msra.mxu0 0.0
    %3812 = vmatpush.msra.mxu0 0.0
    %3813 = vmatpush.msra.mxu0 0.0
    %3814 = vmatpush.msra.mxu0 0.0
    %3815 = vmatpush.msra.mxu0 0.0
    %3816 = vmatpush.msra.mxu0 0.0
    %3817 = vmatpush.msra.mxu0 0.0
    %3818 = vmatpush.msra.mxu0 0.0
    %3819 = vmatpush.msra.mxu0 0.0
    %v3820 = vand.u32 %v2784, 4294901760
    %3821 = vmatpush.msra.mxu0 %v3820
    %v3822 = vand.u32 %v2778, 4294901760
    %3823 = vmatpush.msra.mxu0 %v3822
    %v3824 = vand.u32 %v2772, 4294901760
    %3825 = vmatpush.msra.mxu0 %v3824
    %v3826 = vand.u32 %v2766, 4294901760
    %3827 = vmatpush.msra.mxu0 %v3826
    %v3828 = vand.u32 %v2760, 4294901760
    %3829 = vmatpush.msra.mxu0 %v3828
    %v3830 = vand.u32 %v2817, 4294901760
    %v3831 = vsub.f32 %v2817, %v3830
    %v3832 = vand.u32 %v3831, 4294901760
    %v3833 = vsub.f32 %v3831, %v3832
    %v3834 = vand.u32 %v3833, 4294901760
    %3835 = vmatmul.f32.gmra.mxu0 %v3834
    %v3836 = vpop.f32.mrf.mxu0
    %v3837 = vadd.f32 0.0, %v3836
    %3838 = vdwg.mxu0
    %3839 = vmatpush.msra.mxu0 0.0
    %3840 = vmatpush.msra.mxu0 0.0
    %3841 = vmatpush.msra.mxu0 0.0
    %3842 = vmatpush.msra.mxu0 0.0
    %3843 = vmatpush.msra.mxu0 0.0
    %3844 = vmatpush.msra.mxu0 0.0
    %3845 = vmatpush.msra.mxu0 0.0
    %3846 = vmatpush.msra.mxu0 0.0
    %3847 = vmatpush.msra.mxu0 0.0
    %3848 = vmatpush.msra.mxu0 0.0
    %3849 = vmatpush.msra.mxu0 0.0
    %v3850 = vand.u32 %v2784, 4294901760
    %v3851 = vsub.f32 %v2784, %v3850
    %v3852 = vand.u32 %v3851, 4294901760
    %v3853 = vsub.f32 %v3851, %v3852
    %v3854 = vand.u32 %v3853, 4294901760
    %3855 = vmatpush.msra.mxu0 %v3854
    %v3856 = vand.u32 %v2778, 4294901760
    %v3857 = vsub.f32 %v2778, %v3856
    %v3858 = vand.u32 %v3857, 4294901760
    %v3859 = vsub.f32 %v3857, %v3858
    %v3860 = vand.u32 %v3859, 4294901760
    %3861 = vmatpush.msra.mxu0 %v3860
    %v3862 = vand.u32 %v2772, 4294901760
    %v3863 = vsub.f32 %v2772, %v3862
    %v3864 = vand.u32 %v3863, 4294901760
    %v3865 = vsub.f32 %v3863, %v3864
    %v3866 = vand.u32 %v3865, 4294901760
    %3867 = vmatpush.msra.mxu0 %v3866
    %v3868 = vand.u32 %v2766, 4294901760
    %v3869 = vsub.f32 %v2766, %v3868
    %v3870 = vand.u32 %v3869, 4294901760
    %v3871 = vsub.f32 %v3869, %v3870
    %v3872 = vand.u32 %v3871, 4294901760
    %3873 = vmatpush.msra.mxu0 %v3872
    %v3874 = vand.u32 %v2760, 4294901760
    %v3875 = vsub.f32 %v2760, %v3874
    %v3876 = vand.u32 %v3875, 4294901760
    %v3877 = vsub.f32 %v3875, %v3876
    %v3878 = vand.u32 %v3877, 4294901760
    %3879 = vmatpush.msra.mxu0 %v3878
    %v3880 = vand.u32 %v2817, 4294901760
    %3881 = vmatmul.f32.gmra.mxu0 %v3880
    %v3882 = vpop.f32.mrf.mxu0
    %v3883 = vadd.f32 %v3837, %v3882
    %3884 = vdwg.mxu0
    %3885 = vmatpush.msra.mxu0 0.0
    %3886 = vmatpush.msra.mxu0 0.0
    %3887 = vmatpush.msra.mxu0 0.0
    %3888 = vmatpush.msra.mxu0 0.0
    %3889 = vmatpush.msra.mxu0 0.0
    %3890 = vmatpush.msra.mxu0 0.0
    %3891 = vmatpush.msra.mxu0 0.0
    %3892 = vmatpush.msra.mxu0 0.0
    %3893 = vmatpush.msra.mxu0 0.0
    %3894 = vmatpush.msra.mxu0 0.0
    %3895 = vmatpush.msra.mxu0 0.0
    %v3896 = vand.u32 %v2784, 4294901760
    %v3897 = vsub.f32 %v2784, %v3896
    %3898 = vmatpush.msra.mxu0 %v3897
    %v3899 = vand.u32 %v2778, 4294901760
    %v3900 = vsub.f32 %v2778, %v3899
    %3901 = vmatpush.msra.mxu0 %v3900
    %v3902 = vand.u32 %v2772, 4294901760
    %v3903 = vsub.f32 %v2772, %v3902
    %3904 = vmatpush.msra.mxu0 %v3903
    %v3905 = vand.u32 %v2766, 4294901760
    %v3906 = vsub.f32 %v2766, %v3905
    %3907 = vmatpush.msra.mxu0 %v3906
    %v3908 = vand.u32 %v2760, 4294901760
    %v3909 = vsub.f32 %v2760, %v3908
    %3910 = vmatpush.msra.mxu0 %v3909
    %v3911 = vand.u32 %v2817, 4294901760
    %v3912 = vsub.f32 %v2817, %v3911
    %3913 = vmatmul.f32.gmra.mxu0 %v3912
    %v3914 = vpop.f32.mrf.mxu0
    %v3915 = vadd.f32 %v3883, %v3914
    %3916 = vdwg.mxu0
    %3917 = vmatpush.msra.mxu0 0.0
    %3918 = vmatpush.msra.mxu0 0.0
    %3919 = vmatpush.msra.mxu0 0.0
    %3920 = vmatpush.msra.mxu0 0.0
    %3921 = vmatpush.msra.mxu0 0.0
    %3922 = vmatpush.msra.mxu0 0.0
    %3923 = vmatpush.msra.mxu0 0.0
    %3924 = vmatpush.msra.mxu0 0.0
    %3925 = vmatpush.msra.mxu0 0.0
    %3926 = vmatpush.msra.mxu0 0.0
    %3927 = vmatpush.msra.mxu0 0.0
    %v3928 = vand.u32 %v2784, 4294901760
    %3929 = vmatpush.msra.mxu0 %v3928
    %v3930 = vand.u32 %v2778, 4294901760
    %3931 = vmatpush.msra.mxu0 %v3930
    %v3932 = vand.u32 %v2772, 4294901760
    %3933 = vmatpush.msra.mxu0 %v3932
    %v3934 = vand.u32 %v2766, 4294901760
    %3935 = vmatpush.msra.mxu0 %v3934
    %v3936 = vand.u32 %v2760, 4294901760
    %3937 = vmatpush.msra.mxu0 %v3936
    %v3938 = vand.u32 %v2817, 4294901760
    %v3939 = vsub.f32 %v2817, %v3938
    %v3940 = vand.u32 %v3939, 4294901760
    %3941 = vmatmul.f32.gmra.mxu0 %v3940
    %v3942 = vpop.f32.mrf.mxu0
    %v3943 = vadd.f32 %v3915, %v3942
    %3944 = vdwg.mxu0
    %3945 = vmatpush.msra.mxu0 0.0
    %3946 = vmatpush.msra.mxu0 0.0
    %3947 = vmatpush.msra.mxu0 0.0
    %3948 = vmatpush.msra.mxu0 0.0
    %3949 = vmatpush.msra.mxu0 0.0
    %3950 = vmatpush.msra.mxu0 0.0
    %3951 = vmatpush.msra.mxu0 0.0
    %3952 = vmatpush.msra.mxu0 0.0
    %3953 = vmatpush.msra.mxu0 0.0
    %3954 = vmatpush.msra.mxu0 0.0
    %3955 = vmatpush.msra.mxu0 0.0
    %v3956 = vand.u32 %v2784, 4294901760
    %v3957 = vsub.f32 %v2784, %v3956
    %v3958 = vand.u32 %v3957, 4294901760
    %3959 = vmatpush.msra.mxu0 %v3958
    %v3960 = vand.u32 %v2778, 4294901760
    %v3961 = vsub.f32 %v2778, %v3960
    %v3962 = vand.u32 %v3961, 4294901760
    %3963 = vmatpush.msra.mxu0 %v3962
    %v3964 = vand.u32 %v2772, 4294901760
    %v3965 = vsub.f32 %v2772, %v3964
    %v3966 = vand.u32 %v3965, 4294901760
    %3967 = vmatpush.msra.mxu0 %v3966
    %v3968 = vand.u32 %v2766, 4294901760
    %v3969 = vsub.f32 %v2766, %v3968
    %v3970 = vand.u32 %v3969, 4294901760
    %3971 = vmatpush.msra.mxu0 %v3970
    %v3972 = vand.u32 %v2760, 4294901760
    %v3973 = vsub.f32 %v2760, %v3972
    %v3974 = vand.u32 %v3973, 4294901760
    %3975 = vmatpush.msra.mxu0 %v3974
    %v3976 = vand.u32 %v2817, 4294901760
    %3977 = vmatmul.f32.gmra.mxu0 %v3976
    %v3978 = vpop.f32.mrf.mxu0
    %v3979 = vadd.f32 %v3943, %v3978
    %3980 = vdwg.mxu0
    %3981 = vmatpush.msra.mxu0 0.0
    %3982 = vmatpush.msra.mxu0 0.0
    %3983 = vmatpush.msra.mxu0 0.0
    %3984 = vmatpush.msra.mxu0 0.0
    %3985 = vmatpush.msra.mxu0 0.0
    %3986 = vmatpush.msra.mxu0 0.0
    %3987 = vmatpush.msra.mxu0 0.0
    %3988 = vmatpush.msra.mxu0 0.0
    %3989 = vmatpush.msra.mxu0 0.0
    %3990 = vmatpush.msra.mxu0 0.0
    %3991 = vmatpush.msra.mxu0 0.0
    %v3992 = vand.u32 %v2784, 4294901760
    %3993 = vmatpush.msra.mxu0 %v3992
    %v3994 = vand.u32 %v2778, 4294901760
    %3995 = vmatpush.msra.mxu0 %v3994
    %v3996 = vand.u32 %v2772, 4294901760
    %3997 = vmatpush.msra.mxu0 %v3996
    %v3998 = vand.u32 %v2766, 4294901760
    %3999 = vmatpush.msra.mxu0 %v3998
    %v4000 = vand.u32 %v2760, 4294901760
    %4001 = vmatpush.msra.mxu0 %v4000
    %v4002 = vand.u32 %v2817, 4294901760
    %4003 = vmatmul.f32.gmra.mxu0 %v4002
    %v4004 = vpop.f32.mrf.mxu0
    %v4005 = vadd.f32 %v3979, %v4004
    %4006 = vdwg.mxu0
    %vm4007 = vcmp.ge.s32.totalorder %v41, 8
    %v4008 = vsel %vm4007, 1, 0
    %vm4009 = vcmp.ge.s32.totalorder %v41, 16
    %v4010 = vsel %vm4009, 1, 0
    %v4011 = vadd.s32 %v4008, %v4010
    %vm4012 = vcmp.ge.s32.totalorder %v41, 24
    %v4013 = vsel %vm4012, 1, 0
    %v4014 = vadd.s32 %v4011, %v4013
    %vm4015 = vcmp.ge.s32.totalorder %v41, 32
    %v4016 = vsel %vm4015, 1, 0
    %v4017 = vadd.s32 %v4014, %v4016
    %vm4018 = vcmp.ge.s32.totalorder %v41, 40
    %v4019 = vsel %vm4018, 1, 0
    %v4020 = vadd.s32 %v4017, %v4019
    %vm4021 = vcmp.ge.s32.totalorder %v41, 48
    %v4022 = vsel %vm4021, 1, 0
    %v4023 = vadd.s32 %v4020, %v4022
    %vm4024 = vcmp.ge.s32.totalorder %v41, 56
    %v4025 = vsel %vm4024, 1, 0
    %v4026 = vadd.s32 %v4023, %v4025
    %v4027 = vmul.u32 %v4026, 8
    %v4028 = vsub.s32 %v41, %v4027
    %v4029 = vmul.u32 %v4026, 36
    %v4030 = vadd.s32 %v4029, 49
    %v4031 = vmul.u32 %v4028, 2
    %v4032 = vadd.s32 %v4030, %v4031
    %v4033 = vlaneseq
    %v4034 = vshrl.u32 %v4033, 7
    %v4035 = vadd.s32 %v4034, 8
    %v4036 = vadd.s32 %v4034, 16
    %v4037 = vadd.s32 %v4034, 24
    %v4038 = vadd.s32 %v4034, 32
    %v4039 = vadd.s32 %v4034, 40
    %v4040 = vadd.s32 %v4034, 48
    %v4041 = vadd.s32 %v4034, 56
    %v4042 = vadd.s32 %v4034, 64
    %v4043 = vadd.s32 %v4034, 72
    %v4044 = vadd.s32 %v4034, 80
    %v4045 = vadd.s32 %v4034, 88
    %v4046 = vadd.s32 %v4034, 96
    %v4047 = vadd.s32 %v4034, 104
    %v4048 = vadd.s32 %v4034, 112
    %v4049 = vadd.s32 %v4034, 120
    %v4050 = vadd.s32 %v4034, 128
    %v4051 = vadd.s32 %v4034, 136
    %v4052 = vadd.s32 %v4034, 144
    %v4053 = vadd.s32 %v4034, 152
    %v4054 = vadd.s32 %v4034, 160
    %v4055 = vadd.s32 %v4034, 168
    %v4056 = vadd.s32 %v4034, 176
    %v4057 = vadd.s32 %v4034, 184
    %v4058 = vadd.s32 %v4034, 192
    %v4059 = vadd.s32 %v4034, 200
    %v4060 = vadd.s32 %v4034, 208
    %v4061 = vadd.s32 %v4034, 216
    %v4062 = vadd.s32 %v4034, 224
    %v4063 = vadd.s32 %v4034, 232
    %v4064 = vadd.s32 %v4034, 240
    %v4065 = vadd.s32 %v4034, 248
    %v4066 = vadd.s32 %v4034, 256
    %v4067 = vadd.s32 %v4034, 264
    %v4068 = vadd.s32 %v4034, 272
    %v4069 = vadd.s32 %v4034, 280
    %v4070 = vadd.s32 %v4034, 288
    %v4071 = vadd.s32 %v4034, 296
    %v4072 = vadd.s32 %v4034, 304
    %v4073 = vadd.s32 %v4034, 312
    %v4074 = vadd.s32 %v4034, 320
    %v4075 = vadd.s32 %v4034, 328
    %v4076 = vadd.s32 %v4034, 336
    %v4077 = vadd.s32 %v4034, 344
    %v4078 = vadd.s32 %v4034, 352
    %v4079 = vadd.s32 %v4034, 360
    %v4080 = vadd.s32 %v4034, 368
    %v4081 = vadd.s32 %v4034, 376
    %v4082 = vsub.s32 %v4034, %v4032
    %v4083 = vsub.s32 %v4035, %v4032
    %v4084 = vsub.s32 %v4036, %v4032
    %v4085 = vsub.s32 %v4037, %v4032
    %v4086 = vsub.s32 %v4038, %v4032
    %v4087 = vsub.s32 %v4039, %v4032
    %v4088 = vsub.s32 %v4040, %v4032
    %v4089 = vsub.s32 %v4041, %v4032
    %v4090 = vsub.s32 %v4042, %v4032
    %v4091 = vsub.s32 %v4043, %v4032
    %v4092 = vsub.s32 %v4044, %v4032
    %v4093 = vsub.s32 %v4045, %v4032
    %v4094 = vsub.s32 %v4046, %v4032
    %v4095 = vsub.s32 %v4047, %v4032
    %v4096 = vsub.s32 %v4048, %v4032
    %v4097 = vsub.s32 %v4049, %v4032
    %v4098 = vsub.s32 %v4050, %v4032
    %v4099 = vsub.s32 %v4051, %v4032
    %v4100 = vsub.s32 %v4052, %v4032
    %v4101 = vsub.s32 %v4053, %v4032
    %v4102 = vsub.s32 %v4054, %v4032
    %v4103 = vsub.s32 %v4055, %v4032
    %v4104 = vsub.s32 %v4056, %v4032
    %v4105 = vsub.s32 %v4057, %v4032
    %v4106 = vsub.s32 %v4058, %v4032
    %v4107 = vsub.s32 %v4059, %v4032
    %v4108 = vsub.s32 %v4060, %v4032
    %v4109 = vsub.s32 %v4061, %v4032
    %v4110 = vsub.s32 %v4062, %v4032
    %v4111 = vsub.s32 %v4063, %v4032
    %v4112 = vsub.s32 %v4064, %v4032
    %v4113 = vsub.s32 %v4065, %v4032
    %v4114 = vsub.s32 %v4066, %v4032
    %v4115 = vsub.s32 %v4067, %v4032
    %v4116 = vsub.s32 %v4068, %v4032
    %v4117 = vsub.s32 %v4069, %v4032
    %v4118 = vsub.s32 %v4070, %v4032
    %v4119 = vsub.s32 %v4071, %v4032
    %v4120 = vsub.s32 %v4072, %v4032
    %v4121 = vsub.s32 %v4073, %v4032
    %v4122 = vsub.s32 %v4074, %v4032
    %v4123 = vsub.s32 %v4075, %v4032
    %v4124 = vsub.s32 %v4076, %v4032
    %v4125 = vsub.s32 %v4077, %v4032
    %v4126 = vsub.s32 %v4078, %v4032
    %v4127 = vsub.s32 %v4079, %v4032
    %v4128 = vsub.s32 %v4080, %v4032
    %v4129 = vsub.s32 %v4081, %v4032
    %vm4130 = vcmp.eq.s32.totalorder %v4082, 0
    %vm4131 = vcmp.eq.s32.totalorder %v4083, 0
    %vm4132 = vcmp.eq.s32.totalorder %v4084, 0
    %vm4133 = vcmp.eq.s32.totalorder %v4085, 0
    %vm4134 = vcmp.eq.s32.totalorder %v4086, 0
    %vm4135 = vcmp.eq.s32.totalorder %v4087, 0
    %vm4136 = vcmp.eq.s32.totalorder %v4088, 0
    %vm4137 = vcmp.eq.s32.totalorder %v4089, 0
    %vm4138 = vcmp.eq.s32.totalorder %v4090, 0
    %vm4139 = vcmp.eq.s32.totalorder %v4091, 0
    %vm4140 = vcmp.eq.s32.totalorder %v4092, 0
    %vm4141 = vcmp.eq.s32.totalorder %v4093, 0
    %vm4142 = vcmp.eq.s32.totalorder %v4094, 0
    %vm4143 = vcmp.eq.s32.totalorder %v4095, 0
    %vm4144 = vcmp.eq.s32.totalorder %v4096, 0
    %vm4145 = vcmp.eq.s32.totalorder %v4097, 0
    %vm4146 = vcmp.eq.s32.totalorder %v4098, 0
    %vm4147 = vcmp.eq.s32.totalorder %v4099, 0
    %vm4148 = vcmp.eq.s32.totalorder %v4100, 0
    %vm4149 = vcmp.eq.s32.totalorder %v4101, 0
    %vm4150 = vcmp.eq.s32.totalorder %v4102, 0
    %vm4151 = vcmp.eq.s32.totalorder %v4103, 0
    %vm4152 = vcmp.eq.s32.totalorder %v4104, 0
    %vm4153 = vcmp.eq.s32.totalorder %v4105, 0
    %vm4154 = vcmp.eq.s32.totalorder %v4106, 0
    %vm4155 = vcmp.eq.s32.totalorder %v4107, 0
    %vm4156 = vcmp.eq.s32.totalorder %v4108, 0
    %vm4157 = vcmp.eq.s32.totalorder %v4109, 0
    %vm4158 = vcmp.eq.s32.totalorder %v4110, 0
    %vm4159 = vcmp.eq.s32.totalorder %v4111, 0
    %vm4160 = vcmp.eq.s32.totalorder %v4112, 0
    %vm4161 = vcmp.eq.s32.totalorder %v4113, 0
    %vm4162 = vcmp.eq.s32.totalorder %v4114, 0
    %vm4163 = vcmp.eq.s32.totalorder %v4115, 0
    %vm4164 = vcmp.eq.s32.totalorder %v4116, 0
    %vm4165 = vcmp.eq.s32.totalorder %v4117, 0
    %vm4166 = vcmp.eq.s32.totalorder %v4118, 0
    %vm4167 = vcmp.eq.s32.totalorder %v4119, 0
    %vm4168 = vcmp.eq.s32.totalorder %v4120, 0
    %vm4169 = vcmp.eq.s32.totalorder %v4121, 0
    %vm4170 = vcmp.eq.s32.totalorder %v4122, 0
    %vm4171 = vcmp.eq.s32.totalorder %v4123, 0
    %vm4172 = vcmp.eq.s32.totalorder %v4124, 0
    %vm4173 = vcmp.eq.s32.totalorder %v4125, 0
    %vm4174 = vcmp.eq.s32.totalorder %v4126, 0
    %vm4175 = vcmp.eq.s32.totalorder %v4127, 0
    %vm4176 = vcmp.eq.s32.totalorder %v4128, 0
    %vm4177 = vcmp.eq.s32.totalorder %v4129, 0
    %vm4178 = vcmp.eq.s32.totalorder %v4082, 1
    %vm4179 = vcmp.eq.s32.totalorder %v4083, 1
    %vm4180 = vcmp.eq.s32.totalorder %v4084, 1
    %vm4181 = vcmp.eq.s32.totalorder %v4085, 1
    %vm4182 = vcmp.eq.s32.totalorder %v4086, 1
    %vm4183 = vcmp.eq.s32.totalorder %v4087, 1
    %vm4184 = vcmp.eq.s32.totalorder %v4088, 1
    %vm4185 = vcmp.eq.s32.totalorder %v4089, 1
    %vm4186 = vcmp.eq.s32.totalorder %v4090, 1
    %vm4187 = vcmp.eq.s32.totalorder %v4091, 1
    %vm4188 = vcmp.eq.s32.totalorder %v4092, 1
    %vm4189 = vcmp.eq.s32.totalorder %v4093, 1
    %vm4190 = vcmp.eq.s32.totalorder %v4094, 1
    %vm4191 = vcmp.eq.s32.totalorder %v4095, 1
    %vm4192 = vcmp.eq.s32.totalorder %v4096, 1
    %vm4193 = vcmp.eq.s32.totalorder %v4097, 1
    %vm4194 = vcmp.eq.s32.totalorder %v4098, 1
    %vm4195 = vcmp.eq.s32.totalorder %v4099, 1
    %vm4196 = vcmp.eq.s32.totalorder %v4100, 1
    %vm4197 = vcmp.eq.s32.totalorder %v4101, 1
    %vm4198 = vcmp.eq.s32.totalorder %v4102, 1
    %vm4199 = vcmp.eq.s32.totalorder %v4103, 1
    %vm4200 = vcmp.eq.s32.totalorder %v4104, 1
    %vm4201 = vcmp.eq.s32.totalorder %v4105, 1
    %vm4202 = vcmp.eq.s32.totalorder %v4106, 1
    %vm4203 = vcmp.eq.s32.totalorder %v4107, 1
    %vm4204 = vcmp.eq.s32.totalorder %v4108, 1
    %vm4205 = vcmp.eq.s32.totalorder %v4109, 1
    %vm4206 = vcmp.eq.s32.totalorder %v4110, 1
    %vm4207 = vcmp.eq.s32.totalorder %v4111, 1
    %vm4208 = vcmp.eq.s32.totalorder %v4112, 1
    %vm4209 = vcmp.eq.s32.totalorder %v4113, 1
    %vm4210 = vcmp.eq.s32.totalorder %v4114, 1
    %vm4211 = vcmp.eq.s32.totalorder %v4115, 1
    %vm4212 = vcmp.eq.s32.totalorder %v4116, 1
    %vm4213 = vcmp.eq.s32.totalorder %v4117, 1
    %vm4214 = vcmp.eq.s32.totalorder %v4118, 1
    %vm4215 = vcmp.eq.s32.totalorder %v4119, 1
    %vm4216 = vcmp.eq.s32.totalorder %v4120, 1
    %vm4217 = vcmp.eq.s32.totalorder %v4121, 1
    %vm4218 = vcmp.eq.s32.totalorder %v4122, 1
    %vm4219 = vcmp.eq.s32.totalorder %v4123, 1
    %vm4220 = vcmp.eq.s32.totalorder %v4124, 1
    %vm4221 = vcmp.eq.s32.totalorder %v4125, 1
    %vm4222 = vcmp.eq.s32.totalorder %v4126, 1
    %vm4223 = vcmp.eq.s32.totalorder %v4127, 1
    %vm4224 = vcmp.eq.s32.totalorder %v4128, 1
    %vm4225 = vcmp.eq.s32.totalorder %v4129, 1
    %vm4226 = vmor %vm4130, %vm4178
    %vm4227 = vmor %vm4131, %vm4179
    %vm4228 = vmor %vm4132, %vm4180
    %vm4229 = vmor %vm4133, %vm4181
    %vm4230 = vmor %vm4134, %vm4182
    %vm4231 = vmor %vm4135, %vm4183
    %vm4232 = vmor %vm4136, %vm4184
    %vm4233 = vmor %vm4137, %vm4185
    %vm4234 = vmor %vm4138, %vm4186
    %vm4235 = vmor %vm4139, %vm4187
    %vm4236 = vmor %vm4140, %vm4188
    %vm4237 = vmor %vm4141, %vm4189
    %vm4238 = vmor %vm4142, %vm4190
    %vm4239 = vmor %vm4143, %vm4191
    %vm4240 = vmor %vm4144, %vm4192
    %vm4241 = vmor %vm4145, %vm4193
    %vm4242 = vmor %vm4146, %vm4194
    %vm4243 = vmor %vm4147, %vm4195
    %vm4244 = vmor %vm4148, %vm4196
    %vm4245 = vmor %vm4149, %vm4197
    %vm4246 = vmor %vm4150, %vm4198
    %vm4247 = vmor %vm4151, %vm4199
    %vm4248 = vmor %vm4152, %vm4200
    %vm4249 = vmor %vm4153, %vm4201
    %vm4250 = vmor %vm4154, %vm4202
    %vm4251 = vmor %vm4155, %vm4203
    %vm4252 = vmor %vm4156, %vm4204
    %vm4253 = vmor %vm4157, %vm4205
    %vm4254 = vmor %vm4158, %vm4206
    %vm4255 = vmor %vm4159, %vm4207
    %vm4256 = vmor %vm4160, %vm4208
    %vm4257 = vmor %vm4161, %vm4209
    %vm4258 = vmor %vm4162, %vm4210
    %vm4259 = vmor %vm4163, %vm4211
    %vm4260 = vmor %vm4164, %vm4212
    %vm4261 = vmor %vm4165, %vm4213
    %vm4262 = vmor %vm4166, %vm4214
    %vm4263 = vmor %vm4167, %vm4215
    %vm4264 = vmor %vm4168, %vm4216
    %vm4265 = vmor %vm4169, %vm4217
    %vm4266 = vmor %vm4170, %vm4218
    %vm4267 = vmor %vm4171, %vm4219
    %vm4268 = vmor %vm4172, %vm4220
    %vm4269 = vmor %vm4173, %vm4221
    %vm4270 = vmor %vm4174, %vm4222
    %vm4271 = vmor %vm4175, %vm4223
    %vm4272 = vmor %vm4176, %vm4224
    %vm4273 = vmor %vm4177, %vm4225
    %vm4274 = vcmp.eq.s32.totalorder %v4082, 18
    %vm4275 = vcmp.eq.s32.totalorder %v4083, 18
    %vm4276 = vcmp.eq.s32.totalorder %v4084, 18
    %vm4277 = vcmp.eq.s32.totalorder %v4085, 18
    %vm4278 = vcmp.eq.s32.totalorder %v4086, 18
    %vm4279 = vcmp.eq.s32.totalorder %v4087, 18
    %vm4280 = vcmp.eq.s32.totalorder %v4088, 18
    %vm4281 = vcmp.eq.s32.totalorder %v4089, 18
    %vm4282 = vcmp.eq.s32.totalorder %v4090, 18
    %vm4283 = vcmp.eq.s32.totalorder %v4091, 18
    %vm4284 = vcmp.eq.s32.totalorder %v4092, 18
    %vm4285 = vcmp.eq.s32.totalorder %v4093, 18
    %vm4286 = vcmp.eq.s32.totalorder %v4094, 18
    %vm4287 = vcmp.eq.s32.totalorder %v4095, 18
    %vm4288 = vcmp.eq.s32.totalorder %v4096, 18
    %vm4289 = vcmp.eq.s32.totalorder %v4097, 18
    %vm4290 = vcmp.eq.s32.totalorder %v4098, 18
    %vm4291 = vcmp.eq.s32.totalorder %v4099, 18
    %vm4292 = vcmp.eq.s32.totalorder %v4100, 18
    %vm4293 = vcmp.eq.s32.totalorder %v4101, 18
    %vm4294 = vcmp.eq.s32.totalorder %v4102, 18
    %vm4295 = vcmp.eq.s32.totalorder %v4103, 18
    %vm4296 = vcmp.eq.s32.totalorder %v4104, 18
    %vm4297 = vcmp.eq.s32.totalorder %v4105, 18
    %vm4298 = vcmp.eq.s32.totalorder %v4106, 18
    %vm4299 = vcmp.eq.s32.totalorder %v4107, 18
    %vm4300 = vcmp.eq.s32.totalorder %v4108, 18
    %vm4301 = vcmp.eq.s32.totalorder %v4109, 18
    %vm4302 = vcmp.eq.s32.totalorder %v4110, 18
    %vm4303 = vcmp.eq.s32.totalorder %v4111, 18
    %vm4304 = vcmp.eq.s32.totalorder %v4112, 18
    %vm4305 = vcmp.eq.s32.totalorder %v4113, 18
    %vm4306 = vcmp.eq.s32.totalorder %v4114, 18
    %vm4307 = vcmp.eq.s32.totalorder %v4115, 18
    %vm4308 = vcmp.eq.s32.totalorder %v4116, 18
    %vm4309 = vcmp.eq.s32.totalorder %v4117, 18
    %vm4310 = vcmp.eq.s32.totalorder %v4118, 18
    %vm4311 = vcmp.eq.s32.totalorder %v4119, 18
    %vm4312 = vcmp.eq.s32.totalorder %v4120, 18
    %vm4313 = vcmp.eq.s32.totalorder %v4121, 18
    %vm4314 = vcmp.eq.s32.totalorder %v4122, 18
    %vm4315 = vcmp.eq.s32.totalorder %v4123, 18
    %vm4316 = vcmp.eq.s32.totalorder %v4124, 18
    %vm4317 = vcmp.eq.s32.totalorder %v4125, 18
    %vm4318 = vcmp.eq.s32.totalorder %v4126, 18
    %vm4319 = vcmp.eq.s32.totalorder %v4127, 18
    %vm4320 = vcmp.eq.s32.totalorder %v4128, 18
    %vm4321 = vcmp.eq.s32.totalorder %v4129, 18
    %vm4322 = vmor %vm4226, %vm4274
    %vm4323 = vmor %vm4227, %vm4275
    %vm4324 = vmor %vm4228, %vm4276
    %vm4325 = vmor %vm4229, %vm4277
    %vm4326 = vmor %vm4230, %vm4278
    %vm4327 = vmor %vm4231, %vm4279
    %vm4328 = vmor %vm4232, %vm4280
    %vm4329 = vmor %vm4233, %vm4281
    %vm4330 = vmor %vm4234, %vm4282
    %vm4331 = vmor %vm4235, %vm4283
    %vm4332 = vmor %vm4236, %vm4284
    %vm4333 = vmor %vm4237, %vm4285
    %vm4334 = vmor %vm4238, %vm4286
    %vm4335 = vmor %vm4239, %vm4287
    %vm4336 = vmor %vm4240, %vm4288
    %vm4337 = vmor %vm4241, %vm4289
    %vm4338 = vmor %vm4242, %vm4290
    %vm4339 = vmor %vm4243, %vm4291
    %vm4340 = vmor %vm4244, %vm4292
    %vm4341 = vmor %vm4245, %vm4293
    %vm4342 = vmor %vm4246, %vm4294
    %vm4343 = vmor %vm4247, %vm4295
    %vm4344 = vmor %vm4248, %vm4296
    %vm4345 = vmor %vm4249, %vm4297
    %vm4346 = vmor %vm4250, %vm4298
    %vm4347 = vmor %vm4251, %vm4299
    %vm4348 = vmor %vm4252, %vm4300
    %vm4349 = vmor %vm4253, %vm4301
    %vm4350 = vmor %vm4254, %vm4302
    %vm4351 = vmor %vm4255, %vm4303
    %vm4352 = vmor %vm4256, %vm4304
    %vm4353 = vmor %vm4257, %vm4305
    %vm4354 = vmor %vm4258, %vm4306
    %vm4355 = vmor %vm4259, %vm4307
    %vm4356 = vmor %vm4260, %vm4308
    %vm4357 = vmor %vm4261, %vm4309
    %vm4358 = vmor %vm4262, %vm4310
    %vm4359 = vmor %vm4263, %vm4311
    %vm4360 = vmor %vm4264, %vm4312
    %vm4361 = vmor %vm4265, %vm4313
    %vm4362 = vmor %vm4266, %vm4314
    %vm4363 = vmor %vm4267, %vm4315
    %vm4364 = vmor %vm4268, %vm4316
    %vm4365 = vmor %vm4269, %vm4317
    %vm4366 = vmor %vm4270, %vm4318
    %vm4367 = vmor %vm4271, %vm4319
    %vm4368 = vmor %vm4272, %vm4320
    %vm4369 = vmor %vm4273, %vm4321
    %vm4370 = vcmp.eq.s32.totalorder %v4082, 19
    %vm4371 = vcmp.eq.s32.totalorder %v4083, 19
    %vm4372 = vcmp.eq.s32.totalorder %v4084, 19
    %vm4373 = vcmp.eq.s32.totalorder %v4085, 19
    %vm4374 = vcmp.eq.s32.totalorder %v4086, 19
    %vm4375 = vcmp.eq.s32.totalorder %v4087, 19
    %vm4376 = vcmp.eq.s32.totalorder %v4088, 19
    %vm4377 = vcmp.eq.s32.totalorder %v4089, 19
    %vm4378 = vcmp.eq.s32.totalorder %v4090, 19
    %vm4379 = vcmp.eq.s32.totalorder %v4091, 19
    %vm4380 = vcmp.eq.s32.totalorder %v4092, 19
    %vm4381 = vcmp.eq.s32.totalorder %v4093, 19
    %vm4382 = vcmp.eq.s32.totalorder %v4094, 19
    %vm4383 = vcmp.eq.s32.totalorder %v4095, 19
    %vm4384 = vcmp.eq.s32.totalorder %v4096, 19
    %vm4385 = vcmp.eq.s32.totalorder %v4097, 19
    %vm4386 = vcmp.eq.s32.totalorder %v4098, 19
    %vm4387 = vcmp.eq.s32.totalorder %v4099, 19
    %vm4388 = vcmp.eq.s32.totalorder %v4100, 19
    %vm4389 = vcmp.eq.s32.totalorder %v4101, 19
    %vm4390 = vcmp.eq.s32.totalorder %v4102, 19
    %vm4391 = vcmp.eq.s32.totalorder %v4103, 19
    %vm4392 = vcmp.eq.s32.totalorder %v4104, 19
    %vm4393 = vcmp.eq.s32.totalorder %v4105, 19
    %vm4394 = vcmp.eq.s32.totalorder %v4106, 19
    %vm4395 = vcmp.eq.s32.totalorder %v4107, 19
    %vm4396 = vcmp.eq.s32.totalorder %v4108, 19
    %vm4397 = vcmp.eq.s32.totalorder %v4109, 19
    %vm4398 = vcmp.eq.s32.totalorder %v4110, 19
    %vm4399 = vcmp.eq.s32.totalorder %v4111, 19
    %vm4400 = vcmp.eq.s32.totalorder %v4112, 19
    %vm4401 = vcmp.eq.s32.totalorder %v4113, 19
    %vm4402 = vcmp.eq.s32.totalorder %v4114, 19
    %vm4403 = vcmp.eq.s32.totalorder %v4115, 19
    %vm4404 = vcmp.eq.s32.totalorder %v4116, 19
    %vm4405 = vcmp.eq.s32.totalorder %v4117, 19
    %vm4406 = vcmp.eq.s32.totalorder %v4118, 19
    %vm4407 = vcmp.eq.s32.totalorder %v4119, 19
    %vm4408 = vcmp.eq.s32.totalorder %v4120, 19
    %vm4409 = vcmp.eq.s32.totalorder %v4121, 19
    %vm4410 = vcmp.eq.s32.totalorder %v4122, 19
    %vm4411 = vcmp.eq.s32.totalorder %v4123, 19
    %vm4412 = vcmp.eq.s32.totalorder %v4124, 19
    %vm4413 = vcmp.eq.s32.totalorder %v4125, 19
    %vm4414 = vcmp.eq.s32.totalorder %v4126, 19
    %vm4415 = vcmp.eq.s32.totalorder %v4127, 19
    %vm4416 = vcmp.eq.s32.totalorder %v4128, 19
    %vm4417 = vcmp.eq.s32.totalorder %v4129, 19
    %vm4418 = vmor %vm4322, %vm4370
    %vm4419 = vmor %vm4323, %vm4371
    %vm4420 = vmor %vm4324, %vm4372
    %vm4421 = vmor %vm4325, %vm4373
    %vm4422 = vmor %vm4326, %vm4374
    %vm4423 = vmor %vm4327, %vm4375
    %vm4424 = vmor %vm4328, %vm4376
    %vm4425 = vmor %vm4329, %vm4377
    %vm4426 = vmor %vm4330, %vm4378
    %vm4427 = vmor %vm4331, %vm4379
    %vm4428 = vmor %vm4332, %vm4380
    %vm4429 = vmor %vm4333, %vm4381
    %vm4430 = vmor %vm4334, %vm4382
    %vm4431 = vmor %vm4335, %vm4383
    %vm4432 = vmor %vm4336, %vm4384
    %vm4433 = vmor %vm4337, %vm4385
    %vm4434 = vmor %vm4338, %vm4386
    %vm4435 = vmor %vm4339, %vm4387
    %vm4436 = vmor %vm4340, %vm4388
    %vm4437 = vmor %vm4341, %vm4389
    %vm4438 = vmor %vm4342, %vm4390
    %vm4439 = vmor %vm4343, %vm4391
    %vm4440 = vmor %vm4344, %vm4392
    %vm4441 = vmor %vm4345, %vm4393
    %vm4442 = vmor %vm4346, %vm4394
    %vm4443 = vmor %vm4347, %vm4395
    %vm4444 = vmor %vm4348, %vm4396
    %vm4445 = vmor %vm4349, %vm4397
    %vm4446 = vmor %vm4350, %vm4398
    %vm4447 = vmor %vm4351, %vm4399
    %vm4448 = vmor %vm4352, %vm4400
    %vm4449 = vmor %vm4353, %vm4401
    %vm4450 = vmor %vm4354, %vm4402
    %vm4451 = vmor %vm4355, %vm4403
    %vm4452 = vmor %vm4356, %vm4404
    %vm4453 = vmor %vm4357, %vm4405
    %vm4454 = vmor %vm4358, %vm4406
    %vm4455 = vmor %vm4359, %vm4407
    %vm4456 = vmor %vm4360, %vm4408
    %vm4457 = vmor %vm4361, %vm4409
    %vm4458 = vmor %vm4362, %vm4410
    %vm4459 = vmor %vm4363, %vm4411
    %vm4460 = vmor %vm4364, %vm4412
    %vm4461 = vmor %vm4365, %vm4413
    %vm4462 = vmor %vm4366, %vm4414
    %vm4463 = vmor %vm4367, %vm4415
    %vm4464 = vmor %vm4368, %vm4416
    %vm4465 = vmor %vm4369, %vm4417
    %v4466 = vsel %vm4418, 0.25, 0.0
    %v4467 = vsel %vm4419, 0.25, 0.0
    %v4468 = vsel %vm4420, 0.25, 0.0
    %v4469 = vsel %vm4421, 0.25, 0.0
    %v4470 = vsel %vm4422, 0.25, 0.0
    %v4471 = vsel %vm4423, 0.25, 0.0
    %v4472 = vsel %vm4424, 0.25, 0.0
    %v4473 = vsel %vm4425, 0.25, 0.0
    %v4474 = vsel %vm4426, 0.25, 0.0
    %v4475 = vsel %vm4427, 0.25, 0.0
    %v4476 = vsel %vm4428, 0.25, 0.0
    %v4477 = vsel %vm4429, 0.25, 0.0
    %v4478 = vsel %vm4430, 0.25, 0.0
    %v4479 = vsel %vm4431, 0.25, 0.0
    %v4480 = vsel %vm4432, 0.25, 0.0
    %v4481 = vsel %vm4433, 0.25, 0.0
    %v4482 = vsel %vm4434, 0.25, 0.0
    %v4483 = vsel %vm4435, 0.25, 0.0
    %v4484 = vsel %vm4436, 0.25, 0.0
    %v4485 = vsel %vm4437, 0.25, 0.0
    %v4486 = vsel %vm4438, 0.25, 0.0
    %v4487 = vsel %vm4439, 0.25, 0.0
    %v4488 = vsel %vm4440, 0.25, 0.0
    %v4489 = vsel %vm4441, 0.25, 0.0
    %v4490 = vsel %vm4442, 0.25, 0.0
    %v4491 = vsel %vm4443, 0.25, 0.0
    %v4492 = vsel %vm4444, 0.25, 0.0
    %v4493 = vsel %vm4445, 0.25, 0.0
    %v4494 = vsel %vm4446, 0.25, 0.0
    %v4495 = vsel %vm4447, 0.25, 0.0
    %v4496 = vsel %vm4448, 0.25, 0.0
    %v4497 = vsel %vm4449, 0.25, 0.0
    %v4498 = vsel %vm4450, 0.25, 0.0
    %v4499 = vsel %vm4451, 0.25, 0.0
    %v4500 = vsel %vm4452, 0.25, 0.0
    %v4501 = vsel %vm4453, 0.25, 0.0
    %v4502 = vsel %vm4454, 0.25, 0.0
    %v4503 = vsel %vm4455, 0.25, 0.0
    %v4504 = vsel %vm4456, 0.25, 0.0
    %v4505 = vsel %vm4457, 0.25, 0.0
    %v4506 = vsel %vm4458, 0.25, 0.0
    %v4507 = vsel %vm4459, 0.25, 0.0
    %v4508 = vsel %vm4460, 0.25, 0.0
    %v4509 = vsel %vm4461, 0.25, 0.0
    %v4510 = vsel %vm4462, 0.25, 0.0
    %v4511 = vsel %vm4463, 0.25, 0.0
    %v4512 = vsel %vm4464, 0.25, 0.0
    %v4513 = vsel %vm4465, 0.25, 0.0
    %4514 = vmatpush.msra.mxu0 %v4481
    %4515 = vmatpush.msra.mxu0 %v4480
    %4516 = vmatpush.msra.mxu0 %v4479
    %4517 = vmatpush.msra.mxu0 %v4478
    %4518 = vmatpush.msra.mxu0 %v4477
    %4519 = vmatpush.msra.mxu0 %v4476
    %4520 = vmatpush.msra.mxu0 %v4475
    %4521 = vmatpush.msra.mxu0 %v4474
    %4522 = vmatpush.msra.mxu0 %v4473
    %4523 = vmatpush.msra.mxu0 %v4472
    %4524 = vmatpush.msra.mxu0 %v4471
    %4525 = vmatpush.msra.mxu0 %v4470
    %4526 = vmatpush.msra.mxu0 %v4469
    %4527 = vmatpush.msra.mxu0 %v4468
    %4528 = vmatpush.msra.mxu0 %v4467
    %4529 = vmatpush.msra.mxu0 %v4466
    %v4530 = vand.u32 %v3015, 4294901760
    %v4531 = vsub.f32 %v3015, %v4530
    %v4532 = vand.u32 %v4531, 4294901760
    %v4533 = vsub.f32 %v4531, %v4532
    %v4534 = vand.u32 %v4533, 4294901760
    %4535 = vmatmul.f32.gmra.mxu0 %v4534
    %v4536 = vpop.f32.mrf.mxu0
    %v4537 = vadd.f32 0.0, %v4536
    %4538 = vdwg.mxu0
    %v4539 = vsub.f32 %v4481, %v4481
    %v4540 = vand.u32 %v4539, 4294901760
    %v4541 = vsub.f32 %v4539, %v4540
    %v4542 = vand.u32 %v4541, 4294901760
    %4543 = vmatpush.msra.mxu0 %v4542
    %v4544 = vsub.f32 %v4480, %v4480
    %v4545 = vand.u32 %v4544, 4294901760
    %v4546 = vsub.f32 %v4544, %v4545
    %v4547 = vand.u32 %v4546, 4294901760
    %4548 = vmatpush.msra.mxu0 %v4547
    %v4549 = vsub.f32 %v4479, %v4479
    %v4550 = vand.u32 %v4549, 4294901760
    %v4551 = vsub.f32 %v4549, %v4550
    %v4552 = vand.u32 %v4551, 4294901760
    %4553 = vmatpush.msra.mxu0 %v4552
    %v4554 = vsub.f32 %v4478, %v4478
    %v4555 = vand.u32 %v4554, 4294901760
    %v4556 = vsub.f32 %v4554, %v4555
    %v4557 = vand.u32 %v4556, 4294901760
    %4558 = vmatpush.msra.mxu0 %v4557
    %v4559 = vsub.f32 %v4477, %v4477
    %v4560 = vand.u32 %v4559, 4294901760
    %v4561 = vsub.f32 %v4559, %v4560
    %v4562 = vand.u32 %v4561, 4294901760
    %4563 = vmatpush.msra.mxu0 %v4562
    %v4564 = vsub.f32 %v4476, %v4476
    %v4565 = vand.u32 %v4564, 4294901760
    %v4566 = vsub.f32 %v4564, %v4565
    %v4567 = vand.u32 %v4566, 4294901760
    %4568 = vmatpush.msra.mxu0 %v4567
    %v4569 = vsub.f32 %v4475, %v4475
    %v4570 = vand.u32 %v4569, 4294901760
    %v4571 = vsub.f32 %v4569, %v4570
    %v4572 = vand.u32 %v4571, 4294901760
    %4573 = vmatpush.msra.mxu0 %v4572
    %v4574 = vsub.f32 %v4474, %v4474
    %v4575 = vand.u32 %v4574, 4294901760
    %v4576 = vsub.f32 %v4574, %v4575
    %v4577 = vand.u32 %v4576, 4294901760
    %4578 = vmatpush.msra.mxu0 %v4577
    %v4579 = vsub.f32 %v4473, %v4473
    %v4580 = vand.u32 %v4579, 4294901760
    %v4581 = vsub.f32 %v4579, %v4580
    %v4582 = vand.u32 %v4581, 4294901760
    %4583 = vmatpush.msra.mxu0 %v4582
    %v4584 = vsub.f32 %v4472, %v4472
    %v4585 = vand.u32 %v4584, 4294901760
    %v4586 = vsub.f32 %v4584, %v4585
    %v4587 = vand.u32 %v4586, 4294901760
    %4588 = vmatpush.msra.mxu0 %v4587
    %v4589 = vsub.f32 %v4471, %v4471
    %v4590 = vand.u32 %v4589, 4294901760
    %v4591 = vsub.f32 %v4589, %v4590
    %v4592 = vand.u32 %v4591, 4294901760
    %4593 = vmatpush.msra.mxu0 %v4592
    %v4594 = vsub.f32 %v4470, %v4470
    %v4595 = vand.u32 %v4594, 4294901760
    %v4596 = vsub.f32 %v4594, %v4595
    %v4597 = vand.u32 %v4596, 4294901760
    %4598 = vmatpush.msra.mxu0 %v4597
    %v4599 = vsub.f32 %v4469, %v4469
    %v4600 = vand.u32 %v4599, 4294901760
    %v4601 = vsub.f32 %v4599, %v4600
    %v4602 = vand.u32 %v4601, 4294901760
    %4603 = vmatpush.msra.mxu0 %v4602
    %v4604 = vsub.f32 %v4468, %v4468
    %v4605 = vand.u32 %v4604, 4294901760
    %v4606 = vsub.f32 %v4604, %v4605
    %v4607 = vand.u32 %v4606, 4294901760
    %4608 = vmatpush.msra.mxu0 %v4607
    %v4609 = vsub.f32 %v4467, %v4467
    %v4610 = vand.u32 %v4609, 4294901760
    %v4611 = vsub.f32 %v4609, %v4610
    %v4612 = vand.u32 %v4611, 4294901760
    %4613 = vmatpush.msra.mxu0 %v4612
    %v4614 = vsub.f32 %v4466, %v4466
    %v4615 = vand.u32 %v4614, 4294901760
    %v4616 = vsub.f32 %v4614, %v4615
    %v4617 = vand.u32 %v4616, 4294901760
    %4618 = vmatpush.msra.mxu0 %v4617
    %v4619 = vand.u32 %v3015, 4294901760
    %4620 = vmatmul.f32.gmra.mxu0 %v4619
    %v4621 = vpop.f32.mrf.mxu0
    %v4622 = vadd.f32 %v4537, %v4621
    %4623 = vdwg.mxu0
    %v4624 = vsub.f32 %v4481, %v4481
    %4625 = vmatpush.msra.mxu0 %v4624
    %v4626 = vsub.f32 %v4480, %v4480
    %4627 = vmatpush.msra.mxu0 %v4626
    %v4628 = vsub.f32 %v4479, %v4479
    %4629 = vmatpush.msra.mxu0 %v4628
    %v4630 = vsub.f32 %v4478, %v4478
    %4631 = vmatpush.msra.mxu0 %v4630
    %v4632 = vsub.f32 %v4477, %v4477
    %4633 = vmatpush.msra.mxu0 %v4632
    %v4634 = vsub.f32 %v4476, %v4476
    %4635 = vmatpush.msra.mxu0 %v4634
    %v4636 = vsub.f32 %v4475, %v4475
    %4637 = vmatpush.msra.mxu0 %v4636
    %v4638 = vsub.f32 %v4474, %v4474
    %4639 = vmatpush.msra.mxu0 %v4638
    %v4640 = vsub.f32 %v4473, %v4473
    %4641 = vmatpush.msra.mxu0 %v4640
    %v4642 = vsub.f32 %v4472, %v4472
    %4643 = vmatpush.msra.mxu0 %v4642
    %v4644 = vsub.f32 %v4471, %v4471
    %4645 = vmatpush.msra.mxu0 %v4644
    %v4646 = vsub.f32 %v4470, %v4470
    %4647 = vmatpush.msra.mxu0 %v4646
    %v4648 = vsub.f32 %v4469, %v4469
    %4649 = vmatpush.msra.mxu0 %v4648
    %v4650 = vsub.f32 %v4468, %v4468
    %4651 = vmatpush.msra.mxu0 %v4650
    %v4652 = vsub.f32 %v4467, %v4467
    %4653 = vmatpush.msra.mxu0 %v4652
    %v4654 = vsub.f32 %v4466, %v4466
    %4655 = vmatpush.msra.mxu0 %v4654
    %v4656 = vand.u32 %v3015, 4294901760
    %v4657 = vsub.f32 %v3015, %v4656
    %4658 = vmatmul.f32.gmra.mxu0 %v4657
    %v4659 = vpop.f32.mrf.mxu0
    %v4660 = vadd.f32 %v4622, %v4659
    %4661 = vdwg.mxu0
    %4662 = vmatpush.msra.mxu0 %v4481
    %4663 = vmatpush.msra.mxu0 %v4480
    %4664 = vmatpush.msra.mxu0 %v4479
    %4665 = vmatpush.msra.mxu0 %v4478
    %4666 = vmatpush.msra.mxu0 %v4477
    %4667 = vmatpush.msra.mxu0 %v4476
    %4668 = vmatpush.msra.mxu0 %v4475
    %4669 = vmatpush.msra.mxu0 %v4474
    %4670 = vmatpush.msra.mxu0 %v4473
    %4671 = vmatpush.msra.mxu0 %v4472
    %4672 = vmatpush.msra.mxu0 %v4471
    %4673 = vmatpush.msra.mxu0 %v4470
    %4674 = vmatpush.msra.mxu0 %v4469
    %4675 = vmatpush.msra.mxu0 %v4468
    %4676 = vmatpush.msra.mxu0 %v4467
    %4677 = vmatpush.msra.mxu0 %v4466
    %v4678 = vand.u32 %v3015, 4294901760
    %v4679 = vsub.f32 %v3015, %v4678
    %v4680 = vand.u32 %v4679, 4294901760
    %4681 = vmatmul.f32.gmra.mxu0 %v4680
    %v4682 = vpop.f32.mrf.mxu0
    %v4683 = vadd.f32 %v4660, %v4682
    %4684 = vdwg.mxu0
    %v4685 = vsub.f32 %v4481, %v4481
    %v4686 = vand.u32 %v4685, 4294901760
    %4687 = vmatpush.msra.mxu0 %v4686
    %v4688 = vsub.f32 %v4480, %v4480
    %v4689 = vand.u32 %v4688, 4294901760
    %4690 = vmatpush.msra.mxu0 %v4689
    %v4691 = vsub.f32 %v4479, %v4479
    %v4692 = vand.u32 %v4691, 4294901760
    %4693 = vmatpush.msra.mxu0 %v4692
    %v4694 = vsub.f32 %v4478, %v4478
    %v4695 = vand.u32 %v4694, 4294901760
    %4696 = vmatpush.msra.mxu0 %v4695
    %v4697 = vsub.f32 %v4477, %v4477
    %v4698 = vand.u32 %v4697, 4294901760
    %4699 = vmatpush.msra.mxu0 %v4698
    %v4700 = vsub.f32 %v4476, %v4476
    %v4701 = vand.u32 %v4700, 4294901760
    %4702 = vmatpush.msra.mxu0 %v4701
    %v4703 = vsub.f32 %v4475, %v4475
    %v4704 = vand.u32 %v4703, 4294901760
    %4705 = vmatpush.msra.mxu0 %v4704
    %v4706 = vsub.f32 %v4474, %v4474
    %v4707 = vand.u32 %v4706, 4294901760
    %4708 = vmatpush.msra.mxu0 %v4707
    %v4709 = vsub.f32 %v4473, %v4473
    %v4710 = vand.u32 %v4709, 4294901760
    %4711 = vmatpush.msra.mxu0 %v4710
    %v4712 = vsub.f32 %v4472, %v4472
    %v4713 = vand.u32 %v4712, 4294901760
    %4714 = vmatpush.msra.mxu0 %v4713
    %v4715 = vsub.f32 %v4471, %v4471
    %v4716 = vand.u32 %v4715, 4294901760
    %4717 = vmatpush.msra.mxu0 %v4716
    %v4718 = vsub.f32 %v4470, %v4470
    %v4719 = vand.u32 %v4718, 4294901760
    %4720 = vmatpush.msra.mxu0 %v4719
    %v4721 = vsub.f32 %v4469, %v4469
    %v4722 = vand.u32 %v4721, 4294901760
    %4723 = vmatpush.msra.mxu0 %v4722
    %v4724 = vsub.f32 %v4468, %v4468
    %v4725 = vand.u32 %v4724, 4294901760
    %4726 = vmatpush.msra.mxu0 %v4725
    %v4727 = vsub.f32 %v4467, %v4467
    %v4728 = vand.u32 %v4727, 4294901760
    %4729 = vmatpush.msra.mxu0 %v4728
    %v4730 = vsub.f32 %v4466, %v4466
    %v4731 = vand.u32 %v4730, 4294901760
    %4732 = vmatpush.msra.mxu0 %v4731
    %v4733 = vand.u32 %v3015, 4294901760
    %4734 = vmatmul.f32.gmra.mxu0 %v4733
    %v4735 = vpop.f32.mrf.mxu0
    %v4736 = vadd.f32 %v4683, %v4735
    %4737 = vdwg.mxu0
    %4738 = vmatpush.msra.mxu0 %v4481
    %4739 = vmatpush.msra.mxu0 %v4480
    %4740 = vmatpush.msra.mxu0 %v4479
    %4741 = vmatpush.msra.mxu0 %v4478
    %4742 = vmatpush.msra.mxu0 %v4477
    %4743 = vmatpush.msra.mxu0 %v4476
    %4744 = vmatpush.msra.mxu0 %v4475
    %4745 = vmatpush.msra.mxu0 %v4474
    %4746 = vmatpush.msra.mxu0 %v4473
    %4747 = vmatpush.msra.mxu0 %v4472
    %4748 = vmatpush.msra.mxu0 %v4471
    %4749 = vmatpush.msra.mxu0 %v4470
    %4750 = vmatpush.msra.mxu0 %v4469
    %4751 = vmatpush.msra.mxu0 %v4468
    %4752 = vmatpush.msra.mxu0 %v4467
    %4753 = vmatpush.msra.mxu0 %v4466
    %v4754 = vand.u32 %v3015, 4294901760
    %4755 = vmatmul.f32.gmra.mxu0 %v4754
    %v4756 = vpop.f32.mrf.mxu0
    %v4757 = vadd.f32 %v4736, %v4756
    %4758 = vdwg.mxu0
    %4759 = vmatpush.msra.mxu0 %v4497
    %4760 = vmatpush.msra.mxu0 %v4496
    %4761 = vmatpush.msra.mxu0 %v4495
    %4762 = vmatpush.msra.mxu0 %v4494
    %4763 = vmatpush.msra.mxu0 %v4493
    %4764 = vmatpush.msra.mxu0 %v4492
    %4765 = vmatpush.msra.mxu0 %v4491
    %4766 = vmatpush.msra.mxu0 %v4490
    %4767 = vmatpush.msra.mxu0 %v4489
    %4768 = vmatpush.msra.mxu0 %v4488
    %4769 = vmatpush.msra.mxu0 %v4487
    %4770 = vmatpush.msra.mxu0 %v4486
    %4771 = vmatpush.msra.mxu0 %v4485
    %4772 = vmatpush.msra.mxu0 %v4484
    %4773 = vmatpush.msra.mxu0 %v4483
    %4774 = vmatpush.msra.mxu0 %v4482
    %v4775 = vand.u32 %v3213, 4294901760
    %v4776 = vsub.f32 %v3213, %v4775
    %v4777 = vand.u32 %v4776, 4294901760
    %v4778 = vsub.f32 %v4776, %v4777
    %v4779 = vand.u32 %v4778, 4294901760
    %4780 = vmatmul.f32.gmra.mxu0 %v4779
    %v4781 = vpop.f32.mrf.mxu0
    %v4782 = vadd.f32 %v4757, %v4781
    %4783 = vdwg.mxu0
    %v4784 = vsub.f32 %v4497, %v4497
    %v4785 = vand.u32 %v4784, 4294901760
    %v4786 = vsub.f32 %v4784, %v4785
    %v4787 = vand.u32 %v4786, 4294901760
    %4788 = vmatpush.msra.mxu0 %v4787
    %v4789 = vsub.f32 %v4496, %v4496
    %v4790 = vand.u32 %v4789, 4294901760
    %v4791 = vsub.f32 %v4789, %v4790
    %v4792 = vand.u32 %v4791, 4294901760
    %4793 = vmatpush.msra.mxu0 %v4792
    %v4794 = vsub.f32 %v4495, %v4495
    %v4795 = vand.u32 %v4794, 4294901760
    %v4796 = vsub.f32 %v4794, %v4795
    %v4797 = vand.u32 %v4796, 4294901760
    %4798 = vmatpush.msra.mxu0 %v4797
    %v4799 = vsub.f32 %v4494, %v4494
    %v4800 = vand.u32 %v4799, 4294901760
    %v4801 = vsub.f32 %v4799, %v4800
    %v4802 = vand.u32 %v4801, 4294901760
    %4803 = vmatpush.msra.mxu0 %v4802
    %v4804 = vsub.f32 %v4493, %v4493
    %v4805 = vand.u32 %v4804, 4294901760
    %v4806 = vsub.f32 %v4804, %v4805
    %v4807 = vand.u32 %v4806, 4294901760
    %4808 = vmatpush.msra.mxu0 %v4807
    %v4809 = vsub.f32 %v4492, %v4492
    %v4810 = vand.u32 %v4809, 4294901760
    %v4811 = vsub.f32 %v4809, %v4810
    %v4812 = vand.u32 %v4811, 4294901760
    %4813 = vmatpush.msra.mxu0 %v4812
    %v4814 = vsub.f32 %v4491, %v4491
    %v4815 = vand.u32 %v4814, 4294901760
    %v4816 = vsub.f32 %v4814, %v4815
    %v4817 = vand.u32 %v4816, 4294901760
    %4818 = vmatpush.msra.mxu0 %v4817
    %v4819 = vsub.f32 %v4490, %v4490
    %v4820 = vand.u32 %v4819, 4294901760
    %v4821 = vsub.f32 %v4819, %v4820
    %v4822 = vand.u32 %v4821, 4294901760
    %4823 = vmatpush.msra.mxu0 %v4822
    %v4824 = vsub.f32 %v4489, %v4489
    %v4825 = vand.u32 %v4824, 4294901760
    %v4826 = vsub.f32 %v4824, %v4825
    %v4827 = vand.u32 %v4826, 4294901760
    %4828 = vmatpush.msra.mxu0 %v4827
    %v4829 = vsub.f32 %v4488, %v4488
    %v4830 = vand.u32 %v4829, 4294901760
    %v4831 = vsub.f32 %v4829, %v4830
    %v4832 = vand.u32 %v4831, 4294901760
    %4833 = vmatpush.msra.mxu0 %v4832
    %v4834 = vsub.f32 %v4487, %v4487
    %v4835 = vand.u32 %v4834, 4294901760
    %v4836 = vsub.f32 %v4834, %v4835
    %v4837 = vand.u32 %v4836, 4294901760
    %4838 = vmatpush.msra.mxu0 %v4837
    %v4839 = vsub.f32 %v4486, %v4486
    %v4840 = vand.u32 %v4839, 4294901760
    %v4841 = vsub.f32 %v4839, %v4840
    %v4842 = vand.u32 %v4841, 4294901760
    %4843 = vmatpush.msra.mxu0 %v4842
    %v4844 = vsub.f32 %v4485, %v4485
    %v4845 = vand.u32 %v4844, 4294901760
    %v4846 = vsub.f32 %v4844, %v4845
    %v4847 = vand.u32 %v4846, 4294901760
    %4848 = vmatpush.msra.mxu0 %v4847
    %v4849 = vsub.f32 %v4484, %v4484
    %v4850 = vand.u32 %v4849, 4294901760
    %v4851 = vsub.f32 %v4849, %v4850
    %v4852 = vand.u32 %v4851, 4294901760
    %4853 = vmatpush.msra.mxu0 %v4852
    %v4854 = vsub.f32 %v4483, %v4483
    %v4855 = vand.u32 %v4854, 4294901760
    %v4856 = vsub.f32 %v4854, %v4855
    %v4857 = vand.u32 %v4856, 4294901760
    %4858 = vmatpush.msra.mxu0 %v4857
    %v4859 = vsub.f32 %v4482, %v4482
    %v4860 = vand.u32 %v4859, 4294901760
    %v4861 = vsub.f32 %v4859, %v4860
    %v4862 = vand.u32 %v4861, 4294901760
    %4863 = vmatpush.msra.mxu0 %v4862
    %v4864 = vand.u32 %v3213, 4294901760
    %4865 = vmatmul.f32.gmra.mxu0 %v4864
    %v4866 = vpop.f32.mrf.mxu0
    %v4867 = vadd.f32 %v4782, %v4866
    %4868 = vdwg.mxu0
    %v4869 = vsub.f32 %v4497, %v4497
    %4870 = vmatpush.msra.mxu0 %v4869
    %v4871 = vsub.f32 %v4496, %v4496
    %4872 = vmatpush.msra.mxu0 %v4871
    %v4873 = vsub.f32 %v4495, %v4495
    %4874 = vmatpush.msra.mxu0 %v4873
    %v4875 = vsub.f32 %v4494, %v4494
    %4876 = vmatpush.msra.mxu0 %v4875
    %v4877 = vsub.f32 %v4493, %v4493
    %4878 = vmatpush.msra.mxu0 %v4877
    %v4879 = vsub.f32 %v4492, %v4492
    %4880 = vmatpush.msra.mxu0 %v4879
    %v4881 = vsub.f32 %v4491, %v4491
    %4882 = vmatpush.msra.mxu0 %v4881
    %v4883 = vsub.f32 %v4490, %v4490
    %4884 = vmatpush.msra.mxu0 %v4883
    %v4885 = vsub.f32 %v4489, %v4489
    %4886 = vmatpush.msra.mxu0 %v4885
    %v4887 = vsub.f32 %v4488, %v4488
    %4888 = vmatpush.msra.mxu0 %v4887
    %v4889 = vsub.f32 %v4487, %v4487
    %4890 = vmatpush.msra.mxu0 %v4889
    %v4891 = vsub.f32 %v4486, %v4486
    %4892 = vmatpush.msra.mxu0 %v4891
    %v4893 = vsub.f32 %v4485, %v4485
    %4894 = vmatpush.msra.mxu0 %v4893
    %v4895 = vsub.f32 %v4484, %v4484
    %4896 = vmatpush.msra.mxu0 %v4895
    %v4897 = vsub.f32 %v4483, %v4483
    %4898 = vmatpush.msra.mxu0 %v4897
    %v4899 = vsub.f32 %v4482, %v4482
    %4900 = vmatpush.msra.mxu0 %v4899
    %v4901 = vand.u32 %v3213, 4294901760
    %v4902 = vsub.f32 %v3213, %v4901
    %4903 = vmatmul.f32.gmra.mxu0 %v4902
    %v4904 = vpop.f32.mrf.mxu0
    %v4905 = vadd.f32 %v4867, %v4904
    %4906 = vdwg.mxu0
    %4907 = vmatpush.msra.mxu0 %v4497
    %4908 = vmatpush.msra.mxu0 %v4496
    %4909 = vmatpush.msra.mxu0 %v4495
    %4910 = vmatpush.msra.mxu0 %v4494
    %4911 = vmatpush.msra.mxu0 %v4493
    %4912 = vmatpush.msra.mxu0 %v4492
    %4913 = vmatpush.msra.mxu0 %v4491
    %4914 = vmatpush.msra.mxu0 %v4490
    %4915 = vmatpush.msra.mxu0 %v4489
    %4916 = vmatpush.msra.mxu0 %v4488
    %4917 = vmatpush.msra.mxu0 %v4487
    %4918 = vmatpush.msra.mxu0 %v4486
    %4919 = vmatpush.msra.mxu0 %v4485
    %4920 = vmatpush.msra.mxu0 %v4484
    %4921 = vmatpush.msra.mxu0 %v4483
    %4922 = vmatpush.msra.mxu0 %v4482
    %v4923 = vand.u32 %v3213, 4294901760
    %v4924 = vsub.f32 %v3213, %v4923
    %v4925 = vand.u32 %v4924, 4294901760
    %4926 = vmatmul.f32.gmra.mxu0 %v4925
    %v4927 = vpop.f32.mrf.mxu0
    %v4928 = vadd.f32 %v4905, %v4927
    %4929 = vdwg.mxu0
    %v4930 = vsub.f32 %v4497, %v4497
    %v4931 = vand.u32 %v4930, 4294901760
    %4932 = vmatpush.msra.mxu0 %v4931
    %v4933 = vsub.f32 %v4496, %v4496
    %v4934 = vand.u32 %v4933, 4294901760
    %4935 = vmatpush.msra.mxu0 %v4934
    %v4936 = vsub.f32 %v4495, %v4495
    %v4937 = vand.u32 %v4936, 4294901760
    %4938 = vmatpush.msra.mxu0 %v4937
    %v4939 = vsub.f32 %v4494, %v4494
    %v4940 = vand.u32 %v4939, 4294901760
    %4941 = vmatpush.msra.mxu0 %v4940
    %v4942 = vsub.f32 %v4493, %v4493
    %v4943 = vand.u32 %v4942, 4294901760
    %4944 = vmatpush.msra.mxu0 %v4943
    %v4945 = vsub.f32 %v4492, %v4492
    %v4946 = vand.u32 %v4945, 4294901760
    %4947 = vmatpush.msra.mxu0 %v4946
    %v4948 = vsub.f32 %v4491, %v4491
    %v4949 = vand.u32 %v4948, 4294901760
    %4950 = vmatpush.msra.mxu0 %v4949
    %v4951 = vsub.f32 %v4490, %v4490
    %v4952 = vand.u32 %v4951, 4294901760
    %4953 = vmatpush.msra.mxu0 %v4952
    %v4954 = vsub.f32 %v4489, %v4489
    %v4955 = vand.u32 %v4954, 4294901760
    %4956 = vmatpush.msra.mxu0 %v4955
    %v4957 = vsub.f32 %v4488, %v4488
    %v4958 = vand.u32 %v4957, 4294901760
    %4959 = vmatpush.msra.mxu0 %v4958
    %v4960 = vsub.f32 %v4487, %v4487
    %v4961 = vand.u32 %v4960, 4294901760
    %4962 = vmatpush.msra.mxu0 %v4961
    %v4963 = vsub.f32 %v4486, %v4486
    %v4964 = vand.u32 %v4963, 4294901760
    %4965 = vmatpush.msra.mxu0 %v4964
    %v4966 = vsub.f32 %v4485, %v4485
    %v4967 = vand.u32 %v4966, 4294901760
    %4968 = vmatpush.msra.mxu0 %v4967
    %v4969 = vsub.f32 %v4484, %v4484
    %v4970 = vand.u32 %v4969, 4294901760
    %4971 = vmatpush.msra.mxu0 %v4970
    %v4972 = vsub.f32 %v4483, %v4483
    %v4973 = vand.u32 %v4972, 4294901760
    %4974 = vmatpush.msra.mxu0 %v4973
    %v4975 = vsub.f32 %v4482, %v4482
    %v4976 = vand.u32 %v4975, 4294901760
    %4977 = vmatpush.msra.mxu0 %v4976
    %v4978 = vand.u32 %v3213, 4294901760
    %4979 = vmatmul.f32.gmra.mxu0 %v4978
    %v4980 = vpop.f32.mrf.mxu0
    %v4981 = vadd.f32 %v4928, %v4980
    %4982 = vdwg.mxu0
    %4983 = vmatpush.msra.mxu0 %v4497
    %4984 = vmatpush.msra.mxu0 %v4496
    %4985 = vmatpush.msra.mxu0 %v4495
    %4986 = vmatpush.msra.mxu0 %v4494
    %4987 = vmatpush.msra.mxu0 %v4493
    %4988 = vmatpush.msra.mxu0 %v4492
    %4989 = vmatpush.msra.mxu0 %v4491
    %4990 = vmatpush.msra.mxu0 %v4490
    %4991 = vmatpush.msra.mxu0 %v4489
    %4992 = vmatpush.msra.mxu0 %v4488
    %4993 = vmatpush.msra.mxu0 %v4487
    %4994 = vmatpush.msra.mxu0 %v4486
    %4995 = vmatpush.msra.mxu0 %v4485
    %4996 = vmatpush.msra.mxu0 %v4484
    %4997 = vmatpush.msra.mxu0 %v4483
    %4998 = vmatpush.msra.mxu0 %v4482
    %v4999 = vand.u32 %v3213, 4294901760
    %5000 = vmatmul.f32.gmra.mxu0 %v4999
    %v5001 = vpop.f32.mrf.mxu0
    %v5002 = vadd.f32 %v4981, %v5001
    %5003 = vdwg.mxu0
    %5004 = vmatpush.msra.mxu0 %v4513
    %5005 = vmatpush.msra.mxu0 %v4512
    %5006 = vmatpush.msra.mxu0 %v4511
    %5007 = vmatpush.msra.mxu0 %v4510
    %5008 = vmatpush.msra.mxu0 %v4509
    %5009 = vmatpush.msra.mxu0 %v4508
    %5010 = vmatpush.msra.mxu0 %v4507
    %5011 = vmatpush.msra.mxu0 %v4506
    %5012 = vmatpush.msra.mxu0 %v4505
    %5013 = vmatpush.msra.mxu0 %v4504
    %5014 = vmatpush.msra.mxu0 %v4503
    %5015 = vmatpush.msra.mxu0 %v4502
    %5016 = vmatpush.msra.mxu0 %v4501
    %5017 = vmatpush.msra.mxu0 %v4500
    %5018 = vmatpush.msra.mxu0 %v4499
    %5019 = vmatpush.msra.mxu0 %v4498
    %v5020 = vand.u32 %v3411, 4294901760
    %v5021 = vsub.f32 %v3411, %v5020
    %v5022 = vand.u32 %v5021, 4294901760
    %v5023 = vsub.f32 %v5021, %v5022
    %v5024 = vand.u32 %v5023, 4294901760
    %5025 = vmatmul.f32.gmra.mxu0 %v5024
    %v5026 = vpop.f32.mrf.mxu0
    %v5027 = vadd.f32 %v5002, %v5026
    %5028 = vdwg.mxu0
    %v5029 = vsub.f32 %v4513, %v4513
    %v5030 = vand.u32 %v5029, 4294901760
    %v5031 = vsub.f32 %v5029, %v5030
    %v5032 = vand.u32 %v5031, 4294901760
    %5033 = vmatpush.msra.mxu0 %v5032
    %v5034 = vsub.f32 %v4512, %v4512
    %v5035 = vand.u32 %v5034, 4294901760
    %v5036 = vsub.f32 %v5034, %v5035
    %v5037 = vand.u32 %v5036, 4294901760
    %5038 = vmatpush.msra.mxu0 %v5037
    %v5039 = vsub.f32 %v4511, %v4511
    %v5040 = vand.u32 %v5039, 4294901760
    %v5041 = vsub.f32 %v5039, %v5040
    %v5042 = vand.u32 %v5041, 4294901760
    %5043 = vmatpush.msra.mxu0 %v5042
    %v5044 = vsub.f32 %v4510, %v4510
    %v5045 = vand.u32 %v5044, 4294901760
    %v5046 = vsub.f32 %v5044, %v5045
    %v5047 = vand.u32 %v5046, 4294901760
    %5048 = vmatpush.msra.mxu0 %v5047
    %v5049 = vsub.f32 %v4509, %v4509
    %v5050 = vand.u32 %v5049, 4294901760
    %v5051 = vsub.f32 %v5049, %v5050
    %v5052 = vand.u32 %v5051, 4294901760
    %5053 = vmatpush.msra.mxu0 %v5052
    %v5054 = vsub.f32 %v4508, %v4508
    %v5055 = vand.u32 %v5054, 4294901760
    %v5056 = vsub.f32 %v5054, %v5055
    %v5057 = vand.u32 %v5056, 4294901760
    %5058 = vmatpush.msra.mxu0 %v5057
    %v5059 = vsub.f32 %v4507, %v4507
    %v5060 = vand.u32 %v5059, 4294901760
    %v5061 = vsub.f32 %v5059, %v5060
    %v5062 = vand.u32 %v5061, 4294901760
    %5063 = vmatpush.msra.mxu0 %v5062
    %v5064 = vsub.f32 %v4506, %v4506
    %v5065 = vand.u32 %v5064, 4294901760
    %v5066 = vsub.f32 %v5064, %v5065
    %v5067 = vand.u32 %v5066, 4294901760
    %5068 = vmatpush.msra.mxu0 %v5067
    %v5069 = vsub.f32 %v4505, %v4505
    %v5070 = vand.u32 %v5069, 4294901760
    %v5071 = vsub.f32 %v5069, %v5070
    %v5072 = vand.u32 %v5071, 4294901760
    %5073 = vmatpush.msra.mxu0 %v5072
    %v5074 = vsub.f32 %v4504, %v4504
    %v5075 = vand.u32 %v5074, 4294901760
    %v5076 = vsub.f32 %v5074, %v5075
    %v5077 = vand.u32 %v5076, 4294901760
    %5078 = vmatpush.msra.mxu0 %v5077
    %v5079 = vsub.f32 %v4503, %v4503
    %v5080 = vand.u32 %v5079, 4294901760
    %v5081 = vsub.f32 %v5079, %v5080
    %v5082 = vand.u32 %v5081, 4294901760
    %5083 = vmatpush.msra.mxu0 %v5082
    %v5084 = vsub.f32 %v4502, %v4502
    %v5085 = vand.u32 %v5084, 4294901760
    %v5086 = vsub.f32 %v5084, %v5085
    %v5087 = vand.u32 %v5086, 4294901760
    %5088 = vmatpush.msra.mxu0 %v5087
    %v5089 = vsub.f32 %v4501, %v4501
    %v5090 = vand.u32 %v5089, 4294901760
    %v5091 = vsub.f32 %v5089, %v5090
    %v5092 = vand.u32 %v5091, 4294901760
    %5093 = vmatpush.msra.mxu0 %v5092
    %v5094 = vsub.f32 %v4500, %v4500
    %v5095 = vand.u32 %v5094, 4294901760
    %v5096 = vsub.f32 %v5094, %v5095
    %v5097 = vand.u32 %v5096, 4294901760
    %5098 = vmatpush.msra.mxu0 %v5097
    %v5099 = vsub.f32 %v4499, %v4499
    %v5100 = vand.u32 %v5099, 4294901760
    %v5101 = vsub.f32 %v5099, %v5100
    %v5102 = vand.u32 %v5101, 4294901760
    %5103 = vmatpush.msra.mxu0 %v5102
    %v5104 = vsub.f32 %v4498, %v4498
    %v5105 = vand.u32 %v5104, 4294901760
    %v5106 = vsub.f32 %v5104, %v5105
    %v5107 = vand.u32 %v5106, 4294901760
    %5108 = vmatpush.msra.mxu0 %v5107
    %v5109 = vand.u32 %v3411, 4294901760
    %5110 = vmatmul.f32.gmra.mxu0 %v5109
    %v5111 = vpop.f32.mrf.mxu0
    %v5112 = vadd.f32 %v5027, %v5111
    %5113 = vdwg.mxu0
    %v5114 = vsub.f32 %v4513, %v4513
    %5115 = vmatpush.msra.mxu0 %v5114
    %v5116 = vsub.f32 %v4512, %v4512
    %5117 = vmatpush.msra.mxu0 %v5116
    %v5118 = vsub.f32 %v4511, %v4511
    %5119 = vmatpush.msra.mxu0 %v5118
    %v5120 = vsub.f32 %v4510, %v4510
    %5121 = vmatpush.msra.mxu0 %v5120
    %v5122 = vsub.f32 %v4509, %v4509
    %5123 = vmatpush.msra.mxu0 %v5122
    %v5124 = vsub.f32 %v4508, %v4508
    %5125 = vmatpush.msra.mxu0 %v5124
    %v5126 = vsub.f32 %v4507, %v4507
    %5127 = vmatpush.msra.mxu0 %v5126
    %v5128 = vsub.f32 %v4506, %v4506
    %5129 = vmatpush.msra.mxu0 %v5128
    %v5130 = vsub.f32 %v4505, %v4505
    %5131 = vmatpush.msra.mxu0 %v5130
    %v5132 = vsub.f32 %v4504, %v4504
    %5133 = vmatpush.msra.mxu0 %v5132
    %v5134 = vsub.f32 %v4503, %v4503
    %5135 = vmatpush.msra.mxu0 %v5134
    %v5136 = vsub.f32 %v4502, %v4502
    %5137 = vmatpush.msra.mxu0 %v5136
    %v5138 = vsub.f32 %v4501, %v4501
    %5139 = vmatpush.msra.mxu0 %v5138
    %v5140 = vsub.f32 %v4500, %v4500
    %5141 = vmatpush.msra.mxu0 %v5140
    %v5142 = vsub.f32 %v4499, %v4499
    %5143 = vmatpush.msra.mxu0 %v5142
    %v5144 = vsub.f32 %v4498, %v4498
    %5145 = vmatpush.msra.mxu0 %v5144
    %v5146 = vand.u32 %v3411, 4294901760
    %v5147 = vsub.f32 %v3411, %v5146
    %5148 = vmatmul.f32.gmra.mxu0 %v5147
    %v5149 = vpop.f32.mrf.mxu0
    %v5150 = vadd.f32 %v5112, %v5149
    %5151 = vdwg.mxu0
    %5152 = vmatpush.msra.mxu0 %v4513
    %5153 = vmatpush.msra.mxu0 %v4512
    %5154 = vmatpush.msra.mxu0 %v4511
    %5155 = vmatpush.msra.mxu0 %v4510
    %5156 = vmatpush.msra.mxu0 %v4509
    %5157 = vmatpush.msra.mxu0 %v4508
    %5158 = vmatpush.msra.mxu0 %v4507
    %5159 = vmatpush.msra.mxu0 %v4506
    %5160 = vmatpush.msra.mxu0 %v4505
    %5161 = vmatpush.msra.mxu0 %v4504
    %5162 = vmatpush.msra.mxu0 %v4503
    %5163 = vmatpush.msra.mxu0 %v4502
    %5164 = vmatpush.msra.mxu0 %v4501
    %5165 = vmatpush.msra.mxu0 %v4500
    %5166 = vmatpush.msra.mxu0 %v4499
    %5167 = vmatpush.msra.mxu0 %v4498
    %v5168 = vand.u32 %v3411, 4294901760
    %v5169 = vsub.f32 %v3411, %v5168
    %v5170 = vand.u32 %v5169, 4294901760
    %5171 = vmatmul.f32.gmra.mxu0 %v5170
    %v5172 = vpop.f32.mrf.mxu0
    %v5173 = vadd.f32 %v5150, %v5172
    %5174 = vdwg.mxu0
    %v5175 = vsub.f32 %v4513, %v4513
    %v5176 = vand.u32 %v5175, 4294901760
    %5177 = vmatpush.msra.mxu0 %v5176
    %v5178 = vsub.f32 %v4512, %v4512
    %v5179 = vand.u32 %v5178, 4294901760
    %5180 = vmatpush.msra.mxu0 %v5179
    %v5181 = vsub.f32 %v4511, %v4511
    %v5182 = vand.u32 %v5181, 4294901760
    %5183 = vmatpush.msra.mxu0 %v5182
    %v5184 = vsub.f32 %v4510, %v4510
    %v5185 = vand.u32 %v5184, 4294901760
    %5186 = vmatpush.msra.mxu0 %v5185
    %v5187 = vsub.f32 %v4509, %v4509
    %v5188 = vand.u32 %v5187, 4294901760
    %5189 = vmatpush.msra.mxu0 %v5188
    %v5190 = vsub.f32 %v4508, %v4508
    %v5191 = vand.u32 %v5190, 4294901760
    %5192 = vmatpush.msra.mxu0 %v5191
    %v5193 = vsub.f32 %v4507, %v4507
    %v5194 = vand.u32 %v5193, 4294901760
    %5195 = vmatpush.msra.mxu0 %v5194
    %v5196 = vsub.f32 %v4506, %v4506
    %v5197 = vand.u32 %v5196, 4294901760
    %5198 = vmatpush.msra.mxu0 %v5197
    %v5199 = vsub.f32 %v4505, %v4505
    %v5200 = vand.u32 %v5199, 4294901760
    %5201 = vmatpush.msra.mxu0 %v5200
    %v5202 = vsub.f32 %v4504, %v4504
    %v5203 = vand.u32 %v5202, 4294901760
    %5204 = vmatpush.msra.mxu0 %v5203
    %v5205 = vsub.f32 %v4503, %v4503
    %v5206 = vand.u32 %v5205, 4294901760
    %5207 = vmatpush.msra.mxu0 %v5206
    %v5208 = vsub.f32 %v4502, %v4502
    %v5209 = vand.u32 %v5208, 4294901760
    %5210 = vmatpush.msra.mxu0 %v5209
    %v5211 = vsub.f32 %v4501, %v4501
    %v5212 = vand.u32 %v5211, 4294901760
    %5213 = vmatpush.msra.mxu0 %v5212
    %v5214 = vsub.f32 %v4500, %v4500
    %v5215 = vand.u32 %v5214, 4294901760
    %5216 = vmatpush.msra.mxu0 %v5215
    %v5217 = vsub.f32 %v4499, %v4499
    %v5218 = vand.u32 %v5217, 4294901760
    %5219 = vmatpush.msra.mxu0 %v5218
    %v5220 = vsub.f32 %v4498, %v4498
    %v5221 = vand.u32 %v5220, 4294901760
    %5222 = vmatpush.msra.mxu0 %v5221
    %v5223 = vand.u32 %v3411, 4294901760
    %5224 = vmatmul.f32.gmra.mxu0 %v5223
    %v5225 = vpop.f32.mrf.mxu0
    %v5226 = vadd.f32 %v5173, %v5225
    %5227 = vdwg.mxu0
    %5228 = vmatpush.msra.mxu0 %v4513
    %5229 = vmatpush.msra.mxu0 %v4512
    %5230 = vmatpush.msra.mxu0 %v4511
    %5231 = vmatpush.msra.mxu0 %v4510
    %5232 = vmatpush.msra.mxu0 %v4509
    %5233 = vmatpush.msra.mxu0 %v4508
    %5234 = vmatpush.msra.mxu0 %v4507
    %5235 = vmatpush.msra.mxu0 %v4506
    %5236 = vmatpush.msra.mxu0 %v4505
    %5237 = vmatpush.msra.mxu0 %v4504
    %5238 = vmatpush.msra.mxu0 %v4503
    %5239 = vmatpush.msra.mxu0 %v4502
    %5240 = vmatpush.msra.mxu0 %v4501
    %5241 = vmatpush.msra.mxu0 %v4500
    %5242 = vmatpush.msra.mxu0 %v4499
    %5243 = vmatpush.msra.mxu0 %v4498
    %v5244 = vand.u32 %v3411, 4294901760
    %5245 = vmatmul.f32.gmra.mxu0 %v5244
    %v5246 = vpop.f32.mrf.mxu0
    %v5247 = vadd.f32 %v5226, %v5246
    %5248 = vdwg.mxu0
    %5249 = vmatpush.msra.mxu0 %v4481
    %5250 = vmatpush.msra.mxu0 %v4480
    %5251 = vmatpush.msra.mxu0 %v4479
    %5252 = vmatpush.msra.mxu0 %v4478
    %5253 = vmatpush.msra.mxu0 %v4477
    %5254 = vmatpush.msra.mxu0 %v4476
    %5255 = vmatpush.msra.mxu0 %v4475
    %5256 = vmatpush.msra.mxu0 %v4474
    %5257 = vmatpush.msra.mxu0 %v4473
    %5258 = vmatpush.msra.mxu0 %v4472
    %5259 = vmatpush.msra.mxu0 %v4471
    %5260 = vmatpush.msra.mxu0 %v4470
    %5261 = vmatpush.msra.mxu0 %v4469
    %5262 = vmatpush.msra.mxu0 %v4468
    %5263 = vmatpush.msra.mxu0 %v4467
    %5264 = vmatpush.msra.mxu0 %v4466
    %v5265 = vand.u32 %v3609, 4294901760
    %v5266 = vsub.f32 %v3609, %v5265
    %v5267 = vand.u32 %v5266, 4294901760
    %v5268 = vsub.f32 %v5266, %v5267
    %v5269 = vand.u32 %v5268, 4294901760
    %5270 = vmatmul.f32.gmra.mxu0 %v5269
    %v5271 = vpop.f32.mrf.mxu0
    %v5272 = vadd.f32 0.0, %v5271
    %5273 = vdwg.mxu0
    %v5274 = vsub.f32 %v4481, %v4481
    %v5275 = vand.u32 %v5274, 4294901760
    %v5276 = vsub.f32 %v5274, %v5275
    %v5277 = vand.u32 %v5276, 4294901760
    %5278 = vmatpush.msra.mxu0 %v5277
    %v5279 = vsub.f32 %v4480, %v4480
    %v5280 = vand.u32 %v5279, 4294901760
    %v5281 = vsub.f32 %v5279, %v5280
    %v5282 = vand.u32 %v5281, 4294901760
    %5283 = vmatpush.msra.mxu0 %v5282
    %v5284 = vsub.f32 %v4479, %v4479
    %v5285 = vand.u32 %v5284, 4294901760
    %v5286 = vsub.f32 %v5284, %v5285
    %v5287 = vand.u32 %v5286, 4294901760
    %5288 = vmatpush.msra.mxu0 %v5287
    %v5289 = vsub.f32 %v4478, %v4478
    %v5290 = vand.u32 %v5289, 4294901760
    %v5291 = vsub.f32 %v5289, %v5290
    %v5292 = vand.u32 %v5291, 4294901760
    %5293 = vmatpush.msra.mxu0 %v5292
    %v5294 = vsub.f32 %v4477, %v4477
    %v5295 = vand.u32 %v5294, 4294901760
    %v5296 = vsub.f32 %v5294, %v5295
    %v5297 = vand.u32 %v5296, 4294901760
    %5298 = vmatpush.msra.mxu0 %v5297
    %v5299 = vsub.f32 %v4476, %v4476
    %v5300 = vand.u32 %v5299, 4294901760
    %v5301 = vsub.f32 %v5299, %v5300
    %v5302 = vand.u32 %v5301, 4294901760
    %5303 = vmatpush.msra.mxu0 %v5302
    %v5304 = vsub.f32 %v4475, %v4475
    %v5305 = vand.u32 %v5304, 4294901760
    %v5306 = vsub.f32 %v5304, %v5305
    %v5307 = vand.u32 %v5306, 4294901760
    %5308 = vmatpush.msra.mxu0 %v5307
    %v5309 = vsub.f32 %v4474, %v4474
    %v5310 = vand.u32 %v5309, 4294901760
    %v5311 = vsub.f32 %v5309, %v5310
    %v5312 = vand.u32 %v5311, 4294901760
    %5313 = vmatpush.msra.mxu0 %v5312
    %v5314 = vsub.f32 %v4473, %v4473
    %v5315 = vand.u32 %v5314, 4294901760
    %v5316 = vsub.f32 %v5314, %v5315
    %v5317 = vand.u32 %v5316, 4294901760
    %5318 = vmatpush.msra.mxu0 %v5317
    %v5319 = vsub.f32 %v4472, %v4472
    %v5320 = vand.u32 %v5319, 4294901760
    %v5321 = vsub.f32 %v5319, %v5320
    %v5322 = vand.u32 %v5321, 4294901760
    %5323 = vmatpush.msra.mxu0 %v5322
    %v5324 = vsub.f32 %v4471, %v4471
    %v5325 = vand.u32 %v5324, 4294901760
    %v5326 = vsub.f32 %v5324, %v5325
    %v5327 = vand.u32 %v5326, 4294901760
    %5328 = vmatpush.msra.mxu0 %v5327
    %v5329 = vsub.f32 %v4470, %v4470
    %v5330 = vand.u32 %v5329, 4294901760
    %v5331 = vsub.f32 %v5329, %v5330
    %v5332 = vand.u32 %v5331, 4294901760
    %5333 = vmatpush.msra.mxu0 %v5332
    %v5334 = vsub.f32 %v4469, %v4469
    %v5335 = vand.u32 %v5334, 4294901760
    %v5336 = vsub.f32 %v5334, %v5335
    %v5337 = vand.u32 %v5336, 4294901760
    %5338 = vmatpush.msra.mxu0 %v5337
    %v5339 = vsub.f32 %v4468, %v4468
    %v5340 = vand.u32 %v5339, 4294901760
    %v5341 = vsub.f32 %v5339, %v5340
    %v5342 = vand.u32 %v5341, 4294901760
    %5343 = vmatpush.msra.mxu0 %v5342
    %v5344 = vsub.f32 %v4467, %v4467
    %v5345 = vand.u32 %v5344, 4294901760
    %v5346 = vsub.f32 %v5344, %v5345
    %v5347 = vand.u32 %v5346, 4294901760
    %5348 = vmatpush.msra.mxu0 %v5347
    %v5349 = vsub.f32 %v4466, %v4466
    %v5350 = vand.u32 %v5349, 4294901760
    %v5351 = vsub.f32 %v5349, %v5350
    %v5352 = vand.u32 %v5351, 4294901760
    %5353 = vmatpush.msra.mxu0 %v5352
    %v5354 = vand.u32 %v3609, 4294901760
    %5355 = vmatmul.f32.gmra.mxu0 %v5354
    %v5356 = vpop.f32.mrf.mxu0
    %v5357 = vadd.f32 %v5272, %v5356
    %5358 = vdwg.mxu0
    %v5359 = vsub.f32 %v4481, %v4481
    %5360 = vmatpush.msra.mxu0 %v5359
    %v5361 = vsub.f32 %v4480, %v4480
    %5362 = vmatpush.msra.mxu0 %v5361
    %v5363 = vsub.f32 %v4479, %v4479
    %5364 = vmatpush.msra.mxu0 %v5363
    %v5365 = vsub.f32 %v4478, %v4478
    %5366 = vmatpush.msra.mxu0 %v5365
    %v5367 = vsub.f32 %v4477, %v4477
    %5368 = vmatpush.msra.mxu0 %v5367
    %v5369 = vsub.f32 %v4476, %v4476
    %5370 = vmatpush.msra.mxu0 %v5369
    %v5371 = vsub.f32 %v4475, %v4475
    %5372 = vmatpush.msra.mxu0 %v5371
    %v5373 = vsub.f32 %v4474, %v4474
    %5374 = vmatpush.msra.mxu0 %v5373
    %v5375 = vsub.f32 %v4473, %v4473
    %5376 = vmatpush.msra.mxu0 %v5375
    %v5377 = vsub.f32 %v4472, %v4472
    %5378 = vmatpush.msra.mxu0 %v5377
    %v5379 = vsub.f32 %v4471, %v4471
    %5380 = vmatpush.msra.mxu0 %v5379
    %v5381 = vsub.f32 %v4470, %v4470
    %5382 = vmatpush.msra.mxu0 %v5381
    %v5383 = vsub.f32 %v4469, %v4469
    %5384 = vmatpush.msra.mxu0 %v5383
    %v5385 = vsub.f32 %v4468, %v4468
    %5386 = vmatpush.msra.mxu0 %v5385
    %v5387 = vsub.f32 %v4467, %v4467
    %5388 = vmatpush.msra.mxu0 %v5387
    %v5389 = vsub.f32 %v4466, %v4466
    %5390 = vmatpush.msra.mxu0 %v5389
    %v5391 = vand.u32 %v3609, 4294901760
    %v5392 = vsub.f32 %v3609, %v5391
    %5393 = vmatmul.f32.gmra.mxu0 %v5392
    %v5394 = vpop.f32.mrf.mxu0
    %v5395 = vadd.f32 %v5357, %v5394
    %5396 = vdwg.mxu0
    %5397 = vmatpush.msra.mxu0 %v4481
    %5398 = vmatpush.msra.mxu0 %v4480
    %5399 = vmatpush.msra.mxu0 %v4479
    %5400 = vmatpush.msra.mxu0 %v4478
    %5401 = vmatpush.msra.mxu0 %v4477
    %5402 = vmatpush.msra.mxu0 %v4476
    %5403 = vmatpush.msra.mxu0 %v4475
    %5404 = vmatpush.msra.mxu0 %v4474
    %5405 = vmatpush.msra.mxu0 %v4473
    %5406 = vmatpush.msra.mxu0 %v4472
    %5407 = vmatpush.msra.mxu0 %v4471
    %5408 = vmatpush.msra.mxu0 %v4470
    %5409 = vmatpush.msra.mxu0 %v4469
    %5410 = vmatpush.msra.mxu0 %v4468
    %5411 = vmatpush.msra.mxu0 %v4467
    %5412 = vmatpush.msra.mxu0 %v4466
    %v5413 = vand.u32 %v3609, 4294901760
    %v5414 = vsub.f32 %v3609, %v5413
    %v5415 = vand.u32 %v5414, 4294901760
    %5416 = vmatmul.f32.gmra.mxu0 %v5415
    %v5417 = vpop.f32.mrf.mxu0
    %v5418 = vadd.f32 %v5395, %v5417
    %5419 = vdwg.mxu0
    %v5420 = vsub.f32 %v4481, %v4481
    %v5421 = vand.u32 %v5420, 4294901760
    %5422 = vmatpush.msra.mxu0 %v5421
    %v5423 = vsub.f32 %v4480, %v4480
    %v5424 = vand.u32 %v5423, 4294901760
    %5425 = vmatpush.msra.mxu0 %v5424
    %v5426 = vsub.f32 %v4479, %v4479
    %v5427 = vand.u32 %v5426, 4294901760
    %5428 = vmatpush.msra.mxu0 %v5427
    %v5429 = vsub.f32 %v4478, %v4478
    %v5430 = vand.u32 %v5429, 4294901760
    %5431 = vmatpush.msra.mxu0 %v5430
    %v5432 = vsub.f32 %v4477, %v4477
    %v5433 = vand.u32 %v5432, 4294901760
    %5434 = vmatpush.msra.mxu0 %v5433
    %v5435 = vsub.f32 %v4476, %v4476
    %v5436 = vand.u32 %v5435, 4294901760
    %5437 = vmatpush.msra.mxu0 %v5436
    %v5438 = vsub.f32 %v4475, %v4475
    %v5439 = vand.u32 %v5438, 4294901760
    %5440 = vmatpush.msra.mxu0 %v5439
    %v5441 = vsub.f32 %v4474, %v4474
    %v5442 = vand.u32 %v5441, 4294901760
    %5443 = vmatpush.msra.mxu0 %v5442
    %v5444 = vsub.f32 %v4473, %v4473
    %v5445 = vand.u32 %v5444, 4294901760
    %5446 = vmatpush.msra.mxu0 %v5445
    %v5447 = vsub.f32 %v4472, %v4472
    %v5448 = vand.u32 %v5447, 4294901760
    %5449 = vmatpush.msra.mxu0 %v5448
    %v5450 = vsub.f32 %v4471, %v4471
    %v5451 = vand.u32 %v5450, 4294901760
    %5452 = vmatpush.msra.mxu0 %v5451
    %v5453 = vsub.f32 %v4470, %v4470
    %v5454 = vand.u32 %v5453, 4294901760
    %5455 = vmatpush.msra.mxu0 %v5454
    %v5456 = vsub.f32 %v4469, %v4469
    %v5457 = vand.u32 %v5456, 4294901760
    %5458 = vmatpush.msra.mxu0 %v5457
    %v5459 = vsub.f32 %v4468, %v4468
    %v5460 = vand.u32 %v5459, 4294901760
    %5461 = vmatpush.msra.mxu0 %v5460
    %v5462 = vsub.f32 %v4467, %v4467
    %v5463 = vand.u32 %v5462, 4294901760
    %5464 = vmatpush.msra.mxu0 %v5463
    %v5465 = vsub.f32 %v4466, %v4466
    %v5466 = vand.u32 %v5465, 4294901760
    %5467 = vmatpush.msra.mxu0 %v5466
    %v5468 = vand.u32 %v3609, 4294901760
    %5469 = vmatmul.f32.gmra.mxu0 %v5468
    %v5470 = vpop.f32.mrf.mxu0
    %v5471 = vadd.f32 %v5418, %v5470
    %5472 = vdwg.mxu0
    %5473 = vmatpush.msra.mxu0 %v4481
    %5474 = vmatpush.msra.mxu0 %v4480
    %5475 = vmatpush.msra.mxu0 %v4479
    %5476 = vmatpush.msra.mxu0 %v4478
    %5477 = vmatpush.msra.mxu0 %v4477
    %5478 = vmatpush.msra.mxu0 %v4476
    %5479 = vmatpush.msra.mxu0 %v4475
    %5480 = vmatpush.msra.mxu0 %v4474
    %5481 = vmatpush.msra.mxu0 %v4473
    %5482 = vmatpush.msra.mxu0 %v4472
    %5483 = vmatpush.msra.mxu0 %v4471
    %5484 = vmatpush.msra.mxu0 %v4470
    %5485 = vmatpush.msra.mxu0 %v4469
    %5486 = vmatpush.msra.mxu0 %v4468
    %5487 = vmatpush.msra.mxu0 %v4467
    %5488 = vmatpush.msra.mxu0 %v4466
    %v5489 = vand.u32 %v3609, 4294901760
    %5490 = vmatmul.f32.gmra.mxu0 %v5489
    %v5491 = vpop.f32.mrf.mxu0
    %v5492 = vadd.f32 %v5471, %v5491
    %5493 = vdwg.mxu0
    %5494 = vmatpush.msra.mxu0 %v4497
    %5495 = vmatpush.msra.mxu0 %v4496
    %5496 = vmatpush.msra.mxu0 %v4495
    %5497 = vmatpush.msra.mxu0 %v4494
    %5498 = vmatpush.msra.mxu0 %v4493
    %5499 = vmatpush.msra.mxu0 %v4492
    %5500 = vmatpush.msra.mxu0 %v4491
    %5501 = vmatpush.msra.mxu0 %v4490
    %5502 = vmatpush.msra.mxu0 %v4489
    %5503 = vmatpush.msra.mxu0 %v4488
    %5504 = vmatpush.msra.mxu0 %v4487
    %5505 = vmatpush.msra.mxu0 %v4486
    %5506 = vmatpush.msra.mxu0 %v4485
    %5507 = vmatpush.msra.mxu0 %v4484
    %5508 = vmatpush.msra.mxu0 %v4483
    %5509 = vmatpush.msra.mxu0 %v4482
    %v5510 = vand.u32 %v3807, 4294901760
    %v5511 = vsub.f32 %v3807, %v5510
    %v5512 = vand.u32 %v5511, 4294901760
    %v5513 = vsub.f32 %v5511, %v5512
    %v5514 = vand.u32 %v5513, 4294901760
    %5515 = vmatmul.f32.gmra.mxu0 %v5514
    %v5516 = vpop.f32.mrf.mxu0
    %v5517 = vadd.f32 %v5492, %v5516
    %5518 = vdwg.mxu0
    %v5519 = vsub.f32 %v4497, %v4497
    %v5520 = vand.u32 %v5519, 4294901760
    %v5521 = vsub.f32 %v5519, %v5520
    %v5522 = vand.u32 %v5521, 4294901760
    %5523 = vmatpush.msra.mxu0 %v5522
    %v5524 = vsub.f32 %v4496, %v4496
    %v5525 = vand.u32 %v5524, 4294901760
    %v5526 = vsub.f32 %v5524, %v5525
    %v5527 = vand.u32 %v5526, 4294901760
    %5528 = vmatpush.msra.mxu0 %v5527
    %v5529 = vsub.f32 %v4495, %v4495
    %v5530 = vand.u32 %v5529, 4294901760
    %v5531 = vsub.f32 %v5529, %v5530
    %v5532 = vand.u32 %v5531, 4294901760
    %5533 = vmatpush.msra.mxu0 %v5532
    %v5534 = vsub.f32 %v4494, %v4494
    %v5535 = vand.u32 %v5534, 4294901760
    %v5536 = vsub.f32 %v5534, %v5535
    %v5537 = vand.u32 %v5536, 4294901760
    %5538 = vmatpush.msra.mxu0 %v5537
    %v5539 = vsub.f32 %v4493, %v4493
    %v5540 = vand.u32 %v5539, 4294901760
    %v5541 = vsub.f32 %v5539, %v5540
    %v5542 = vand.u32 %v5541, 4294901760
    %5543 = vmatpush.msra.mxu0 %v5542
    %v5544 = vsub.f32 %v4492, %v4492
    %v5545 = vand.u32 %v5544, 4294901760
    %v5546 = vsub.f32 %v5544, %v5545
    %v5547 = vand.u32 %v5546, 4294901760
    %5548 = vmatpush.msra.mxu0 %v5547
    %v5549 = vsub.f32 %v4491, %v4491
    %v5550 = vand.u32 %v5549, 4294901760
    %v5551 = vsub.f32 %v5549, %v5550
    %v5552 = vand.u32 %v5551, 4294901760
    %5553 = vmatpush.msra.mxu0 %v5552
    %v5554 = vsub.f32 %v4490, %v4490
    %v5555 = vand.u32 %v5554, 4294901760
    %v5556 = vsub.f32 %v5554, %v5555
    %v5557 = vand.u32 %v5556, 4294901760
    %5558 = vmatpush.msra.mxu0 %v5557
    %v5559 = vsub.f32 %v4489, %v4489
    %v5560 = vand.u32 %v5559, 4294901760
    %v5561 = vsub.f32 %v5559, %v5560
    %v5562 = vand.u32 %v5561, 4294901760
    %5563 = vmatpush.msra.mxu0 %v5562
    %v5564 = vsub.f32 %v4488, %v4488
    %v5565 = vand.u32 %v5564, 4294901760
    %v5566 = vsub.f32 %v5564, %v5565
    %v5567 = vand.u32 %v5566, 4294901760
    %5568 = vmatpush.msra.mxu0 %v5567
    %v5569 = vsub.f32 %v4487, %v4487
    %v5570 = vand.u32 %v5569, 4294901760
    %v5571 = vsub.f32 %v5569, %v5570
    %v5572 = vand.u32 %v5571, 4294901760
    %5573 = vmatpush.msra.mxu0 %v5572
    %v5574 = vsub.f32 %v4486, %v4486
    %v5575 = vand.u32 %v5574, 4294901760
    %v5576 = vsub.f32 %v5574, %v5575
    %v5577 = vand.u32 %v5576, 4294901760
    %5578 = vmatpush.msra.mxu0 %v5577
    %v5579 = vsub.f32 %v4485, %v4485
    %v5580 = vand.u32 %v5579, 4294901760
    %v5581 = vsub.f32 %v5579, %v5580
    %v5582 = vand.u32 %v5581, 4294901760
    %5583 = vmatpush.msra.mxu0 %v5582
    %v5584 = vsub.f32 %v4484, %v4484
    %v5585 = vand.u32 %v5584, 4294901760
    %v5586 = vsub.f32 %v5584, %v5585
    %v5587 = vand.u32 %v5586, 4294901760
    %5588 = vmatpush.msra.mxu0 %v5587
    %v5589 = vsub.f32 %v4483, %v4483
    %v5590 = vand.u32 %v5589, 4294901760
    %v5591 = vsub.f32 %v5589, %v5590
    %v5592 = vand.u32 %v5591, 4294901760
    %5593 = vmatpush.msra.mxu0 %v5592
    %v5594 = vsub.f32 %v4482, %v4482
    %v5595 = vand.u32 %v5594, 4294901760
    %v5596 = vsub.f32 %v5594, %v5595
    %v5597 = vand.u32 %v5596, 4294901760
    %5598 = vmatpush.msra.mxu0 %v5597
    %v5599 = vand.u32 %v3807, 4294901760
    %5600 = vmatmul.f32.gmra.mxu0 %v5599
    %v5601 = vpop.f32.mrf.mxu0
    %v5602 = vadd.f32 %v5517, %v5601
    %5603 = vdwg.mxu0
    %v5604 = vsub.f32 %v4497, %v4497
    %5605 = vmatpush.msra.mxu0 %v5604
    %v5606 = vsub.f32 %v4496, %v4496
    %5607 = vmatpush.msra.mxu0 %v5606
    %v5608 = vsub.f32 %v4495, %v4495
    %5609 = vmatpush.msra.mxu0 %v5608
    %v5610 = vsub.f32 %v4494, %v4494
    %5611 = vmatpush.msra.mxu0 %v5610
    %v5612 = vsub.f32 %v4493, %v4493
    %5613 = vmatpush.msra.mxu0 %v5612
    %v5614 = vsub.f32 %v4492, %v4492
    %5615 = vmatpush.msra.mxu0 %v5614
    %v5616 = vsub.f32 %v4491, %v4491
    %5617 = vmatpush.msra.mxu0 %v5616
    %v5618 = vsub.f32 %v4490, %v4490
    %5619 = vmatpush.msra.mxu0 %v5618
    %v5620 = vsub.f32 %v4489, %v4489
    %5621 = vmatpush.msra.mxu0 %v5620
    %v5622 = vsub.f32 %v4488, %v4488
    %5623 = vmatpush.msra.mxu0 %v5622
    %v5624 = vsub.f32 %v4487, %v4487
    %5625 = vmatpush.msra.mxu0 %v5624
    %v5626 = vsub.f32 %v4486, %v4486
    %5627 = vmatpush.msra.mxu0 %v5626
    %v5628 = vsub.f32 %v4485, %v4485
    %5629 = vmatpush.msra.mxu0 %v5628
    %v5630 = vsub.f32 %v4484, %v4484
    %5631 = vmatpush.msra.mxu0 %v5630
    %v5632 = vsub.f32 %v4483, %v4483
    %5633 = vmatpush.msra.mxu0 %v5632
    %v5634 = vsub.f32 %v4482, %v4482
    %5635 = vmatpush.msra.mxu0 %v5634
    %v5636 = vand.u32 %v3807, 4294901760
    %v5637 = vsub.f32 %v3807, %v5636
    %5638 = vmatmul.f32.gmra.mxu0 %v5637
    %v5639 = vpop.f32.mrf.mxu0
    %v5640 = vadd.f32 %v5602, %v5639
    %5641 = vdwg.mxu0
    %5642 = vmatpush.msra.mxu0 %v4497
    %5643 = vmatpush.msra.mxu0 %v4496
    %5644 = vmatpush.msra.mxu0 %v4495
    %5645 = vmatpush.msra.mxu0 %v4494
    %5646 = vmatpush.msra.mxu0 %v4493
    %5647 = vmatpush.msra.mxu0 %v4492
    %5648 = vmatpush.msra.mxu0 %v4491
    %5649 = vmatpush.msra.mxu0 %v4490
    %5650 = vmatpush.msra.mxu0 %v4489
    %5651 = vmatpush.msra.mxu0 %v4488
    %5652 = vmatpush.msra.mxu0 %v4487
    %5653 = vmatpush.msra.mxu0 %v4486
    %5654 = vmatpush.msra.mxu0 %v4485
    %5655 = vmatpush.msra.mxu0 %v4484
    %5656 = vmatpush.msra.mxu0 %v4483
    %5657 = vmatpush.msra.mxu0 %v4482
    %v5658 = vand.u32 %v3807, 4294901760
    %v5659 = vsub.f32 %v3807, %v5658
    %v5660 = vand.u32 %v5659, 4294901760
    %5661 = vmatmul.f32.gmra.mxu0 %v5660
    %v5662 = vpop.f32.mrf.mxu0
    %v5663 = vadd.f32 %v5640, %v5662
    %5664 = vdwg.mxu0
    %v5665 = vsub.f32 %v4497, %v4497
    %v5666 = vand.u32 %v5665, 4294901760
    %5667 = vmatpush.msra.mxu0 %v5666
    %v5668 = vsub.f32 %v4496, %v4496
    %v5669 = vand.u32 %v5668, 4294901760
    %5670 = vmatpush.msra.mxu0 %v5669
    %v5671 = vsub.f32 %v4495, %v4495
    %v5672 = vand.u32 %v5671, 4294901760
    %5673 = vmatpush.msra.mxu0 %v5672
    %v5674 = vsub.f32 %v4494, %v4494
    %v5675 = vand.u32 %v5674, 4294901760
    %5676 = vmatpush.msra.mxu0 %v5675
    %v5677 = vsub.f32 %v4493, %v4493
    %v5678 = vand.u32 %v5677, 4294901760
    %5679 = vmatpush.msra.mxu0 %v5678
    %v5680 = vsub.f32 %v4492, %v4492
    %v5681 = vand.u32 %v5680, 4294901760
    %5682 = vmatpush.msra.mxu0 %v5681
    %v5683 = vsub.f32 %v4491, %v4491
    %v5684 = vand.u32 %v5683, 4294901760
    %5685 = vmatpush.msra.mxu0 %v5684
    %v5686 = vsub.f32 %v4490, %v4490
    %v5687 = vand.u32 %v5686, 4294901760
    %5688 = vmatpush.msra.mxu0 %v5687
    %v5689 = vsub.f32 %v4489, %v4489
    %v5690 = vand.u32 %v5689, 4294901760
    %5691 = vmatpush.msra.mxu0 %v5690
    %v5692 = vsub.f32 %v4488, %v4488
    %v5693 = vand.u32 %v5692, 4294901760
    %5694 = vmatpush.msra.mxu0 %v5693
    %v5695 = vsub.f32 %v4487, %v4487
    %v5696 = vand.u32 %v5695, 4294901760
    %5697 = vmatpush.msra.mxu0 %v5696
    %v5698 = vsub.f32 %v4486, %v4486
    %v5699 = vand.u32 %v5698, 4294901760
    %5700 = vmatpush.msra.mxu0 %v5699
    %v5701 = vsub.f32 %v4485, %v4485
    %v5702 = vand.u32 %v5701, 4294901760
    %5703 = vmatpush.msra.mxu0 %v5702
    %v5704 = vsub.f32 %v4484, %v4484
    %v5705 = vand.u32 %v5704, 4294901760
    %5706 = vmatpush.msra.mxu0 %v5705
    %v5707 = vsub.f32 %v4483, %v4483
    %v5708 = vand.u32 %v5707, 4294901760
    %5709 = vmatpush.msra.mxu0 %v5708
    %v5710 = vsub.f32 %v4482, %v4482
    %v5711 = vand.u32 %v5710, 4294901760
    %5712 = vmatpush.msra.mxu0 %v5711
    %v5713 = vand.u32 %v3807, 4294901760
    %5714 = vmatmul.f32.gmra.mxu0 %v5713
    %v5715 = vpop.f32.mrf.mxu0
    %v5716 = vadd.f32 %v5663, %v5715
    %5717 = vdwg.mxu0
    %5718 = vmatpush.msra.mxu0 %v4497
    %5719 = vmatpush.msra.mxu0 %v4496
    %5720 = vmatpush.msra.mxu0 %v4495
    %5721 = vmatpush.msra.mxu0 %v4494
    %5722 = vmatpush.msra.mxu0 %v4493
    %5723 = vmatpush.msra.mxu0 %v4492
    %5724 = vmatpush.msra.mxu0 %v4491
    %5725 = vmatpush.msra.mxu0 %v4490
    %5726 = vmatpush.msra.mxu0 %v4489
    %5727 = vmatpush.msra.mxu0 %v4488
    %5728 = vmatpush.msra.mxu0 %v4487
    %5729 = vmatpush.msra.mxu0 %v4486
    %5730 = vmatpush.msra.mxu0 %v4485
    %5731 = vmatpush.msra.mxu0 %v4484
    %5732 = vmatpush.msra.mxu0 %v4483
    %5733 = vmatpush.msra.mxu0 %v4482
    %v5734 = vand.u32 %v3807, 4294901760
    %5735 = vmatmul.f32.gmra.mxu0 %v5734
    %v5736 = vpop.f32.mrf.mxu0
    %v5737 = vadd.f32 %v5716, %v5736
    %5738 = vdwg.mxu0
    %5739 = vmatpush.msra.mxu0 %v4513
    %5740 = vmatpush.msra.mxu0 %v4512
    %5741 = vmatpush.msra.mxu0 %v4511
    %5742 = vmatpush.msra.mxu0 %v4510
    %5743 = vmatpush.msra.mxu0 %v4509
    %5744 = vmatpush.msra.mxu0 %v4508
    %5745 = vmatpush.msra.mxu0 %v4507
    %5746 = vmatpush.msra.mxu0 %v4506
    %5747 = vmatpush.msra.mxu0 %v4505
    %5748 = vmatpush.msra.mxu0 %v4504
    %5749 = vmatpush.msra.mxu0 %v4503
    %5750 = vmatpush.msra.mxu0 %v4502
    %5751 = vmatpush.msra.mxu0 %v4501
    %5752 = vmatpush.msra.mxu0 %v4500
    %5753 = vmatpush.msra.mxu0 %v4499
    %5754 = vmatpush.msra.mxu0 %v4498
    %v5755 = vand.u32 %v4005, 4294901760
    %v5756 = vsub.f32 %v4005, %v5755
    %v5757 = vand.u32 %v5756, 4294901760
    %v5758 = vsub.f32 %v5756, %v5757
    %v5759 = vand.u32 %v5758, 4294901760
    %5760 = vmatmul.f32.gmra.mxu0 %v5759
    %v5761 = vpop.f32.mrf.mxu0
    %v5762 = vadd.f32 %v5737, %v5761
    %5763 = vdwg.mxu0
    %v5764 = vsub.f32 %v4513, %v4513
    %v5765 = vand.u32 %v5764, 4294901760
    %v5766 = vsub.f32 %v5764, %v5765
    %v5767 = vand.u32 %v5766, 4294901760
    %5768 = vmatpush.msra.mxu0 %v5767
    %v5769 = vsub.f32 %v4512, %v4512
    %v5770 = vand.u32 %v5769, 4294901760
    %v5771 = vsub.f32 %v5769, %v5770
    %v5772 = vand.u32 %v5771, 4294901760
    %5773 = vmatpush.msra.mxu0 %v5772
    %v5774 = vsub.f32 %v4511, %v4511
    %v5775 = vand.u32 %v5774, 4294901760
    %v5776 = vsub.f32 %v5774, %v5775
    %v5777 = vand.u32 %v5776, 4294901760
    %5778 = vmatpush.msra.mxu0 %v5777
    %v5779 = vsub.f32 %v4510, %v4510
    %v5780 = vand.u32 %v5779, 4294901760
    %v5781 = vsub.f32 %v5779, %v5780
    %v5782 = vand.u32 %v5781, 4294901760
    %5783 = vmatpush.msra.mxu0 %v5782
    %v5784 = vsub.f32 %v4509, %v4509
    %v5785 = vand.u32 %v5784, 4294901760
    %v5786 = vsub.f32 %v5784, %v5785
    %v5787 = vand.u32 %v5786, 4294901760
    %5788 = vmatpush.msra.mxu0 %v5787
    %v5789 = vsub.f32 %v4508, %v4508
    %v5790 = vand.u32 %v5789, 4294901760
    %v5791 = vsub.f32 %v5789, %v5790
    %v5792 = vand.u32 %v5791, 4294901760
    %5793 = vmatpush.msra.mxu0 %v5792
    %v5794 = vsub.f32 %v4507, %v4507
    %v5795 = vand.u32 %v5794, 4294901760
    %v5796 = vsub.f32 %v5794, %v5795
    %v5797 = vand.u32 %v5796, 4294901760
    %5798 = vmatpush.msra.mxu0 %v5797
    %v5799 = vsub.f32 %v4506, %v4506
    %v5800 = vand.u32 %v5799, 4294901760
    %v5801 = vsub.f32 %v5799, %v5800
    %v5802 = vand.u32 %v5801, 4294901760
    %5803 = vmatpush.msra.mxu0 %v5802
    %v5804 = vsub.f32 %v4505, %v4505
    %v5805 = vand.u32 %v5804, 4294901760
    %v5806 = vsub.f32 %v5804, %v5805
    %v5807 = vand.u32 %v5806, 4294901760
    %5808 = vmatpush.msra.mxu0 %v5807
    %v5809 = vsub.f32 %v4504, %v4504
    %v5810 = vand.u32 %v5809, 4294901760
    %v5811 = vsub.f32 %v5809, %v5810
    %v5812 = vand.u32 %v5811, 4294901760
    %5813 = vmatpush.msra.mxu0 %v5812
    %v5814 = vsub.f32 %v4503, %v4503
    %v5815 = vand.u32 %v5814, 4294901760
    %v5816 = vsub.f32 %v5814, %v5815
    %v5817 = vand.u32 %v5816, 4294901760
    %5818 = vmatpush.msra.mxu0 %v5817
    %v5819 = vsub.f32 %v4502, %v4502
    %v5820 = vand.u32 %v5819, 4294901760
    %v5821 = vsub.f32 %v5819, %v5820
    %v5822 = vand.u32 %v5821, 4294901760
    %5823 = vmatpush.msra.mxu0 %v5822
    %v5824 = vsub.f32 %v4501, %v4501
    %v5825 = vand.u32 %v5824, 4294901760
    %v5826 = vsub.f32 %v5824, %v5825
    %v5827 = vand.u32 %v5826, 4294901760
    %5828 = vmatpush.msra.mxu0 %v5827
    %v5829 = vsub.f32 %v4500, %v4500
    %v5830 = vand.u32 %v5829, 4294901760
    %v5831 = vsub.f32 %v5829, %v5830
    %v5832 = vand.u32 %v5831, 4294901760
    %5833 = vmatpush.msra.mxu0 %v5832
    %v5834 = vsub.f32 %v4499, %v4499
    %v5835 = vand.u32 %v5834, 4294901760
    %v5836 = vsub.f32 %v5834, %v5835
    %v5837 = vand.u32 %v5836, 4294901760
    %5838 = vmatpush.msra.mxu0 %v5837
    %v5839 = vsub.f32 %v4498, %v4498
    %v5840 = vand.u32 %v5839, 4294901760
    %v5841 = vsub.f32 %v5839, %v5840
    %v5842 = vand.u32 %v5841, 4294901760
    %5843 = vmatpush.msra.mxu0 %v5842
    %v5844 = vand.u32 %v4005, 4294901760
    %5845 = vmatmul.f32.gmra.mxu0 %v5844
    %v5846 = vpop.f32.mrf.mxu0
    %v5847 = vadd.f32 %v5762, %v5846
    %5848 = vdwg.mxu0
    %v5849 = vsub.f32 %v4513, %v4513
    %5850 = vmatpush.msra.mxu0 %v5849
    %v5851 = vsub.f32 %v4512, %v4512
    %5852 = vmatpush.msra.mxu0 %v5851
    %v5853 = vsub.f32 %v4511, %v4511
    %5854 = vmatpush.msra.mxu0 %v5853
    %v5855 = vsub.f32 %v4510, %v4510
    %5856 = vmatpush.msra.mxu0 %v5855
    %v5857 = vsub.f32 %v4509, %v4509
    %5858 = vmatpush.msra.mxu0 %v5857
    %v5859 = vsub.f32 %v4508, %v4508
    %5860 = vmatpush.msra.mxu0 %v5859
    %v5861 = vsub.f32 %v4507, %v4507
    %5862 = vmatpush.msra.mxu0 %v5861
    %v5863 = vsub.f32 %v4506, %v4506
    %5864 = vmatpush.msra.mxu0 %v5863
    %v5865 = vsub.f32 %v4505, %v4505
    %5866 = vmatpush.msra.mxu0 %v5865
    %v5867 = vsub.f32 %v4504, %v4504
    %5868 = vmatpush.msra.mxu0 %v5867
    %v5869 = vsub.f32 %v4503, %v4503
    %5870 = vmatpush.msra.mxu0 %v5869
    %v5871 = vsub.f32 %v4502, %v4502
    %5872 = vmatpush.msra.mxu0 %v5871
    %v5873 = vsub.f32 %v4501, %v4501
    %5874 = vmatpush.msra.mxu0 %v5873
    %v5875 = vsub.f32 %v4500, %v4500
    %5876 = vmatpush.msra.mxu0 %v5875
    %v5877 = vsub.f32 %v4499, %v4499
    %5878 = vmatpush.msra.mxu0 %v5877
    %v5879 = vsub.f32 %v4498, %v4498
    %5880 = vmatpush.msra.mxu0 %v5879
    %v5881 = vand.u32 %v4005, 4294901760
    %v5882 = vsub.f32 %v4005, %v5881
    %5883 = vmatmul.f32.gmra.mxu0 %v5882
    %v5884 = vpop.f32.mrf.mxu0
    %v5885 = vadd.f32 %v5847, %v5884
    %5886 = vdwg.mxu0
    %5887 = vmatpush.msra.mxu0 %v4513
    %5888 = vmatpush.msra.mxu0 %v4512
    %5889 = vmatpush.msra.mxu0 %v4511
    %5890 = vmatpush.msra.mxu0 %v4510
    %5891 = vmatpush.msra.mxu0 %v4509
    %5892 = vmatpush.msra.mxu0 %v4508
    %5893 = vmatpush.msra.mxu0 %v4507
    %5894 = vmatpush.msra.mxu0 %v4506
    %5895 = vmatpush.msra.mxu0 %v4505
    %5896 = vmatpush.msra.mxu0 %v4504
    %5897 = vmatpush.msra.mxu0 %v4503
    %5898 = vmatpush.msra.mxu0 %v4502
    %5899 = vmatpush.msra.mxu0 %v4501
    %5900 = vmatpush.msra.mxu0 %v4500
    %5901 = vmatpush.msra.mxu0 %v4499
    %5902 = vmatpush.msra.mxu0 %v4498
    %v5903 = vand.u32 %v4005, 4294901760
    %v5904 = vsub.f32 %v4005, %v5903
    %v5905 = vand.u32 %v5904, 4294901760
    %5906 = vmatmul.f32.gmra.mxu0 %v5905
    %v5907 = vpop.f32.mrf.mxu0
    %v5908 = vadd.f32 %v5885, %v5907
    %5909 = vdwg.mxu0
    %v5910 = vsub.f32 %v4513, %v4513
    %v5911 = vand.u32 %v5910, 4294901760
    %5912 = vmatpush.msra.mxu0 %v5911
    %v5913 = vsub.f32 %v4512, %v4512
    %v5914 = vand.u32 %v5913, 4294901760
    %5915 = vmatpush.msra.mxu0 %v5914
    %v5916 = vsub.f32 %v4511, %v4511
    %v5917 = vand.u32 %v5916, 4294901760
    %5918 = vmatpush.msra.mxu0 %v5917
    %v5919 = vsub.f32 %v4510, %v4510
    %v5920 = vand.u32 %v5919, 4294901760
    %5921 = vmatpush.msra.mxu0 %v5920
    %v5922 = vsub.f32 %v4509, %v4509
    %v5923 = vand.u32 %v5922, 4294901760
    %5924 = vmatpush.msra.mxu0 %v5923
    %v5925 = vsub.f32 %v4508, %v4508
    %v5926 = vand.u32 %v5925, 4294901760
    %5927 = vmatpush.msra.mxu0 %v5926
    %v5928 = vsub.f32 %v4507, %v4507
    %v5929 = vand.u32 %v5928, 4294901760
    %5930 = vmatpush.msra.mxu0 %v5929
    %v5931 = vsub.f32 %v4506, %v4506
    %v5932 = vand.u32 %v5931, 4294901760
    %5933 = vmatpush.msra.mxu0 %v5932
    %v5934 = vsub.f32 %v4505, %v4505
    %v5935 = vand.u32 %v5934, 4294901760
    %5936 = vmatpush.msra.mxu0 %v5935
    %v5937 = vsub.f32 %v4504, %v4504
    %v5938 = vand.u32 %v5937, 4294901760
    %5939 = vmatpush.msra.mxu0 %v5938
    %v5940 = vsub.f32 %v4503, %v4503
    %v5941 = vand.u32 %v5940, 4294901760
    %5942 = vmatpush.msra.mxu0 %v5941
    %v5943 = vsub.f32 %v4502, %v4502
    %v5944 = vand.u32 %v5943, 4294901760
    %5945 = vmatpush.msra.mxu0 %v5944
    %v5946 = vsub.f32 %v4501, %v4501
    %v5947 = vand.u32 %v5946, 4294901760
    %5948 = vmatpush.msra.mxu0 %v5947
    %v5949 = vsub.f32 %v4500, %v4500
    %v5950 = vand.u32 %v5949, 4294901760
    %5951 = vmatpush.msra.mxu0 %v5950
    %v5952 = vsub.f32 %v4499, %v4499
    %v5953 = vand.u32 %v5952, 4294901760
    %5954 = vmatpush.msra.mxu0 %v5953
    %v5955 = vsub.f32 %v4498, %v4498
    %v5956 = vand.u32 %v5955, 4294901760
    %5957 = vmatpush.msra.mxu0 %v5956
    %v5958 = vand.u32 %v4005, 4294901760
    %5959 = vmatmul.f32.gmra.mxu0 %v5958
    %v5960 = vpop.f32.mrf.mxu0
    %v5961 = vadd.f32 %v5908, %v5960
    %5962 = vdwg.mxu0
    %5963 = vmatpush.msra.mxu0 %v4513
    %5964 = vmatpush.msra.mxu0 %v4512
    %5965 = vmatpush.msra.mxu0 %v4511
    %5966 = vmatpush.msra.mxu0 %v4510
    %5967 = vmatpush.msra.mxu0 %v4509
    %5968 = vmatpush.msra.mxu0 %v4508
    %5969 = vmatpush.msra.mxu0 %v4507
    %5970 = vmatpush.msra.mxu0 %v4506
    %5971 = vmatpush.msra.mxu0 %v4505
    %5972 = vmatpush.msra.mxu0 %v4504
    %5973 = vmatpush.msra.mxu0 %v4503
    %5974 = vmatpush.msra.mxu0 %v4502
    %5975 = vmatpush.msra.mxu0 %v4501
    %5976 = vmatpush.msra.mxu0 %v4500
    %5977 = vmatpush.msra.mxu0 %v4499
    %5978 = vmatpush.msra.mxu0 %v4498
    %v5979 = vand.u32 %v4005, 4294901760
    %5980 = vmatmul.f32.gmra.mxu0 %v5979
    %v5981 = vpop.f32.mrf.mxu0
    %v5982 = vadd.f32 %v5961, %v5981
    %5983 = vdwg.mxu0
    %5985 = vrot.lane.b32.xlu0 %v5982, 64
    %v5986 = vpop.permute.xlu0 %5985
    %vm5988 = vcmask 523264
    %v5989 = vsel %vm5988, %v5247, %v5986
    %v5990 = vld [vmem:[%s4] sm:$0xff]
    %5992 = vset.pattern.permute.xlu0 0
    %5993 = vperm.xlu0 %5992, %v5990
    %v5994 = vpop.permute.xlu0 %5993
    %v5996 = vadd.f32 %v5989, %v5994
    %5997 = vst [vmem:[#allocation6] sm:$0xff] %v5996
    // Predicated region
    $region26: #{tpu_custom_call.1} parent=1 // pred_check
      _
    $region27: #{tpu_custom_call.1} parent=1 // pred_check_branch
      %5999 = sbr.rel (0) target = $region29
    $region28: #{tpu_custom_call.1} parent=1 // pred_region
      %6001 = vsyncadd [#allocation5], 0
      %s6003 = sshll.u32 [#allocation6], 4
      %s6004 = int_to_ptr.vmem [resolvable:$true] %s6003
      %s6005 = sshll.u32 %s5, 4
      %s6006 = int_to_ptr.hbm [resolvable:$true] %s6005
      %6008 = dma.vmem_to_hbm [thread:$0]  %s6004, 128, %s6006, [#allocation5]
    $region29: #{tpu_custom_call.1} parent=1 // pred_fallthru
      _
    // Predicated region
    $region30: #{tpu_custom_call.1} parent=1 // pred_check
      _
    $region31: #{tpu_custom_call.1} parent=1 // pred_check_branch
      %6010 = sbr.rel (0) target = $region33
    $region32: #{tpu_custom_call.1} parent=1 // pred_region
      %6012 = dma.done [#allocation5], 128
    $region33: #{tpu_custom_call.1} parent=1 // pred_fallthru
      _
    %6013 = vsyncpa [#allocation4], 1
    %6014 = vsyncpa [#allocation5], 1

</llo_original>
